<compile_context>
chip_gen: v7x
topology: tpu7x:2x2x1
jax: 0.10.0
libtpu: 0.0.40
codegen_flags: <defaults>
</compile_context>

<pallas_src>
import functools
import math

import jax
import jax.numpy as jnp
from jax.experimental import pallas as pl
from jax.experimental.pallas import tpu as pltpu

BN_EPS = 1e-5
LEAKY_SLOPE = 0.2
PRE_CHANNELS = [4, 64, 64, 64, 128, 1024]
POST_CHANNELS_HEAD = [1024, 512, 256]          # final output dim appended at init


def _round_up(x, m):
    return ((x + m - 1) // m) * m


def _softplus(x):
    # numerically-stable softplus (matches F.softplus within fp tolerance)
    return jnp.maximum(x, 0.0) + jnp.log(1.0 + jnp.exp(-jnp.abs(x)))


def _pick_tile_rows(n_points):
    """Point-tile rows: big tiles on 128-MiB-VMEM parts (v5e/v6e), 512 on v7x."""
    n8 = _round_up(max(int(n_points), 1), 8)
    try:
        vmem = pltpu.get_tpu_info().vmem_capacity_bytes
    except Exception:
        vmem = 64 * 1024 * 1024
    cap = 2048 if vmem >= 100 * 1024 * 1024 else 512
    return min(cap, n8)


# ----------------------------------------------------------------------------
# Fused kernel. Grid = (batch, point_tile); batch "parallel", tiles "arbitrary".
# acc_ref: (8, 1024) f32 running max (all rows identical after the first tile).
# ----------------------------------------------------------------------------
def _param_pred_kernel(x_ref,
                       w1, b1, w2, b2, w3, b3, w4, b4, w5, b5,
                       f1w, f1b, f2w, f2b, f3w, f3b,
                       out_ref, acc_ref, *, n_valid, tile_rows):
    t = pl.program_id(1)

    @pl.when(t == 0)
    def _():
        acc_ref[...] = jnp.full_like(acc_ref, -jnp.inf)

    def lin(h, w_ref, b_ref, act):
        # bf16 operands on the MXU, f32 accumulation + bias + activation.
        y = jnp.dot(h, w_ref[...], preferred_element_type=jnp.float32) + b_ref[...]
        if act:
            y = jnp.maximum(y, LEAKY_SLOPE * y)
        return y

    x = x_ref[0].astype(jnp.bfloat16)                   # (tile_rows, 4)
    h = lin(x, w1, b1, True).astype(jnp.bfloat16)       # (tile_rows, 64)
    h = lin(h, w2, b2, True).astype(jnp.bfloat16)       # (tile_rows, 64)
    h = lin(h, w3, b3, True).astype(jnp.bfloat16)       # (tile_rows, 64)
    h = lin(h, w4, b4, True).astype(jnp.bfloat16)       # (tile_rows, 128)
    h = lin(h, w5, b5, False)                           # (tile_rows, 1024) f32

    # Mask padded point rows to -inf so they cannot win the global max pool.
    row = jax.lax.broadcasted_iota(jnp.int32, (tile_rows, 1), 0)
    valid = (t * tile_rows + row) < n_valid
    h = jnp.where(valid, h, -jnp.inf)
    acc_ref[...] = jnp.maximum(acc_ref[...], jnp.max(h, axis=0, keepdims=True))

    # Postpool FC chain + softplus, once per batch at the last point tile.
    @pl.when(t == pl.num_programs(1) - 1)
    def _():
        g = acc_ref[...].astype(jnp.bfloat16)                       # (8, 1024)
        g = lin(g, f1w, f1b, True).astype(jnp.bfloat16)             # (8, 512)
        g = lin(g, f2w, f2b, True).astype(jnp.bfloat16)             # (8, 256)
        raw = lin(g, f3w, f3b, False)                               # (8, out_cols)
        out_ref[0] = _softplus(raw).astype(out_ref.dtype)           # lane-dense store


# ----------------------------------------------------------------------------
# Parameter prep: fold eval-mode BatchNorm, cast weights to bf16 (biases f32),
# pad the last FC's output columns to a lane-dense multiple of 128.
# ----------------------------------------------------------------------------
def _fold_bn(w, b, bn):
    if bn is None:
        return w, b
    scale = bn["gamma"] / jnp.sqrt(bn["var"] + BN_EPS)
    return w * scale[None, :], (b - bn["mean"]) * scale + bn["beta"]


def _flatten_params(params, out_cols):
    layers = params["pre"] + params["post"]
    last = len(layers) - 1
    flat = []
    for idx, lyr in enumerate(layers):
        w, b = _fold_bn(lyr["w"], lyr["b"], lyr["bn"])
        if idx == last:
            pad = out_cols - w.shape[1]
            w = jnp.pad(w, ((0, 0), (0, pad)))
            b = jnp.pad(b, ((0, pad),))
        flat.append(w.astype(jnp.bfloat16))
        flat.append(b.reshape(1, -1).astype(jnp.float32))
    return flat


# ----------------------------------------------------------------------------
# Forward wrapper.
# ----------------------------------------------------------------------------
def parameter_prediction_net(src, ref_pts, params, *, tile_rows=None):
    """src: (B,3,J), ref_pts: (B,3,K) -> (beta (B,), alpha (B,))."""
    B, _, J = src.shape
    K = ref_pts.shape[2]
    N = J + K

    # Input prep (once, in the wrapper): 4th channel 0 for src / 1 for ref,
    # concat along points, channel-last (B, N, 4). No 4->8 channel pad.
    src_p = jnp.pad(src, ((0, 0), (0, 1), (0, 0)), constant_values=0.0)
    ref_p = jnp.pad(ref_pts, ((0, 0), (0, 1), (0, 0)), constant_values=1.0)
    x = jnp.concatenate([src_p, ref_p], axis=-1).transpose(0, 2, 1)   # (B, N, 4)

    if tile_rows is None:
        tile_rows = _pick_tile_rows(N)
    tile_rows = max(8, (int(tile_rows) // 8) * 8)           # sublane multiple
    num_tiles = -(-N // tile_rows)
    n_pad = num_tiles * tile_rows
    if n_pad > N:
        x = jnp.pad(x, ((0, 0), (0, n_pad - N), (0, 0)))    # masked in-kernel

    out_dim = params["post"][-1]["w"].shape[1]              # 2 + prod(weights_dim)
    out_cols = max(128, _round_up(out_dim, 128))
    flat = _flatten_params(params, out_cols)

    x_spec = pl.BlockSpec((1, tile_rows, 4), lambda b, t: (b, t, 0))
    # Whole-array weight blocks with constant index_map -> DMA'd once, resident.
    weight_specs = [pl.BlockSpec(p.shape, lambda b, t: (0, 0)) for p in flat]
    out_spec = pl.BlockSpec((1, 8, out_cols), lambda b, t: (b, 0, 0))

    # Cost estimate (helps XLA schedule ops around the custom call).
    pre = PRE_CHANNELS
    post = POST_CHANNELS_HEAD + [out_cols]
    flops = 2 * B * n_pad * sum(pre[i] * pre[i + 1] for i in range(len(pre) - 1))
    flops += 2 * B * 8 * sum(post[i] * post[i + 1] for i in range(len(post) - 1))
    transcendentals = 2 * B * 8 * out_cols                  # exp + log in softplus
    bytes_accessed = (int(x.size) * x.dtype.itemsize
                      + sum(int(p.size) * p.dtype.itemsize for p in flat)
                      + B * 8 * out_cols * 4)

    vmem_limit = 80 * 1024 * 1024 if tile_rows >= 2048 else 32 * 1024 * 1024

    kern = functools.partial(_param_pred_kernel, n_valid=N, tile_rows=tile_rows)
    out = pl.pallas_call(
        kern,
        out_shape=jax.ShapeDtypeStruct((B, 8, out_cols), jnp.float32),
        grid_spec=pltpu.PrefetchScalarGridSpec(
            num_scalar_prefetch=0,
            grid=(B, num_tiles),
            in_specs=[x_spec] + weight_specs,
            out_specs=out_spec,
            scratch_shapes=[pltpu.VMEM((8, PRE_CHANNELS[-1]), jnp.float32)],
        ),
        compiler_params=pltpu.CompilerParams(
            dimension_semantics=("parallel", "arbitrary"),
            vmem_limit_bytes=vmem_limit),
        cost_estimate=pl.CostEstimate(flops=int(flops),
                                      transcendentals=int(transcendentals),
                                      bytes_accessed=int(bytes_accessed)),
    )(x, *flat)

    return out[:, 0, 0], out[:, 0, 1]                        # beta, alpha


# ----------------------------------------------------------------------------
# Deterministic parameter init, matching the PyTorch module's layer shapes.
# BN stats/affine randomized so the eval-mode BN fold is actually exercised.
# ----------------------------------------------------------------------------
def init_params(key, weights_dim=(3,)):
    out_dim = 2 + int(math.prod(weights_dim))
    pre_ch = PRE_CHANNELS
    post_ch = POST_CHANNELS_HEAD + [out_dim]

    def make_stack(key, channels):
        layers = []
        n = len(channels)
        for i in range(1, n):
            cin, cout = channels[i - 1], channels[i]
            key, kw, kb, kg, kbt, km, kv = jax.random.split(key, 7)
            bound = 1.0 / math.sqrt(cin)
            w = jax.random.uniform(kw, (cin, cout), jnp.float32, -bound, bound)
            b = jax.random.uniform(kb, (cout,), jnp.float32, -bound, bound)
            bn = None
            if i < n - 1:                                    # BN+LeakyReLU except last
                bn = {
                    "gamma": jax.random.uniform(kg, (cout,), jnp.float32, 0.5, 1.5),
                    "beta":  jax.random.uniform(kbt, (cout,), jnp.float32, -0.5, 0.5),
                    "mean":  0.1 * jax.random.normal(km, (cout,), jnp.float32),
                    "var":   jax.random.uniform(kv, (cout,), jnp.float32, 0.5, 1.5),
                }
            layers.append({"w": w, "b": b, "bn": bn})
        return key, layers

    key, pre = make_stack(key, pre_ch)
    key, post = make_stack(key, post_ch)
    return {"pre": pre, "post": post}


# ----------------------------------------------------------------------------
# Pure-JAX f32 reference mirroring the PyTorch forward (eval-mode BN, unfolded).
# ----------------------------------------------------------------------------
def ref_forward(src, ref_pts, params):
    B, _, J = src.shape
    N = J + ref_pts.shape[2]
    src_p = jnp.pad(src, ((0, 0), (0, 1), (0, 0)), constant_values=0.0)
    ref_p = jnp.pad(ref_pts, ((0, 0), (0, 1), (0, 0)), constant_values=1.0)
    x = jnp.concatenate([src_p, ref_p], axis=-1).transpose(0, 2, 1).reshape(B * N, 4)

    def apply_stack(x, layers):
        for lyr in layers:
            x = x @ lyr["w"] + lyr["b"]
            if lyr["bn"] is not None:
                bn = lyr["bn"]
                x = (x - bn["mean"]) / jnp.sqrt(bn["var"] + BN_EPS) * bn["gamma"] + bn["beta"]
                x = jnp.where(x >= 0, x, LEAKY_SLOPE * x)
        return x

    feat = apply_stack(x, params["pre"]).reshape(B, N, -1)
    pooled = jnp.max(feat, axis=1)
    raw = apply_stack(pooled, params["post"])
    return jax.nn.softplus(raw[:, 0]), jax.nn.softplus(raw[:, 1])


if __name__ == "__main__":
    B, J, K = 2, 8, 8            # src (B,3,J), ref (B,3,K) -> 16 points total
    weights_dim = (3,)

    root = jax.random.PRNGKey(0)
    kp, ks, kr = jax.random.split(root, 3)
    params = init_params(kp, weights_dim)
    src = jax.random.normal(ks, (B, 3, J), jnp.float32)
    ref_pts = jax.random.normal(kr, (B, 3, K), jnp.float32)

    beta, alpha = parameter_prediction_net(src, ref_pts, params)
    jax.block_until_ready((beta, alpha))

    # bf16 MXU operands vs f32 reference -> relaxed tolerance (f32 accumulation
    # keeps the error well inside these bounds for this depth).
    beta_ref, alpha_ref = ref_forward(src, ref_pts, params)
    assert jnp.allclose(beta, beta_ref, atol=5e-2, rtol=5e-2), \
        f"beta mismatch: {beta} vs {beta_ref}"
    assert jnp.allclose(alpha, alpha_ref, atol=5e-2, rtol=5e-2), \
        f"alpha mismatch: {alpha} vs {alpha_ref}"

    print("KERNEL_OK")
</pallas_src>

<mosaic_0001>
module attributes {stable_mosaic.version = 11 : i64} {
  func.func @_param_pred_kernel(%arg0: i32, %arg1: i32, %arg2: memref<1x16x4xf32, #tpu.memory_space<vmem>>, %arg3: memref<4x64xbf16, #tpu.memory_space<vmem>>, %arg4: memref<1x64xf32, #tpu.memory_space<vmem>>, %arg5: memref<64x64xbf16, #tpu.memory_space<vmem>>, %arg6: memref<1x64xf32, #tpu.memory_space<vmem>>, %arg7: memref<64x64xbf16, #tpu.memory_space<vmem>>, %arg8: memref<1x64xf32, #tpu.memory_space<vmem>>, %arg9: memref<64x128xbf16, #tpu.memory_space<vmem>>, %arg10: memref<1x128xf32, #tpu.memory_space<vmem>>, %arg11: memref<128x1024xbf16, #tpu.memory_space<vmem>>, %arg12: memref<1x1024xf32, #tpu.memory_space<vmem>>, %arg13: memref<1024x512xbf16, #tpu.memory_space<vmem>>, %arg14: memref<1x512xf32, #tpu.memory_space<vmem>>, %arg15: memref<512x256xbf16, #tpu.memory_space<vmem>>, %arg16: memref<1x256xf32, #tpu.memory_space<vmem>>, %arg17: memref<256x128xbf16, #tpu.memory_space<vmem>>, %arg18: memref<1x128xf32, #tpu.memory_space<vmem>>, %arg19: memref<1x8x128xf32, #tpu.memory_space<vmem>>, %arg20: memref<8x1024xf32, #tpu.memory_space<vmem>>) attributes {dimension_semantics = [#tpu.dimension_semantics<parallel>, #tpu.dimension_semantics<arbitrary>], iteration_bounds = array<i64: 2, 1>, scalar_prefetch = 0 : i64, scratch_operands = 1 : i64, tpu.core_type = #tpu.core_type<tc>, window_params = [{transform_indices = @transform_0, window_bounds = array<i64: 1, 16, 4>}, {pipeline_mode = #tpu.pipeline_mode<synchronous>, transform_indices = @transform_1, window_bounds = array<i64: 4, 64>}, {pipeline_mode = #tpu.pipeline_mode<synchronous>, transform_indices = @transform_2, window_bounds = array<i64: 1, 64>}, {pipeline_mode = #tpu.pipeline_mode<synchronous>, transform_indices = @transform_3, window_bounds = array<i64: 64, 64>}, {pipeline_mode = #tpu.pipeline_mode<synchronous>, transform_indices = @transform_4, window_bounds = array<i64: 1, 64>}, {pipeline_mode = #tpu.pipeline_mode<synchronous>, transform_indices = @transform_5, window_bounds = array<i64: 64, 64>}, {pipeline_mode = #tpu.pipeline_mode<synchronous>, transform_indices = @transform_6, window_bounds = array<i64: 1, 64>}, {pipeline_mode = #tpu.pipeline_mode<synchronous>, transform_indices = @transform_7, window_bounds = array<i64: 64, 128>}, {pipeline_mode = #tpu.pipeline_mode<synchronous>, transform_indices = @transform_8, window_bounds = array<i64: 1, 128>}, {pipeline_mode = #tpu.pipeline_mode<synchronous>, transform_indices = @transform_9, window_bounds = array<i64: 128, 1024>}, {pipeline_mode = #tpu.pipeline_mode<synchronous>, transform_indices = @transform_10, window_bounds = array<i64: 1, 1024>}, {pipeline_mode = #tpu.pipeline_mode<synchronous>, transform_indices = @transform_11, window_bounds = array<i64: 1024, 512>}, {pipeline_mode = #tpu.pipeline_mode<synchronous>, transform_indices = @transform_12, window_bounds = array<i64: 1, 512>}, {pipeline_mode = #tpu.pipeline_mode<synchronous>, transform_indices = @transform_13, window_bounds = array<i64: 512, 256>}, {pipeline_mode = #tpu.pipeline_mode<synchronous>, transform_indices = @transform_14, window_bounds = array<i64: 1, 256>}, {pipeline_mode = #tpu.pipeline_mode<synchronous>, transform_indices = @transform_15, window_bounds = array<i64: 256, 128>}, {pipeline_mode = #tpu.pipeline_mode<synchronous>, transform_indices = @transform_16, window_bounds = array<i64: 1, 128>}, {transform_indices = @transform_17, window_bounds = array<i64: 1, 8, 128>}]} {
    %c0_i32 = arith.constant 0 : i32
    %0 = arith.cmpi eq, %arg1, %c0_i32 : i32
    %1 = arith.extui %0 : i1 to i32
    %c0_i32_0 = arith.constant 0 : i32
    %2 = arith.cmpi ne, %1, %c0_i32_0 : i32
    scf.if %2 {
      %cst_40 = arith.constant 0xFF800000 : f32
      %66 = vector.broadcast %cst_40 : f32 to vector<8x1024xf32>
      %c0_41 = arith.constant 0 : index
      %c0_42 = arith.constant 0 : index
      %67 = vector.load %arg20[%c0_41, %c0_42] : memref<8x1024xf32, #tpu.memory_space<vmem>>, vector<8x1024xf32>
      tpu.vector_store %arg20[%c0_41, %c0_42], %66 {strides = array<i32>} : memref<8x1024xf32, #tpu.memory_space<vmem>>, vector<8x1024xf32>,
    } else {
    }
    %c0 = arith.constant 0 : index
    %c0_1 = arith.constant 0 : index
    %c0_2 = arith.constant 0 : index
    %3 = vector.load %arg2[%c0, %c0_1, %c0_2] : memref<1x16x4xf32, #tpu.memory_space<vmem>>, vector<1x16x4xf32>
    %4 = vector.shape_cast %3 : vector<1x16x4xf32> to vector<16x4xf32>
    %5 = arith.truncf %4 : vector<16x4xf32> to vector<16x4xbf16>
    %c0_3 = arith.constant 0 : index
    %c0_4 = arith.constant 0 : index
    %6 = vector.load %arg3[%c0_3, %c0_4] : memref<4x64xbf16, #tpu.memory_space<vmem>>, vector<4x64xbf16>
    %cst = arith.constant dense<0.000000e+00> : vector<16x64xf32>
    %7 = tpu.matmul %5, %6, %cst {dimension_numbers = #tpu.dot_dimension_numbers<[1], [0], [0], [1], [0, 0, 1, 1], [], []>} : vector<16x4xbf16>, vector<4x64xbf16>, vector<16x64xf32> -> vector<16x64xf32>
    %c0_5 = arith.constant 0 : index
    %c0_6 = arith.constant 0 : index
    %8 = vector.load %arg4[%c0_5, %c0_6] : memref<1x64xf32, #tpu.memory_space<vmem>>, vector<1x64xf32>
    %9 = vector.broadcast %8 : vector<1x64xf32> to vector<16x64xf32>
    %10 = arith.addf %7, %9 : vector<16x64xf32>
    %cst_7 = arith.constant 2.000000e-01 : f32
    %11 = vector.broadcast %cst_7 : f32 to vector<16x64xf32>
    %12 = arith.mulf %11, %10 : vector<16x64xf32>
    %13 = arith.maximumf %10, %12 : vector<16x64xf32>
    %14 = arith.truncf %13 : vector<16x64xf32> to vector<16x64xbf16>
    %c0_8 = arith.constant 0 : index
    %c0_9 = arith.constant 0 : index
    %15 = vector.load %arg5[%c0_8, %c0_9] : memref<64x64xbf16, #tpu.memory_space<vmem>>, vector<64x64xbf16>
    %cst_10 = arith.constant dense<0.000000e+00> : vector<16x64xf32>
    %16 = tpu.matmul %14, %15, %cst_10 {dimension_numbers = #tpu.dot_dimension_numbers<[1], [0], [0], [1], [0, 0, 1, 1], [], []>} : vector<16x64xbf16>, vector<64x64xbf16>, vector<16x64xf32> -> vector<16x64xf32>
    %c0_11 = arith.constant 0 : index
    %c0_12 = arith.constant 0 : index
    %17 = vector.load %arg6[%c0_11, %c0_12] : memref<1x64xf32, #tpu.memory_space<vmem>>, vector<1x64xf32>
    %18 = vector.broadcast %17 : vector<1x64xf32> to vector<16x64xf32>
    %19 = arith.addf %16, %18 : vector<16x64xf32>
    %cst_13 = arith.constant 2.000000e-01 : f32
    %20 = vector.broadcast %cst_13 : f32 to vector<16x64xf32>
    %21 = arith.mulf %20, %19 : vector<16x64xf32>
    %22 = arith.maximumf %19, %21 : vector<16x64xf32>
    %23 = arith.truncf %22 : vector<16x64xf32> to vector<16x64xbf16>
    %c0_14 = arith.constant 0 : index
    %c0_15 = arith.constant 0 : index
    %24 = vector.load %arg7[%c0_14, %c0_15] : memref<64x64xbf16, #tpu.memory_space<vmem>>, vector<64x64xbf16>
    %cst_16 = arith.constant dense<0.000000e+00> : vector<16x64xf32>
    %25 = tpu.matmul %23, %24, %cst_16 {dimension_numbers = #tpu.dot_dimension_numbers<[1], [0], [0], [1], [0, 0, 1, 1], [], []>} : vector<16x64xbf16>, vector<64x64xbf16>, vector<16x64xf32> -> vector<16x64xf32>
    %c0_17 = arith.constant 0 : index
    %c0_18 = arith.constant 0 : index
    %26 = vector.load %arg8[%c0_17, %c0_18] : memref<1x64xf32, #tpu.memory_space<vmem>>, vector<1x64xf32>
    %27 = vector.broadcast %26 : vector<1x64xf32> to vector<16x64xf32>
    %28 = arith.addf %25, %27 : vector<16x64xf32>
    %cst_19 = arith.constant 2.000000e-01 : f32
    %29 = vector.broadcast %cst_19 : f32 to vector<16x64xf32>
    %30 = arith.mulf %29, %28 : vector<16x64xf32>
    %31 = arith.maximumf %28, %30 : vector<16x64xf32>
    %32 = arith.truncf %31 : vector<16x64xf32> to vector<16x64xbf16>
    %c0_20 = arith.constant 0 : index
    %c0_21 = arith.constant 0 : index
    %33 = vector.load %arg9[%c0_20, %c0_21] : memref<64x128xbf16, #tpu.memory_space<vmem>>, vector<64x128xbf16>
    %cst_22 = arith.constant dense<0.000000e+00> : vector<16x128xf32>
    %34 = tpu.matmul %32, %33, %cst_22 {dimension_numbers = #tpu.dot_dimension_numbers<[1], [0], [0], [1], [0, 0, 1, 1], [], []>} : vector<16x64xbf16>, vector<64x128xbf16>, vector<16x128xf32> -> vector<16x128xf32>
    %c0_23 = arith.constant 0 : index
    %c0_24 = arith.constant 0 : index
    %35 = vector.load %arg10[%c0_23, %c0_24] : memref<1x128xf32, #tpu.memory_space<vmem>>, vector<1x128xf32>
    %36 = vector.broadcast %35 : vector<1x128xf32> to vector<16x128xf32>
    %37 = arith.addf %34, %36 : vector<16x128xf32>
    %cst_25 = arith.constant 2.000000e-01 : f32
    %38 = vector.broadcast %cst_25 : f32 to vector<16x128xf32>
    %39 = arith.mulf %38, %37 : vector<16x128xf32>
    %40 = arith.maximumf %37, %39 : vector<16x128xf32>
    %41 = arith.truncf %40 : vector<16x128xf32> to vector<16x128xbf16>
    %c0_26 = arith.constant 0 : index
    %c0_27 = arith.constant 0 : index
    %42 = vector.load %arg11[%c0_26, %c0_27] : memref<128x1024xbf16, #tpu.memory_space<vmem>>, vector<128x1024xbf16>
    %cst_28 = arith.constant dense<0.000000e+00> : vector<16x1024xf32>
    %43 = tpu.matmul %41, %42, %cst_28 {dimension_numbers = #tpu.dot_dimension_numbers<[1], [0], [0], [1], [0, 0, 1, 1], [], []>} : vector<16x128xbf16>, vector<128x1024xbf16>, vector<16x1024xf32> -> vector<16x1024xf32>
    %c0_29 = arith.constant 0 : index
    %c0_30 = arith.constant 0 : index
    %44 = vector.load %arg12[%c0_29, %c0_30] : memref<1x1024xf32, #tpu.memory_space<vmem>>, vector<1x1024xf32>
    %45 = vector.broadcast %44 : vector<1x1024xf32> to vector<16x1024xf32>
    %46 = arith.addf %43, %45 : vector<16x1024xf32>
    %47 = tpu.iota {dimensions = array<i32: 0>} : vector<16x1xi32>
    %c16_i32 = arith.constant 16 : i32
    %48 = arith.muli %arg1, %c16_i32 : i32
    %49 = vector.broadcast %48 : i32 to vector<16x1xi32>
    %50 = arith.addi %49, %47 : vector<16x1xi32>
    %c16_i32_31 = arith.constant 16 : i32
    %51 = vector.broadcast %c16_i32_31 : i32 to vector<16x1xi32>
    %52 = arith.cmpi slt, %50, %51 : vector<16x1xi32>
    %cst_32 = arith.constant 0xFF800000 : f32
    %53 = vector.shape_cast %52 : vector<16x1xi1> to vector<16x1xi1>
    %54 = vector.broadcast %53 : vector<16x1xi1> to vector<16x1024xi1>
    %55 = vector.broadcast %cst_32 : f32 to vector<16x1024xf32>
    %56 = arith.select %54, %46, %55 : vector<16x1024xi1>, vector<16x1024xf32>
    %c0_33 = arith.constant 0 : index
    %c0_34 = arith.constant 0 : index
    %57 = vector.load %arg20[%c0_33, %c0_34] : memref<8x1024xf32, #tpu.memory_space<vmem>>, vector<8x1024xf32>
    %cst_35 = arith.constant dense<0xFF800000> : vector<1024xf32>
    %58 = vector.multi_reduction <maximumf>, %56, %cst_35 [0] : vector<16x1024xf32> to vector<1024xf32>
    %59 = vector.shape_cast %58 : vector<1024xf32> to vector<1x1024xf32>
    %60 = vector.broadcast %59 : vector<1x1024xf32> to vector<8x1024xf32>
    %61 = arith.maximumf %57, %60 : vector<8x1024xf32>
    %c0_36 = arith.constant 0 : index
    %c0_37 = arith.constant 0 : index
    %62 = vector.load %arg20[%c0_36, %c0_37] : memref<8x1024xf32, #tpu.memory_space<vmem>>, vector<8x1024xf32>
    tpu.vector_store %arg20[%c0_36, %c0_37], %61 {strides = array<i32>} : memref<8x1024xf32, #tpu.memory_space<vmem>>, vector<8x1024xf32>,
    %c0_i32_38 = arith.constant 0 : i32
    %63 = arith.cmpi eq, %arg1, %c0_i32_38 : i32
    %64 = arith.extui %63 : i1 to i32
    %c0_i32_39 = arith.constant 0 : i32
    %65 = arith.cmpi ne, %64, %c0_i32_39 : i32
    scf.if %65 {
      %c0_40 = arith.constant 0 : index
      %c0_41 = arith.constant 0 : index
      %66 = vector.load %arg20[%c0_40, %c0_41] : memref<8x1024xf32, #tpu.memory_space<vmem>>, vector<8x1024xf32>
      %67 = arith.truncf %66 : vector<8x1024xf32> to vector<8x1024xbf16>
      %c0_42 = arith.constant 0 : index
      %c0_43 = arith.constant 0 : index
      %68 = vector.load %arg13[%c0_42, %c0_43] : memref<1024x512xbf16, #tpu.memory_space<vmem>>, vector<1024x512xbf16>
      %cst_44 = arith.constant dense<0.000000e+00> : vector<8x512xf32>
      %69 = tpu.matmul %67, %68, %cst_44 {dimension_numbers = #tpu.dot_dimension_numbers<[1], [0], [0], [1], [0, 0, 1, 1], [], []>} : vector<8x1024xbf16>, vector<1024x512xbf16>, vector<8x512xf32> -> vector<8x512xf32>
      %c0_45 = arith.constant 0 : index
      %c0_46 = arith.constant 0 : index
      %70 = vector.load %arg14[%c0_45, %c0_46] : memref<1x512xf32, #tpu.memory_space<vmem>>, vector<1x512xf32>
      %71 = vector.broadcast %70 : vector<1x512xf32> to vector<8x512xf32>
      %72 = arith.addf %69, %71 : vector<8x512xf32>
      %cst_47 = arith.constant 2.000000e-01 : f32
      %73 = vector.broadcast %cst_47 : f32 to vector<8x512xf32>
      %74 = arith.mulf %73, %72 : vector<8x512xf32>
      %75 = arith.maximumf %72, %74 : vector<8x512xf32>
      %76 = arith.truncf %75 : vector<8x512xf32> to vector<8x512xbf16>
      %c0_48 = arith.constant 0 : index
      %c0_49 = arith.constant 0 : index
      %77 = vector.load %arg15[%c0_48, %c0_49] : memref<512x256xbf16, #tpu.memory_space<vmem>>, vector<512x256xbf16>
      %cst_50 = arith.constant dense<0.000000e+00> : vector<8x256xf32>
      %78 = tpu.matmul %76, %77, %cst_50 {dimension_numbers = #tpu.dot_dimension_numbers<[1], [0], [0], [1], [0, 0, 1, 1], [], []>} : vector<8x512xbf16>, vector<512x256xbf16>, vector<8x256xf32> -> vector<8x256xf32>
      %c0_51 = arith.constant 0 : index
      %c0_52 = arith.constant 0 : index
      %79 = vector.load %arg16[%c0_51, %c0_52] : memref<1x256xf32, #tpu.memory_space<vmem>>, vector<1x256xf32>
      %80 = vector.broadcast %79 : vector<1x256xf32> to vector<8x256xf32>
      %81 = arith.addf %78, %80 : vector<8x256xf32>
      %cst_53 = arith.constant 2.000000e-01 : f32
      %82 = vector.broadcast %cst_53 : f32 to vector<8x256xf32>
      %83 = arith.mulf %82, %81 : vector<8x256xf32>
      %84 = arith.maximumf %81, %83 : vector<8x256xf32>
      %85 = arith.truncf %84 : vector<8x256xf32> to vector<8x256xbf16>
      %c0_54 = arith.constant 0 : index
      %c0_55 = arith.constant 0 : index
      %86 = vector.load %arg17[%c0_54, %c0_55] : memref<256x128xbf16, #tpu.memory_space<vmem>>, vector<256x128xbf16>
      %cst_56 = arith.constant dense<0.000000e+00> : vector<8x128xf32>
      %87 = tpu.matmul %85, %86, %cst_56 {dimension_numbers = #tpu.dot_dimension_numbers<[1], [0], [0], [1], [0, 0, 1, 1], [], []>} : vector<8x256xbf16>, vector<256x128xbf16>, vector<8x128xf32> -> vector<8x128xf32>
      %c0_57 = arith.constant 0 : index
      %c0_58 = arith.constant 0 : index
      %88 = vector.load %arg18[%c0_57, %c0_58] : memref<1x128xf32, #tpu.memory_space<vmem>>, vector<1x128xf32>
      %89 = vector.broadcast %88 : vector<1x128xf32> to vector<8x128xf32>
      %90 = arith.addf %87, %89 : vector<8x128xf32>
      %cst_59 = arith.constant 0.000000e+00 : f32
      %91 = vector.broadcast %cst_59 : f32 to vector<8x128xf32>
      %92 = arith.maximumf %90, %91 : vector<8x128xf32>
      %93 = math.absf %90 : vector<8x128xf32>
      %cst_60 = arith.constant 0.000000e+00 : f32
      %94 = vector.broadcast %cst_60 : f32 to vector<8x128xf32>
      %95 = arith.subf %94, %93 : vector<8x128xf32>
      %96 = math.exp %95 : vector<8x128xf32>
      %cst_61 = arith.constant 1.000000e+00 : f32
      %97 = vector.broadcast %cst_61 : f32 to vector<8x128xf32>
      %98 = arith.addf %97, %96 : vector<8x128xf32>
      %99 = math.log %98 : vector<8x128xf32>
      %100 = arith.addf %92, %99 : vector<8x128xf32>
      %c0_62 = arith.constant 0 : index
      %c0_63 = arith.constant 0 : index
      %c0_64 = arith.constant 0 : index
      %101 = vector.load %arg19[%c0_62, %c0_63, %c0_64] : memref<1x8x128xf32, #tpu.memory_space<vmem>>, vector<1x8x128xf32>
      %102 = vector.shape_cast %101 : vector<1x8x128xf32> to vector<8x128xf32>
      %103 = vector.shape_cast %100 : vector<8x128xf32> to vector<1x8x128xf32>
      tpu.vector_store %arg19[%c0_62, %c0_63, %c0_64], %103 {strides = array<i32>} : memref<1x8x128xf32, #tpu.memory_space<vmem>>, vector<1x8x128xf32>,
    } else {
    }
    return
  }
  func.func @transform_0(%arg0: i32, %arg1: i32) -> (i32, i32, i32) {
    %c0_i32 = arith.constant 0 : i32
    %c0_i32_0 = arith.constant 0 : i32
    return %arg0, %arg1, %c0_i32 : i32, i32, i32
  }
  func.func @transform_1(%arg0: i32, %arg1: i32) -> (i32, i32) {
    %c0_i32 = arith.constant 0 : i32
    %c0_i32_0 = arith.constant 0 : i32
    %c0_i32_1 = arith.constant 0 : i32
    return %c0_i32, %c0_i32_0 : i32, i32
  }
  func.func @transform_2(%arg0: i32, %arg1: i32) -> (i32, i32) {
    %c0_i32 = arith.constant 0 : i32
    %c0_i32_0 = arith.constant 0 : i32
    %c0_i32_1 = arith.constant 0 : i32
    return %c0_i32, %c0_i32_0 : i32, i32
  }
  func.func @transform_3(%arg0: i32, %arg1: i32) -> (i32, i32) {
    %c0_i32 = arith.constant 0 : i32
    %c0_i32_0 = arith.constant 0 : i32
    %c0_i32_1 = arith.constant 0 : i32
    return %c0_i32, %c0_i32_0 : i32, i32
  }
  func.func @transform_4(%arg0: i32, %arg1: i32) -> (i32, i32) {
    %c0_i32 = arith.constant 0 : i32
    %c0_i32_0 = arith.constant 0 : i32
    %c0_i32_1 = arith.constant 0 : i32
    return %c0_i32, %c0_i32_0 : i32, i32
  }
  func.func @transform_5(%arg0: i32, %arg1: i32) -> (i32, i32) {
    %c0_i32 = arith.constant 0 : i32
    %c0_i32_0 = arith.constant 0 : i32
    %c0_i32_1 = arith.constant 0 : i32
    return %c0_i32, %c0_i32_0 : i32, i32
  }
  func.func @transform_6(%arg0: i32, %arg1: i32) -> (i32, i32) {
    %c0_i32 = arith.constant 0 : i32
    %c0_i32_0 = arith.constant 0 : i32
    %c0_i32_1 = arith.constant 0 : i32
    return %c0_i32, %c0_i32_0 : i32, i32
  }
  func.func @transform_7(%arg0: i32, %arg1: i32) -> (i32, i32) {
    %c0_i32 = arith.constant 0 : i32
    %c0_i32_0 = arith.constant 0 : i32
    %c0_i32_1 = arith.constant 0 : i32
    return %c0_i32, %c0_i32_0 : i32, i32
  }
  func.func @transform_8(%arg0: i32, %arg1: i32) -> (i32, i32) {
    %c0_i32 = arith.constant 0 : i32
    %c0_i32_0 = arith.constant 0 : i32
    %c0_i32_1 = arith.constant 0 : i32
    return %c0_i32, %c0_i32_0 : i32, i32
  }
  func.func @transform_9(%arg0: i32, %arg1: i32) -> (i32, i32) {
    %c0_i32 = arith.constant 0 : i32
    %c0_i32_0 = arith.constant 0 : i32
    %c0_i32_1 = arith.constant 0 : i32
    return %c0_i32, %c0_i32_0 : i32, i32
  }
  func.func @transform_10(%arg0: i32, %arg1: i32) -> (i32, i32) {
    %c0_i32 = arith.constant 0 : i32
    %c0_i32_0 = arith.constant 0 : i32
    %c0_i32_1 = arith.constant 0 : i32
    return %c0_i32, %c0_i32_0 : i32, i32
  }
  func.func @transform_11(%arg0: i32, %arg1: i32) -> (i32, i32) {
    %c0_i32 = arith.constant 0 : i32
    %c0_i32_0 = arith.constant 0 : i32
    %c0_i32_1 = arith.constant 0 : i32
    return %c0_i32, %c0_i32_0 : i32, i32
  }
  func.func @transform_12(%arg0: i32, %arg1: i32) -> (i32, i32) {
    %c0_i32 = arith.constant 0 : i32
    %c0_i32_0 = arith.constant 0 : i32
    %c0_i32_1 = arith.constant 0 : i32
    return %c0_i32, %c0_i32_0 : i32, i32
  }
  func.func @transform_13(%arg0: i32, %arg1: i32) -> (i32, i32) {
    %c0_i32 = arith.constant 0 : i32
    %c0_i32_0 = arith.constant 0 : i32
    %c0_i32_1 = arith.constant 0 : i32
    return %c0_i32, %c0_i32_0 : i32, i32
  }
  func.func @transform_14(%arg0: i32, %arg1: i32) -> (i32, i32) {
    %c0_i32 = arith.constant 0 : i32
    %c0_i32_0 = arith.constant 0 : i32
    %c0_i32_1 = arith.constant 0 : i32
    return %c0_i32, %c0_i32_0 : i32, i32
  }
  func.func @transform_15(%arg0: i32, %arg1: i32) -> (i32, i32) {
    %c0_i32 = arith.constant 0 : i32
    %c0_i32_0 = arith.constant 0 : i32
    %c0_i32_1 = arith.constant 0 : i32
    return %c0_i32, %c0_i32_0 : i32, i32
  }
  func.func @transform_16(%arg0: i32, %arg1: i32) -> (i32, i32) {
    %c0_i32 = arith.constant 0 : i32
    %c0_i32_0 = arith.constant 0 : i32
    %c0_i32_1 = arith.constant 0 : i32
    return %c0_i32, %c0_i32_0 : i32, i32
  }
  func.func @transform_17(%arg0: i32, %arg1: i32) -> (i32, i32, i32) {
    %c0_i32 = arith.constant 0 : i32
    %c0_i32_0 = arith.constant 0 : i32
    %c0_i32_1 = arith.constant 0 : i32
    return %arg0, %c0_i32, %c0_i32_0 : i32, i32, i32
  }
}

</mosaic_0001>

<llo_original>
// kernel: tpu_custom_call.1
$region0: #{tpu_custom_call.1}
  #allocation0 [shape = 'u32[]', space=smem, size = 0x4, offset = 0x4, fixed_abs, tag = 'smem constant byte address 0x4 - core index']
  #allocation1 [shape = 'u32[144,128]{1,0:T(1,128)}', space=vmem, size = 0x12000, scoped, tag = 'internal scratch']
  #allocation2 [shape = 'f32[8,1024]{1,0:T(8,128)}', space=vmem, size = 0x8000, scoped, tag = 'scratch operand']
  %s0 = inlined_call_operand.vmem [shape: f32[2,16,4], index: 0, kind: input, shape index: {}]
  %s1 = inlined_call_operand.hbm [shape: bf16[4,64], index: 1, kind: input, shape index: {}]
  %s2 = inlined_call_operand.vmem [shape: f32[1,64], index: 2, kind: input, shape index: {}]
  %s3 = inlined_call_operand.vmem [shape: bf16[64,64], index: 3, kind: input, shape index: {}]
  %s4 = inlined_call_operand.hbm [shape: f32[1,64], index: 4, kind: input, shape index: {}]
  %s5 = inlined_call_operand.hbm [shape: bf16[64,64], index: 5, kind: input, shape index: {}]
  %s6 = inlined_call_operand.hbm [shape: f32[1,64], index: 6, kind: input, shape index: {}]
  %s7 = inlined_call_operand.vmem [shape: bf16[64,128], index: 7, kind: input, shape index: {}]
  %s8 = inlined_call_operand.hbm [shape: f32[1,128], index: 8, kind: input, shape index: {}]
  %s9 = inlined_call_operand.hbm [shape: bf16[128,1024], index: 9, kind: input, shape index: {}]
  %s10 = inlined_call_operand.vmem [shape: f32[1,1024], index: 10, kind: input, shape index: {}]
  %s11 = inlined_call_operand.hbm [shape: bf16[1024,512], index: 11, kind: input, shape index: {}]
  %s12 = inlined_call_operand.vmem [shape: f32[1,512], index: 12, kind: input, shape index: {}]
  %s13 = inlined_call_operand.hbm [shape: bf16[512,256], index: 13, kind: input, shape index: {}]
  %s14 = inlined_call_operand.vmem [shape: f32[1,256], index: 14, kind: input, shape index: {}]
  %s15 = inlined_call_operand.hbm [shape: bf16[256,128], index: 15, kind: input, shape index: {}]
  %s16 = inlined_call_operand.vmem [shape: f32[1,128], index: 16, kind: input, shape index: {}]
  %s17 = inlined_call_operand.hbm [shape: f32[2,8,128], index: 17, kind: output, shape index: {}]
  %s18 = sld [smem:[#allocation0]]
  $region145: #{tpu_custom_call.1} parent=0
    _
  %s20 = ssub.s32 1, %s18
  %s21 = scalar_select 0, %s20, %s18
  $region1: #{tpu_custom_call.1} parent=0
    #allocation3 [shape = 'u8[1024]{0}', space=vmem, size = 0x400, scoped, tag = 'input window, operand 1, single buffered']
    #allocation4 [shape = 's32[2]{0}', space=sflag, size = 0x8, scoped, tag = 'scoped memory for tpu_custom_call.1']
    #allocation5 [shape = 's32[2]{0}', space=sflag, size = 0x8, scoped, tag = 'scoped memory for tpu_custom_call.1']
    #allocation6 [shape = 'u8[512]{0}', space=vmem, size = 0x400, scoped, tag = 'input window, operand 4, single buffered']
    #allocation7 [shape = 's32[1]{0}', space=sflag, size = 0x4, scoped, tag = 'scoped memory for tpu_custom_call.1']
    #allocation8 [shape = 'u8[16384]{0}', space=vmem, size = 0x4000, scoped, tag = 'input window, operand 5, single buffered']
    #allocation9 [shape = 'u8[512]{0}', space=vmem, size = 0x400, scoped, tag = 'input window, operand 6, single buffered']
    #allocation10 [shape = 's32[1]{0}', space=sflag, size = 0x4, scoped, tag = 'scoped memory for tpu_custom_call.1']
    #allocation11 [shape = 'u8[512]{0}', space=vmem, size = 0x400, scoped, tag = 'input window, operand 8, single buffered']
    #allocation12 [shape = 'u8[262144]{0}', space=vmem, size = 0x40000, scoped, tag = 'input window, operand 9, single buffered']
    #allocation13 [shape = 's32[1]{0}', space=sflag, size = 0x4, scoped, tag = 'scoped memory for tpu_custom_call.1']
    #allocation14 [shape = 'u8[1048576]{0}', space=vmem, size = 0x100000, scoped, tag = 'input window, operand 11, single buffered']
    #allocation15 [shape = 'u8[262144]{0}', space=vmem, size = 0x40000, scoped, tag = 'input window, operand 13, single buffered']
    #allocation16 [shape = 's32[1]{0}', space=sflag, size = 0x4, scoped, tag = 'scoped memory for tpu_custom_call.1']
    #allocation17 [shape = 'u8[65536]{0}', space=vmem, size = 0x10000, scoped, tag = 'input window, operand 15, single buffered']
    #allocation18 [shape = 'u8[8192]{0}', space=vmem, size = 0x2000, scoped, tag = 'output window, operand 0']
    %22 = vsyncpa [#allocation4], 0
    %23 = vsyncpa [#allocation7], 0
    %24 = vsyncpa [#allocation10], 0
    %25 = vsyncpa [#allocation13], 0
    %26 = vsyncpa [#allocation16], 0
    %27 = vsyncpa [#allocation5], 0
    %s28 = scalar_lea.sflag [#allocation5], 1
    %29 = vsyncpa %s28, 0
    loop: start=0, step=1, limit=4
    $region2: #{tpu_custom_call.1} parent=1 // loop_pre_header
      _
    $region3: #{tpu_custom_call.1} parent=1 // loop_header
      %s31 = sphi 0, %s35
      %p32 = scmp.ge.s32.totalorder %s31, 4
      %s38 = sphi 0, %s50
      %s39 = sphi 0, %s46
      %s40 = sphi 0, %s38
      %s41 = sphi 0, %s39
      %s42 = sphi 0, %s40
      %s43 = sphi 0, %s41
      %s55 = sphi 0, %s57
      %s58 = sphi 0, %s55
      %s59 = sphi 0, %s58
      %s75 = sphi 0, %s59
      %s79 = sphi 0, %s79
      %s81 = sphi 0, %s79
      %s82 = sphi 0, %s81
      %s96 = sphi 0, %s82
      %s100 = sphi 0, %s100
      %s102 = sphi 0, %s100
      %s103 = sphi 0, %s102
      %s117 = sphi 0, %s103
      %s121 = sphi 0, %s121
      %s123 = sphi 0, %s121
      %s124 = sphi 0, %s123
      %s138 = sphi 0, %s124
      %s142 = sphi 0, %s142
      %s144 = sphi 0, %s142
      %s145 = sphi 0, %s144
      %s159 = sphi 0, %s145
      %s163 = sphi 0, %s163
      %s165 = sphi 0, %s163
      %s166 = sphi 0, %s165
      %s180 = sphi 0, %s166
      %s184 = sphi 0, %s184
      %s186 = sphi 0, %s184
      %s187 = sphi 0, %s186
      %s201 = sphi 0, %s187
      %s205 = sphi 0, %s205
      %s207 = sphi 0, %s205
      %s208 = sphi 0, %s207
      %s222 = sphi 0, %s208
      %s226 = sphi 0, %s226
      %s228 = sphi 0, %s226
      %s229 = sphi 0, %s228
      %s243 = sphi 0, %s229
      %s247 = sphi 0, %s247
      %s249 = sphi 0, %s247
      %s250 = sphi 0, %s249
      %s264 = sphi 0, %s250
      %s268 = sphi 0, %s268
      %s270 = sphi 0, %s268
      %s271 = sphi 0, %s270
      %s285 = sphi 0, %s271
      %s289 = sphi 0, %s289
      %s291 = sphi 0, %s289
      %s292 = sphi 0, %s291
      %s306 = sphi 0, %s292
      %s310 = sphi 0, %s310
      %s312 = sphi 0, %s310
      %s313 = sphi 0, %s312
      %s327 = sphi 0, %s313
      %s331 = sphi 0, %s331
      %s333 = sphi 0, %s331
      %s334 = sphi 0, %s333
      %s348 = sphi 0, %s334
      %s352 = sphi 0, %s352
      %s354 = sphi 0, %s352
      %s355 = sphi 0, %s354
      %s369 = sphi 0, %s355
      %s373 = sphi 0, %s373
      %s375 = sphi 0, %s373
      %s376 = sphi 0, %s375
      %s390 = sphi 0, %s376
      %s394 = sphi 0, %s394
      %s396 = sphi 0, %s394
      %s397 = sphi 0, %s396
      %s411 = sphi 0, %s397
      %s417 = sphi 0, %s419
      %s420 = sphi 0, %s417
      %s421 = sphi 0, %s420
      %s437 = sphi 0, %s421
    $region4: #{tpu_custom_call.1} parent=1 // loop_header_branch
      %34 = sbr.rel (%p32) target = $region8
    $region5: #{tpu_custom_call.1} parent=1 // loop_body
      %s36 = ssub.s32 %s31, 1
      %s37 = ssub.s32 %s31, 2
      %s44 = sadd.s32 1, %s39
      %p45 = scmp.ge.s32.totalorder %s44, 1
      %s46 = scalar_select %p45, 0, %s44
      %s47 = sadd.s32 1, %s38
      %s48 = scalar_select %p45, %s47, %s38
      %p49 = scmp.ge.s32.totalorder %s48, 2
      %s50 = scalar_select %p49, 0, %s48
      %s51 = ssub.s32 %s38, %s50
      %s52 = ssub.s32 %s39, %s46
      %s53 = sor.u32 %s51, %s52
      %p54 = scmp.eq.s32.totalorder %s53, 0
      %s56 = sadd.s32 %s55, 1
      %s57 = scalar_select %p54, %s55, %s56
      %p60 = pneg %p54
      %p61 = scmp.eq.s32.totalorder %s31, 1
      %p62 = por %p60, %p61
      %p63 = scmp.ne.s32.totalorder %s55, %s58
      %p64 = scmp.eq.s32.totalorder %s31, 0
      %p65 = por %p63, %p64
      %p66 = scmp.ne.s32.totalorder %s55, %s58
      %p67 = scmp.eq.s32.totalorder %s36, 1
      %p68 = por %p66, %p67
      %p69 = scmp.ne.s32.totalorder %s58, %s59
      %p70 = scmp.eq.s32.totalorder %s36, 0
      %p71 = por %p69, %p70
      %p72 = scmp.ne.s32.totalorder %s58, %s59
      %p73 = scmp.eq.s32.totalorder %s37, 1
      %p74 = por %p72, %p73
      %p76 = scmp.ne.s32.totalorder %s59, %s75
      %p77 = scmp.eq.s32.totalorder %s37, 0
      %p78 = por %p76, %p77
      %s80 = sadd.s32 %s79, 1
      %p83 = scmp.eq.s32.totalorder %s31, 1
      %p84 = scmp.ne.s32.totalorder %s79, %s81
      %p85 = scmp.eq.s32.totalorder %s31, 0
      %p86 = por %p84, %p85
      %p87 = scmp.ne.s32.totalorder %s79, %s81
      %p88 = scmp.eq.s32.totalorder %s36, 1
      %p89 = por %p87, %p88
      %p90 = scmp.ne.s32.totalorder %s81, %s82
      %p91 = scmp.eq.s32.totalorder %s36, 0
      %p92 = por %p90, %p91
      %p93 = scmp.ne.s32.totalorder %s81, %s82
      %p94 = scmp.eq.s32.totalorder %s37, 1
      %p95 = por %p93, %p94
      %p97 = scmp.ne.s32.totalorder %s82, %s96
      %p98 = scmp.eq.s32.totalorder %s37, 0
      %p99 = por %p97, %p98
      %s101 = sadd.s32 %s100, 1
      %p104 = scmp.eq.s32.totalorder %s31, 1
      %p105 = scmp.ne.s32.totalorder %s100, %s102
      %p106 = scmp.eq.s32.totalorder %s31, 0
      %p107 = por %p105, %p106
      %p108 = scmp.ne.s32.totalorder %s100, %s102
      %p109 = scmp.eq.s32.totalorder %s36, 1
      %p110 = por %p108, %p109
      %p111 = scmp.ne.s32.totalorder %s102, %s103
      %p112 = scmp.eq.s32.totalorder %s36, 0
      %p113 = por %p111, %p112
      %p114 = scmp.ne.s32.totalorder %s102, %s103
      %p115 = scmp.eq.s32.totalorder %s37, 1
      %p116 = por %p114, %p115
      %p118 = scmp.ne.s32.totalorder %s103, %s117
      %p119 = scmp.eq.s32.totalorder %s37, 0
      %p120 = por %p118, %p119
      %s122 = sadd.s32 %s121, 1
      %p125 = scmp.eq.s32.totalorder %s31, 1
      %p126 = scmp.ne.s32.totalorder %s121, %s123
      %p127 = scmp.eq.s32.totalorder %s31, 0
      %p128 = por %p126, %p127
      %p129 = scmp.ne.s32.totalorder %s121, %s123
      %p130 = scmp.eq.s32.totalorder %s36, 1
      %p131 = por %p129, %p130
      %p132 = scmp.ne.s32.totalorder %s123, %s124
      %p133 = scmp.eq.s32.totalorder %s36, 0
      %p134 = por %p132, %p133
      %p135 = scmp.ne.s32.totalorder %s123, %s124
      %p136 = scmp.eq.s32.totalorder %s37, 1
      %p137 = por %p135, %p136
      %p139 = scmp.ne.s32.totalorder %s124, %s138
      %p140 = scmp.eq.s32.totalorder %s37, 0
      %p141 = por %p139, %p140
      %s143 = sadd.s32 %s142, 1
      %p146 = scmp.eq.s32.totalorder %s31, 1
      %p147 = scmp.ne.s32.totalorder %s142, %s144
      %p148 = scmp.eq.s32.totalorder %s31, 0
      %p149 = por %p147, %p148
      %p150 = scmp.ne.s32.totalorder %s142, %s144
      %p151 = scmp.eq.s32.totalorder %s36, 1
      %p152 = por %p150, %p151
      %p153 = scmp.ne.s32.totalorder %s144, %s145
      %p154 = scmp.eq.s32.totalorder %s36, 0
      %p155 = por %p153, %p154
      %p156 = scmp.ne.s32.totalorder %s144, %s145
      %p157 = scmp.eq.s32.totalorder %s37, 1
      %p158 = por %p156, %p157
      %p160 = scmp.ne.s32.totalorder %s145, %s159
      %p161 = scmp.eq.s32.totalorder %s37, 0
      %p162 = por %p160, %p161
      %s164 = sadd.s32 %s163, 1
      %p167 = scmp.eq.s32.totalorder %s31, 1
      %p168 = scmp.ne.s32.totalorder %s163, %s165
      %p169 = scmp.eq.s32.totalorder %s31, 0
      %p170 = por %p168, %p169
      %p171 = scmp.ne.s32.totalorder %s163, %s165
      %p172 = scmp.eq.s32.totalorder %s36, 1
      %p173 = por %p171, %p172
      %p174 = scmp.ne.s32.totalorder %s165, %s166
      %p175 = scmp.eq.s32.totalorder %s36, 0
      %p176 = por %p174, %p175
      %p177 = scmp.ne.s32.totalorder %s165, %s166
      %p178 = scmp.eq.s32.totalorder %s37, 1
      %p179 = por %p177, %p178
      %p181 = scmp.ne.s32.totalorder %s166, %s180
      %p182 = scmp.eq.s32.totalorder %s37, 0
      %p183 = por %p181, %p182
      %s185 = sadd.s32 %s184, 1
      %p188 = scmp.eq.s32.totalorder %s31, 1
      %p189 = scmp.ne.s32.totalorder %s184, %s186
      %p190 = scmp.eq.s32.totalorder %s31, 0
      %p191 = por %p189, %p190
      %p192 = scmp.ne.s32.totalorder %s184, %s186
      %p193 = scmp.eq.s32.totalorder %s36, 1
      %p194 = por %p192, %p193
      %p195 = scmp.ne.s32.totalorder %s186, %s187
      %p196 = scmp.eq.s32.totalorder %s36, 0
      %p197 = por %p195, %p196
      %p198 = scmp.ne.s32.totalorder %s186, %s187
      %p199 = scmp.eq.s32.totalorder %s37, 1
      %p200 = por %p198, %p199
      %p202 = scmp.ne.s32.totalorder %s187, %s201
      %p203 = scmp.eq.s32.totalorder %s37, 0
      %p204 = por %p202, %p203
      %s206 = sadd.s32 %s205, 1
      %p209 = scmp.eq.s32.totalorder %s31, 1
      %p210 = scmp.ne.s32.totalorder %s205, %s207
      %p211 = scmp.eq.s32.totalorder %s31, 0
      %p212 = por %p210, %p211
      %p213 = scmp.ne.s32.totalorder %s205, %s207
      %p214 = scmp.eq.s32.totalorder %s36, 1
      %p215 = por %p213, %p214
      %p216 = scmp.ne.s32.totalorder %s207, %s208
      %p217 = scmp.eq.s32.totalorder %s36, 0
      %p218 = por %p216, %p217
      %p219 = scmp.ne.s32.totalorder %s207, %s208
      %p220 = scmp.eq.s32.totalorder %s37, 1
      %p221 = por %p219, %p220
      %p223 = scmp.ne.s32.totalorder %s208, %s222
      %p224 = scmp.eq.s32.totalorder %s37, 0
      %p225 = por %p223, %p224
      %s227 = sadd.s32 %s226, 1
      %p230 = scmp.eq.s32.totalorder %s31, 1
      %p231 = scmp.ne.s32.totalorder %s226, %s228
      %p232 = scmp.eq.s32.totalorder %s31, 0
      %p233 = por %p231, %p232
      %p234 = scmp.ne.s32.totalorder %s226, %s228
      %p235 = scmp.eq.s32.totalorder %s36, 1
      %p236 = por %p234, %p235
      %p237 = scmp.ne.s32.totalorder %s228, %s229
      %p238 = scmp.eq.s32.totalorder %s36, 0
      %p239 = por %p237, %p238
      %p240 = scmp.ne.s32.totalorder %s228, %s229
      %p241 = scmp.eq.s32.totalorder %s37, 1
      %p242 = por %p240, %p241
      %p244 = scmp.ne.s32.totalorder %s229, %s243
      %p245 = scmp.eq.s32.totalorder %s37, 0
      %p246 = por %p244, %p245
      %s248 = sadd.s32 %s247, 1
      %p251 = scmp.eq.s32.totalorder %s31, 1
      %p252 = scmp.ne.s32.totalorder %s247, %s249
      %p253 = scmp.eq.s32.totalorder %s31, 0
      %p254 = por %p252, %p253
      %p255 = scmp.ne.s32.totalorder %s247, %s249
      %p256 = scmp.eq.s32.totalorder %s36, 1
      %p257 = por %p255, %p256
      %p258 = scmp.ne.s32.totalorder %s249, %s250
      %p259 = scmp.eq.s32.totalorder %s36, 0
      %p260 = por %p258, %p259
      %p261 = scmp.ne.s32.totalorder %s249, %s250
      %p262 = scmp.eq.s32.totalorder %s37, 1
      %p263 = por %p261, %p262
      %p265 = scmp.ne.s32.totalorder %s250, %s264
      %p266 = scmp.eq.s32.totalorder %s37, 0
      %p267 = por %p265, %p266
      %s269 = sadd.s32 %s268, 1
      %p272 = scmp.eq.s32.totalorder %s31, 1
      %p273 = scmp.ne.s32.totalorder %s268, %s270
      %p274 = scmp.eq.s32.totalorder %s31, 0
      %p275 = por %p273, %p274
      %p276 = scmp.ne.s32.totalorder %s268, %s270
      %p277 = scmp.eq.s32.totalorder %s36, 1
      %p278 = por %p276, %p277
      %p279 = scmp.ne.s32.totalorder %s270, %s271
      %p280 = scmp.eq.s32.totalorder %s36, 0
      %p281 = por %p279, %p280
      %p282 = scmp.ne.s32.totalorder %s270, %s271
      %p283 = scmp.eq.s32.totalorder %s37, 1
      %p284 = por %p282, %p283
      %p286 = scmp.ne.s32.totalorder %s271, %s285
      %p287 = scmp.eq.s32.totalorder %s37, 0
      %p288 = por %p286, %p287
      %s290 = sadd.s32 %s289, 1
      %p293 = scmp.eq.s32.totalorder %s31, 1
      %p294 = scmp.ne.s32.totalorder %s289, %s291
      %p295 = scmp.eq.s32.totalorder %s31, 0
      %p296 = por %p294, %p295
      %p297 = scmp.ne.s32.totalorder %s289, %s291
      %p298 = scmp.eq.s32.totalorder %s36, 1
      %p299 = por %p297, %p298
      %p300 = scmp.ne.s32.totalorder %s291, %s292
      %p301 = scmp.eq.s32.totalorder %s36, 0
      %p302 = por %p300, %p301
      %p303 = scmp.ne.s32.totalorder %s291, %s292
      %p304 = scmp.eq.s32.totalorder %s37, 1
      %p305 = por %p303, %p304
      %p307 = scmp.ne.s32.totalorder %s292, %s306
      %p308 = scmp.eq.s32.totalorder %s37, 0
      %p309 = por %p307, %p308
      %s311 = sadd.s32 %s310, 1
      %p314 = scmp.eq.s32.totalorder %s31, 1
      %p315 = scmp.ne.s32.totalorder %s310, %s312
      %p316 = scmp.eq.s32.totalorder %s31, 0
      %p317 = por %p315, %p316
      %p318 = scmp.ne.s32.totalorder %s310, %s312
      %p319 = scmp.eq.s32.totalorder %s36, 1
      %p320 = por %p318, %p319
      %p321 = scmp.ne.s32.totalorder %s312, %s313
      %p322 = scmp.eq.s32.totalorder %s36, 0
      %p323 = por %p321, %p322
      %p324 = scmp.ne.s32.totalorder %s312, %s313
      %p325 = scmp.eq.s32.totalorder %s37, 1
      %p326 = por %p324, %p325
      %p328 = scmp.ne.s32.totalorder %s313, %s327
      %p329 = scmp.eq.s32.totalorder %s37, 0
      %p330 = por %p328, %p329
      %s332 = sadd.s32 %s331, 1
      %p335 = scmp.eq.s32.totalorder %s31, 1
      %p336 = scmp.ne.s32.totalorder %s331, %s333
      %p337 = scmp.eq.s32.totalorder %s31, 0
      %p338 = por %p336, %p337
      %p339 = scmp.ne.s32.totalorder %s331, %s333
      %p340 = scmp.eq.s32.totalorder %s36, 1
      %p341 = por %p339, %p340
      %p342 = scmp.ne.s32.totalorder %s333, %s334
      %p343 = scmp.eq.s32.totalorder %s36, 0
      %p344 = por %p342, %p343
      %p345 = scmp.ne.s32.totalorder %s333, %s334
      %p346 = scmp.eq.s32.totalorder %s37, 1
      %p347 = por %p345, %p346
      %p349 = scmp.ne.s32.totalorder %s334, %s348
      %p350 = scmp.eq.s32.totalorder %s37, 0
      %p351 = por %p349, %p350
      %s353 = sadd.s32 %s352, 1
      %p356 = scmp.eq.s32.totalorder %s31, 1
      %p357 = scmp.ne.s32.totalorder %s352, %s354
      %p358 = scmp.eq.s32.totalorder %s31, 0
      %p359 = por %p357, %p358
      %p360 = scmp.ne.s32.totalorder %s352, %s354
      %p361 = scmp.eq.s32.totalorder %s36, 1
      %p362 = por %p360, %p361
      %p363 = scmp.ne.s32.totalorder %s354, %s355
      %p364 = scmp.eq.s32.totalorder %s36, 0
      %p365 = por %p363, %p364
      %p366 = scmp.ne.s32.totalorder %s354, %s355
      %p367 = scmp.eq.s32.totalorder %s37, 1
      %p368 = por %p366, %p367
      %p370 = scmp.ne.s32.totalorder %s355, %s369
      %p371 = scmp.eq.s32.totalorder %s37, 0
      %p372 = por %p370, %p371
      %s374 = sadd.s32 %s373, 1
      %p377 = scmp.eq.s32.totalorder %s31, 1
      %p378 = scmp.ne.s32.totalorder %s373, %s375
      %p379 = scmp.eq.s32.totalorder %s31, 0
      %p380 = por %p378, %p379
      %p381 = scmp.ne.s32.totalorder %s373, %s375
      %p382 = scmp.eq.s32.totalorder %s36, 1
      %p383 = por %p381, %p382
      %p384 = scmp.ne.s32.totalorder %s375, %s376
      %p385 = scmp.eq.s32.totalorder %s36, 0
      %p386 = por %p384, %p385
      %p387 = scmp.ne.s32.totalorder %s375, %s376
      %p388 = scmp.eq.s32.totalorder %s37, 1
      %p389 = por %p387, %p388
      %p391 = scmp.ne.s32.totalorder %s376, %s390
      %p392 = scmp.eq.s32.totalorder %s37, 0
      %p393 = por %p391, %p392
      %s395 = sadd.s32 %s394, 1
      %p398 = scmp.eq.s32.totalorder %s31, 1
      %p399 = scmp.ne.s32.totalorder %s394, %s396
      %p400 = scmp.eq.s32.totalorder %s31, 0
      %p401 = por %p399, %p400
      %p402 = scmp.ne.s32.totalorder %s394, %s396
      %p403 = scmp.eq.s32.totalorder %s36, 1
      %p404 = por %p402, %p403
      %p405 = scmp.ne.s32.totalorder %s396, %s397
      %p406 = scmp.eq.s32.totalorder %s36, 0
      %p407 = por %p405, %p406
      %p408 = scmp.ne.s32.totalorder %s396, %s397
      %p409 = scmp.eq.s32.totalorder %s37, 1
      %p410 = por %p408, %p409
      %p412 = scmp.ne.s32.totalorder %s397, %s411
      %p413 = scmp.eq.s32.totalorder %s37, 0
      %p414 = por %p412, %p413
      %s415 = ssub.s32 %s38, %s50
      %p416 = scmp.eq.s32.totalorder %s415, 0
      %s418 = sadd.s32 %s417, 1
      %s419 = scalar_select %p416, %s417, %s418
      %p422 = pneg %p416
      %p423 = scmp.eq.s32.totalorder %s31, 1
      %p424 = por %p422, %p423
      %p425 = scmp.ne.s32.totalorder %s417, %s420
      %p426 = scmp.eq.s32.totalorder %s31, 0
      %p427 = por %p425, %p426
      %p428 = scmp.ne.s32.totalorder %s417, %s420
      %p429 = scmp.eq.s32.totalorder %s36, 1
      %p430 = por %p428, %p429
      %p431 = scmp.ne.s32.totalorder %s420, %s421
      %p432 = scmp.eq.s32.totalorder %s36, 0
      %p433 = por %p431, %p432
      %p434 = scmp.ne.s32.totalorder %s420, %s421
      %p435 = scmp.eq.s32.totalorder %s37, 1
      %p436 = por %p434, %p435
      %p438 = scmp.ne.s32.totalorder %s421, %s437
      %p439 = scmp.eq.s32.totalorder %s37, 0
      %p440 = por %p438, %p439
      %p441 = scmp.le.s32.totalorder 1, %s31
      %p442 = scmp.lt.s32.totalorder %s31, 3
      %p443 = pnand %p441, %p442
      %p444 = pneg %p443
      // Predicated region
      $region9: #{tpu_custom_call.1} parent=5 // pred_check
        _
      $region10: #{tpu_custom_call.1} parent=5 // pred_check_branch
        %446 = sbr.rel (%p443) target = $region12
      $region11: #{tpu_custom_call.1} parent=5 // pred_region
        %s447 = ssub.s32 %s31, 1
        // Predicated region
        $region13: #{tpu_custom_call.1} parent=11 // pred_check
          %p448 = pneg %p92
        $region14: #{tpu_custom_call.1} parent=11 // pred_check_branch
          %450 = sbr.rel (%p448) target = $region16
        $region15: #{tpu_custom_call.1} parent=11 // pred_region
          %s452 = ssub.s32 32, 32
          %453 = vsyncadd [#allocation4], %s452
          %s455 = sshll.u32 [#allocation3], 4
          %s456 = int_to_ptr.vmem [resolvable:$true] %s455
          %458 = dma.hbm_to_vmem [thread:$0]  %s1, 32, %s456, [#allocation4]
        $region16: #{tpu_custom_call.1} parent=11 // pred_fallthru
          _
        // Predicated region
        $region17: #{tpu_custom_call.1} parent=11 // pred_check
          %p459 = pneg %p113
        $region18: #{tpu_custom_call.1} parent=11 // pred_check_branch
          %461 = sbr.rel (%p459) target = $region20
        $region19: #{tpu_custom_call.1} parent=11 // pred_region
          _
        $region20: #{tpu_custom_call.1} parent=11 // pred_fallthru
          _
        // Predicated region
        $region21: #{tpu_custom_call.1} parent=11 // pred_check
          %p462 = pneg %p134
        $region22: #{tpu_custom_call.1} parent=11 // pred_check_branch
          %464 = sbr.rel (%p462) target = $region24
        $region23: #{tpu_custom_call.1} parent=11 // pred_region
          _
        $region24: #{tpu_custom_call.1} parent=11 // pred_fallthru
          _
        // Predicated region
        $region25: #{tpu_custom_call.1} parent=11 // pred_check
          %p465 = pneg %p155
        $region26: #{tpu_custom_call.1} parent=11 // pred_check_branch
          %467 = sbr.rel (%p465) target = $region28
        $region27: #{tpu_custom_call.1} parent=11 // pred_region
          %s469 = ssub.s32 16, 16
          %470 = vsyncadd [#allocation7], %s469
          %s472 = sshll.u32 [#allocation6], 4
          %s473 = int_to_ptr.vmem [resolvable:$true] %s472
          %475 = dma.hbm_to_vmem [thread:$0]  %s4, 16, %s473, [#allocation7]
        $region28: #{tpu_custom_call.1} parent=11 // pred_fallthru
          _
        // Predicated region
        $region29: #{tpu_custom_call.1} parent=11 // pred_check
          %p476 = pneg %p176
        $region30: #{tpu_custom_call.1} parent=11 // pred_check_branch
          %478 = sbr.rel (%p476) target = $region32
        $region31: #{tpu_custom_call.1} parent=11 // pred_region
          %s480 = ssub.s32 512, 512
          %481 = vsyncadd [#allocation7], %s480
          %s482 = sshll.u32 [#allocation8], 4
          %s483 = int_to_ptr.vmem [resolvable:$true] %s482
          %488 = dma.hbm_to_vmem [thread:$0]  %s5, 512, %s483, [#allocation7], 64, 64, 4
        $region32: #{tpu_custom_call.1} parent=11 // pred_fallthru
          _
        // Predicated region
        $region33: #{tpu_custom_call.1} parent=11 // pred_check
          %p489 = pneg %p197
        $region34: #{tpu_custom_call.1} parent=11 // pred_check_branch
          %491 = sbr.rel (%p489) target = $region36
        $region35: #{tpu_custom_call.1} parent=11 // pred_region
          %s493 = ssub.s32 16, 16
          %494 = vsyncadd [#allocation10], %s493
          %s496 = sshll.u32 [#allocation9], 4
          %s497 = int_to_ptr.vmem [resolvable:$true] %s496
          %499 = dma.hbm_to_vmem [thread:$0]  %s6, 16, %s497, [#allocation10]
        $region36: #{tpu_custom_call.1} parent=11 // pred_fallthru
          _
        // Predicated region
        $region37: #{tpu_custom_call.1} parent=11 // pred_check
          %p500 = pneg %p218
        $region38: #{tpu_custom_call.1} parent=11 // pred_check_branch
          %502 = sbr.rel (%p500) target = $region40
        $region39: #{tpu_custom_call.1} parent=11 // pred_region
          _
        $region40: #{tpu_custom_call.1} parent=11 // pred_fallthru
          _
        // Predicated region
        $region41: #{tpu_custom_call.1} parent=11 // pred_check
          %p503 = pneg %p239
        $region42: #{tpu_custom_call.1} parent=11 // pred_check_branch
          %505 = sbr.rel (%p503) target = $region44
        $region43: #{tpu_custom_call.1} parent=11 // pred_region
          %s507 = ssub.s32 16, 16
          %508 = vsyncadd [#allocation10], %s507
          %s510 = sshll.u32 [#allocation11], 4
          %s511 = int_to_ptr.vmem [resolvable:$true] %s510
          %513 = dma.hbm_to_vmem [thread:$0]  %s8, 16, %s511, [#allocation10]
        $region44: #{tpu_custom_call.1} parent=11 // pred_fallthru
          _
        // Predicated region
        $region45: #{tpu_custom_call.1} parent=11 // pred_check
          %p514 = pneg %p260
        $region46: #{tpu_custom_call.1} parent=11 // pred_check_branch
          %516 = sbr.rel (%p514) target = $region48
        $region47: #{tpu_custom_call.1} parent=11 // pred_region
          %s518 = ssub.s32 8192, 8192
          %519 = vsyncadd [#allocation13], %s518
          %s520 = sshll.u32 [#allocation12], 4
          %s521 = int_to_ptr.vmem [resolvable:$true] %s520
          %526 = dma.hbm_to_vmem [thread:$0]  %s9, 8192, %s521, [#allocation13], 512, 512, 32
        $region48: #{tpu_custom_call.1} parent=11 // pred_fallthru
          _
        // Predicated region
        $region49: #{tpu_custom_call.1} parent=11 // pred_check
          %p527 = pneg %p281
        $region50: #{tpu_custom_call.1} parent=11 // pred_check_branch
          %529 = sbr.rel (%p527) target = $region52
        $region51: #{tpu_custom_call.1} parent=11 // pred_region
          _
        $region52: #{tpu_custom_call.1} parent=11 // pred_fallthru
          _
        // Predicated region
        $region53: #{tpu_custom_call.1} parent=11 // pred_check
          %p530 = pneg %p302
        $region54: #{tpu_custom_call.1} parent=11 // pred_check_branch
          %532 = sbr.rel (%p530) target = $region56
        $region55: #{tpu_custom_call.1} parent=11 // pred_region
          %s534 = ssub.s32 32768, 32768
          %535 = vsyncadd [#allocation13], %s534
          %s536 = sshll.u32 [#allocation14], 4
          %s537 = int_to_ptr.vmem [resolvable:$true] %s536
          %542 = dma.hbm_to_vmem [thread:$0]  %s11, 32768, %s537, [#allocation13], 256, 256, 16
        $region56: #{tpu_custom_call.1} parent=11 // pred_fallthru
          _
        // Predicated region
        $region57: #{tpu_custom_call.1} parent=11 // pred_check
          %p543 = pneg %p323
        $region58: #{tpu_custom_call.1} parent=11 // pred_check_branch
          %545 = sbr.rel (%p543) target = $region60
        $region59: #{tpu_custom_call.1} parent=11 // pred_region
          _
        $region60: #{tpu_custom_call.1} parent=11 // pred_fallthru
          _
        // Predicated region
        $region61: #{tpu_custom_call.1} parent=11 // pred_check
          %p546 = pneg %p344
        $region62: #{tpu_custom_call.1} parent=11 // pred_check_branch
          %548 = sbr.rel (%p546) target = $region64
        $region63: #{tpu_custom_call.1} parent=11 // pred_region
          %s550 = ssub.s32 8192, 8192
          %551 = vsyncadd [#allocation16], %s550
          %s552 = sshll.u32 [#allocation15], 4
          %s553 = int_to_ptr.vmem [resolvable:$true] %s552
          %558 = dma.hbm_to_vmem [thread:$0]  %s13, 8192, %s553, [#allocation16], 128, 128, 8
        $region64: #{tpu_custom_call.1} parent=11 // pred_fallthru
          _
        // Predicated region
        $region65: #{tpu_custom_call.1} parent=11 // pred_check
          %p559 = pneg %p365
        $region66: #{tpu_custom_call.1} parent=11 // pred_check_branch
          %561 = sbr.rel (%p559) target = $region68
        $region67: #{tpu_custom_call.1} parent=11 // pred_region
          _
        $region68: #{tpu_custom_call.1} parent=11 // pred_fallthru
          _
        // Predicated region
        $region69: #{tpu_custom_call.1} parent=11 // pred_check
          %p562 = pneg %p386
        $region70: #{tpu_custom_call.1} parent=11 // pred_check_branch
          %564 = sbr.rel (%p562) target = $region72
        $region71: #{tpu_custom_call.1} parent=11 // pred_region
          %s566 = ssub.s32 2048, 2048
          %567 = vsyncadd [#allocation16], %s566
          %s568 = sshll.u32 [#allocation17], 4
          %s569 = int_to_ptr.vmem [resolvable:$true] %s568
          %574 = dma.hbm_to_vmem [thread:$0]  %s15, 2048, %s569, [#allocation16], 64, 64, 4
        $region72: #{tpu_custom_call.1} parent=11 // pred_fallthru
          _
        // Predicated region
        $region73: #{tpu_custom_call.1} parent=11 // pred_check
          %p575 = pneg %p407
        $region74: #{tpu_custom_call.1} parent=11 // pred_check_branch
          %577 = sbr.rel (%p575) target = $region76
        $region75: #{tpu_custom_call.1} parent=11 // pred_region
          _
        $region76: #{tpu_custom_call.1} parent=11 // pred_fallthru
          _
      $region12: #{tpu_custom_call.1} parent=5 // pred_fallthru
        _
      %p578 = scmp.lt.s32.totalorder %s31, 2
      // Predicated region
      $region77: #{tpu_custom_call.1} parent=5 // pred_check
        %p579 = pneg %p578
      $region78: #{tpu_custom_call.1} parent=5 // pred_check_branch
        %581 = sbr.rel (%p579) target = $region80
      $region79: #{tpu_custom_call.1} parent=5 // pred_region
        // Predicated region
        $region81: #{tpu_custom_call.1} parent=79 // pred_check
          %p582 = pneg %p65
        $region82: #{tpu_custom_call.1} parent=79 // pred_check_branch
          %584 = sbr.rel (%p582) target = $region84
        $region83: #{tpu_custom_call.1} parent=79 // pred_region
          %s585 = smul.u32 2, %s39
          %p586 = scmp.lt.s32.totalorder %s38, 1
          %s587 = scalar_select %p586, %s38, 1
          %p588 = scmp.lt.s32.totalorder %s585, 1
          %s589 = scalar_select %p588, %s585, 1
          %s590 = smul.addr %s587, 2
          %s591 = sadd.s32 %s589, %s590
          %s592 = smul.addr %s591, 8
          %s593 = scalar_lea.vmem %s0, %s592
          %s594 = smul.u32 2, %s39
        $region84: #{tpu_custom_call.1} parent=79 // pred_fallthru
          _
      $region80: #{tpu_custom_call.1} parent=5 // pred_fallthru
        _
      %p595 = scmp.le.s32.totalorder 1, %s31
      %p596 = scmp.lt.s32.totalorder %s31, 3
      %p597 = pnand %p595, %p596
      %p598 = pneg %p597
      // Predicated region
      $region85: #{tpu_custom_call.1} parent=5 // pred_check
        _
      $region86: #{tpu_custom_call.1} parent=5 // pred_check_branch
        %600 = sbr.rel (%p597) target = $region88
      $region87: #{tpu_custom_call.1} parent=5 // pred_region
        %s601 = ssub.s32 %s31, 1
        // Predicated region
        $region89: #{tpu_custom_call.1} parent=87 // pred_check
          %p602 = pneg %p92
        $region90: #{tpu_custom_call.1} parent=87 // pred_check_branch
          %604 = sbr.rel (%p602) target = $region92
        $region91: #{tpu_custom_call.1} parent=87 // pred_region
          %605 = dma.done [#allocation4], 32
        $region92: #{tpu_custom_call.1} parent=87 // pred_fallthru
          _
        // Predicated region
        $region93: #{tpu_custom_call.1} parent=87 // pred_check
          %p606 = pneg %p155
        $region94: #{tpu_custom_call.1} parent=87 // pred_check_branch
          %608 = sbr.rel (%p606) target = $region96
        $region95: #{tpu_custom_call.1} parent=87 // pred_region
          %609 = dma.done [#allocation7], 16
        $region96: #{tpu_custom_call.1} parent=87 // pred_fallthru
          _
        // Predicated region
        $region97: #{tpu_custom_call.1} parent=87 // pred_check
          %p610 = pneg %p176
        $region98: #{tpu_custom_call.1} parent=87 // pred_check_branch
          %612 = sbr.rel (%p610) target = $region100
        $region99: #{tpu_custom_call.1} parent=87 // pred_region
          %613 = dma.done [#allocation7], 512
        $region100: #{tpu_custom_call.1} parent=87 // pred_fallthru
          _
        // Predicated region
        $region101: #{tpu_custom_call.1} parent=87 // pred_check
          %p614 = pneg %p197
        $region102: #{tpu_custom_call.1} parent=87 // pred_check_branch
          %616 = sbr.rel (%p614) target = $region104
        $region103: #{tpu_custom_call.1} parent=87 // pred_region
          %617 = dma.done [#allocation10], 16
        $region104: #{tpu_custom_call.1} parent=87 // pred_fallthru
          _
        // Predicated region
        $region105: #{tpu_custom_call.1} parent=87 // pred_check
          %p618 = pneg %p239
        $region106: #{tpu_custom_call.1} parent=87 // pred_check_branch
          %620 = sbr.rel (%p618) target = $region108
        $region107: #{tpu_custom_call.1} parent=87 // pred_region
          %621 = dma.done [#allocation10], 16
        $region108: #{tpu_custom_call.1} parent=87 // pred_fallthru
          _
        // Predicated region
        $region109: #{tpu_custom_call.1} parent=87 // pred_check
          %p622 = pneg %p260
        $region110: #{tpu_custom_call.1} parent=87 // pred_check_branch
          %624 = sbr.rel (%p622) target = $region112
        $region111: #{tpu_custom_call.1} parent=87 // pred_region
          %625 = dma.done [#allocation13], 8192
        $region112: #{tpu_custom_call.1} parent=87 // pred_fallthru
          _
        // Predicated region
        $region113: #{tpu_custom_call.1} parent=87 // pred_check
          %p626 = pneg %p302
        $region114: #{tpu_custom_call.1} parent=87 // pred_check_branch
          %628 = sbr.rel (%p626) target = $region116
        $region115: #{tpu_custom_call.1} parent=87 // pred_region
          %629 = dma.done [#allocation13], 32768
        $region116: #{tpu_custom_call.1} parent=87 // pred_fallthru
          _
        // Predicated region
        $region117: #{tpu_custom_call.1} parent=87 // pred_check
          %p630 = pneg %p344
        $region118: #{tpu_custom_call.1} parent=87 // pred_check_branch
          %632 = sbr.rel (%p630) target = $region120
        $region119: #{tpu_custom_call.1} parent=87 // pred_region
          %633 = dma.done [#allocation16], 8192
        $region120: #{tpu_custom_call.1} parent=87 // pred_fallthru
          _
        // Predicated region
        $region121: #{tpu_custom_call.1} parent=87 // pred_check
          %p634 = pneg %p386
        $region122: #{tpu_custom_call.1} parent=87 // pred_check_branch
          %636 = sbr.rel (%p634) target = $region124
        $region123: #{tpu_custom_call.1} parent=87 // pred_region
          %637 = dma.done [#allocation16], 2048
        $region124: #{tpu_custom_call.1} parent=87 // pred_fallthru
          _
        %s638 = smul.u32 2, %s41
        %p639 = scmp.lt.s32.totalorder %s40, 1
        %s640 = scalar_select %p639, %s40, 1
        %p641 = scmp.lt.s32.totalorder %s638, 1
        %s642 = scalar_select %p641, %s638, 1
        %s643 = smul.addr %s640, 2
        %s644 = sadd.s32 %s642, %s643
        %s645 = smul.addr %s644, 8
        %s646 = scalar_lea.vmem %s0, %s645
        %p647 = pneg %p71
        %p648 = pneg %p68
        %p649 = pneg %p92
        %p650 = pneg %p89
        %p651 = pneg %p113
        %p652 = pneg %p110
        %p653 = pneg %p134
        %p654 = pneg %p131
        %p655 = pneg %p155
        %p656 = pneg %p152
        %p657 = pneg %p176
        %p658 = pneg %p173
        %p659 = pneg %p197
        %p660 = pneg %p194
        %p661 = pneg %p218
        %p662 = pneg %p215
        %p663 = pneg %p239
        %p664 = pneg %p236
        %p665 = pneg %p260
        %p666 = pneg %p257
        %p667 = pneg %p281
        %p668 = pneg %p278
        %p669 = pneg %p302
        %p670 = pneg %p299
        %p671 = pneg %p323
        %p672 = pneg %p320
        %p673 = pneg %p344
        %p674 = pneg %p341
        %p675 = pneg %p365
        %p676 = pneg %p362
        %p677 = pneg %p386
        %p678 = pneg %p383
        %p679 = pneg %p407
        %p680 = pneg %p404
        %p681 = pneg %p433
        %p682 = pneg %p430
        %s683 = sand.u32 %s420, 1
        %s684 = scalar_lea.sflag [#allocation5], %s683
        %s685 = sand.u32 %s420, 1
        %s686 = smul.addr %s685, 8
        %s687 = scalar_lea.vmem [#allocation18], %s686
        %s688 = smul.u32 2, %s41
        %p689 = scmp.lt.s32.totalorder %s40, 1
        %s690 = scalar_select %p689, %s40, 1
        %p691 = scmp.lt.s32.totalorder %s688, 1
        %s692 = scalar_select %p691, %s688, 1
        %s693 = smul.addr %s690, 2
        %s694 = sadd.s32 %s692, %s693
        %s695 = smul.addr %s694, 8
        %s696 = scalar_lea.vmem %s0, %s695
        %s697 = smul.u32 2, %s41
        %p699 = scmp.eq.s32.totalorder %s41, 0
        // Predicated region
        $region125: #{tpu_custom_call.1} parent=87 // pred_check
          %p700 = pneg %p699
        $region126: #{tpu_custom_call.1} parent=87 // pred_check_branch
          %702 = sbr.rel (%p700) target = $region128
        $region127: #{tpu_custom_call.1} parent=87 // pred_region
          %703 = vst [vmem:[#allocation2] sm:$0xff] -inf
          %704 = vst [vmem:[#allocation2 + $0x8] sm:$0xff] -inf
          %705 = vst [vmem:[#allocation2 + $0x10] sm:$0xff] -inf
          %706 = vst [vmem:[#allocation2 + $0x18] sm:$0xff] -inf
          %707 = vst [vmem:[#allocation2 + $0x20] sm:$0xff] -inf
          %708 = vst [vmem:[#allocation2 + $0x28] sm:$0xff] -inf
          %709 = vst [vmem:[#allocation2 + $0x30] sm:$0xff] -inf
          %710 = vst [vmem:[#allocation2 + $0x38] sm:$0xff] -inf
        $region128: #{tpu_custom_call.1} parent=87 // pred_fallthru
          _
        %v711 = vld [vmem:[%s696] sm:$0xff]
        %v712 = vld [vmem:[%s696 + $0x8] sm:$0xff]
        %v713 = vpack.c.bf16 %v712, %v711
        %v714 = vld [vmem:[#allocation3] sm:$0x3]
        %v715 = vld [vmem:[%s2] sm:$0x1]
        %v717 = vlaneseq
        %v718 = vshrl.u32 %v717, 7
        %v719 = vsub.s32 0, %v718
        %v720 = vrot.slane %v715, %v719
        %vm722 = vcmask 31744
        %v724 = vsel %vm722, %v713, 0
        %vm726 = vcmask 1041408
        %v728 = vsel %vm726, %v714, 0
        %730 = vmatprep.subr.bf16.mxu0 0
        %731 = vmatpush1.bf16.msra.mxu0 %v728
        %732 = vmatprep.subr.bf16.mxu0 0
        %733 = vmatpush1.bf16.msra.mxu0 0
        %734 = vmatprep.subr.bf16.mxu0 0
        %735 = vmatpush1.bf16.msra.mxu0 0
        %736 = vmatprep.subr.bf16.mxu0 0
        %737 = vmatpush1.bf16.msra.mxu0 0
        %738 = vmatprep.subr.bf16.mxu0 0
        %739 = vmatpush1.bf16.msra.mxu0 0
        %740 = vmatprep.subr.bf16.mxu0 0
        %741 = vmatpush1.bf16.msra.mxu0 0
        %742 = vmatprep.subr.bf16.mxu0 0
        %743 = vmatpush1.bf16.msra.mxu0 0
        %744 = vmatprep.subr.bf16.mxu0 0
        %745 = vmatpush1.bf16.msra.mxu0 0
        %746 = vmatprep.subr.bf16.mxu0 0
        %747 = vmatpush1.bf16.msra.mxu0 0
        %748 = vmatprep.subr.bf16.mxu0 0
        %749 = vmatpush1.bf16.msra.mxu0 0
        %750 = vmatprep.subr.bf16.mxu0 0
        %751 = vmatpush1.bf16.msra.mxu0 0
        %752 = vmatprep.subr.bf16.mxu0 0
        %753 = vmatpush1.bf16.msra.mxu0 0
        %754 = vmatprep.subr.bf16.mxu0 0
        %755 = vmatpush1.bf16.msra.mxu0 0
        %756 = vmatprep.subr.bf16.mxu0 0
        %757 = vmatpush1.bf16.msra.mxu0 0
        %758 = vmatprep.subr.bf16.mxu0 0
        %759 = vmatpush1.bf16.msra.mxu0 0
        %760 = vmatprep.subr.bf16.mxu0 0
        %761 = vmatpush1.bf16.msra.mxu0 0
        %762 = vmatprep.mubr.bf16.mxu0 0
        %763 = vmatmul.mubr.bf16.gmra.mrb[0].mxu0 %v724
        %v764 = vpop.f32.mrb[0].mxu0
        %v765 = vadd.f32 %v720, %v764
        %v766 = vpop.f32.mrb[0].mxu0
        %v767 = vpop.f32.mrb[0].mxu0
        %v768 = vadd.f32 %v720, %v767
        %v769 = vpop.f32.mrb[0].mxu0
        %770 = vdwg.mxu0
        %v771 = vmul.f32 %v765, 0.2
        %v772 = vmul.f32 %v768, 0.2
        %v773 = vmax.f32 %v765, %v771
        %v774 = vmax.f32 %v768, %v772
        %v775 = vpack.c.bf16 %v774, %v773
        %v776 = vld [vmem:[%s3] sm:$0xf]
        %v777 = vld [vmem:[%s3 + $0x4] sm:$0xf]
        %v778 = vld [vmem:[%s3 + $0x8] sm:$0xf]
        %v779 = vld [vmem:[%s3 + $0xc] sm:$0xf]
        %v780 = vld [vmem:[%s3 + $0x10] sm:$0xf]
        %v781 = vld [vmem:[%s3 + $0x14] sm:$0xf]
        %v782 = vld [vmem:[%s3 + $0x18] sm:$0xf]
        %v783 = vld [vmem:[%s3 + $0x1c] sm:$0xf]
        %v784 = vld [vmem:[#allocation6] sm:$0x1]
        %v786 = vlaneseq
        %v787 = vshrl.u32 %v786, 7
        %v788 = vsub.s32 0, %v787
        %v789 = vrot.slane %v784, %v788
        %v799 = vunpack.c.l.b16 %v776
        %v800 = vunpack.c.l.b16 %v777
        %v801 = vunpack.c.l.b16 %v778
        %v802 = vunpack.c.l.b16 %v779
        %v803 = vunpack.c.l.b16 %v780
        %v804 = vunpack.c.l.b16 %v781
        %v805 = vunpack.c.l.b16 %v782
        %v806 = vunpack.c.l.b16 %v783
        %v807 = vpack.c.b16 %v800, %v799
        %v808 = vpack.c.b16 %v802, %v801
        %v809 = vpack.c.b16 %v804, %v803
        %v810 = vpack.c.b16 %v806, %v805
        %vm815 = vcmask 523264
        %v817 = vsel %vm815, %v775, 0
        %819 = vmatprep.subr.bf16.mxu0 0
        %820 = vmatpush1.bf16.msra.mxu0 %v807
        %821 = vmatprep.subr.bf16.mxu0 0
        %822 = vmatpush1.bf16.msra.mxu0 %v808
        %823 = vmatprep.subr.bf16.mxu0 0
        %824 = vmatpush1.bf16.msra.mxu0 %v809
        %825 = vmatprep.subr.bf16.mxu0 0
        %826 = vmatpush1.bf16.msra.mxu0 %v810
        %827 = vmatprep.subr.bf16.mxu0 0
        %828 = vmatpush1.bf16.msra.mxu0 0
        %829 = vmatprep.subr.bf16.mxu0 0
        %830 = vmatpush1.bf16.msra.mxu0 0
        %831 = vmatprep.subr.bf16.mxu0 0
        %832 = vmatpush1.bf16.msra.mxu0 0
        %833 = vmatprep.subr.bf16.mxu0 0
        %834 = vmatpush1.bf16.msra.mxu0 0
        %835 = vmatprep.subr.bf16.mxu0 0
        %836 = vmatpush1.bf16.msra.mxu0 0
        %837 = vmatprep.subr.bf16.mxu0 0
        %838 = vmatpush1.bf16.msra.mxu0 0
        %839 = vmatprep.subr.bf16.mxu0 0
        %840 = vmatpush1.bf16.msra.mxu0 0
        %841 = vmatprep.subr.bf16.mxu0 0
        %842 = vmatpush1.bf16.msra.mxu0 0
        %843 = vmatprep.subr.bf16.mxu0 0
        %844 = vmatpush1.bf16.msra.mxu0 0
        %845 = vmatprep.subr.bf16.mxu0 0
        %846 = vmatpush1.bf16.msra.mxu0 0
        %847 = vmatprep.subr.bf16.mxu0 0
        %848 = vmatpush1.bf16.msra.mxu0 0
        %849 = vmatprep.subr.bf16.mxu0 0
        %850 = vmatpush1.bf16.msra.mxu0 0
        %851 = vmatprep.mubr.bf16.mxu0 0
        %852 = vmatmul.mubr.bf16.gmra.mrb[0].mxu0 %v817
        %v853 = vpop.f32.mrb[0].mxu0
        %v854 = vadd.f32 %v789, %v853
        %v855 = vpop.f32.mrb[0].mxu0
        %v856 = vpop.f32.mrb[0].mxu0
        %v857 = vadd.f32 %v789, %v856
        %v858 = vpop.f32.mrb[0].mxu0
        %859 = vdwg.mxu0
        %v860 = vmul.f32 %v854, 0.2
        %v861 = vmul.f32 %v857, 0.2
        %v862 = vmax.f32 %v854, %v860
        %v863 = vmax.f32 %v857, %v861
        %v864 = vpack.c.bf16 %v863, %v862
        %v865 = vld [vmem:[#allocation8] sm:$0xf]
        %v866 = vld [vmem:[#allocation8 + $0x4] sm:$0xf]
        %v867 = vld [vmem:[#allocation8 + $0x8] sm:$0xf]
        %v868 = vld [vmem:[#allocation8 + $0xc] sm:$0xf]
        %v869 = vld [vmem:[#allocation8 + $0x10] sm:$0xf]
        %v870 = vld [vmem:[#allocation8 + $0x14] sm:$0xf]
        %v871 = vld [vmem:[#allocation8 + $0x18] sm:$0xf]
        %v872 = vld [vmem:[#allocation8 + $0x1c] sm:$0xf]
        %v873 = vld [vmem:[#allocation9] sm:$0x1]
        %v875 = vlaneseq
        %v876 = vshrl.u32 %v875, 7
        %v877 = vsub.s32 0, %v876
        %v878 = vrot.slane %v873, %v877
        %v888 = vunpack.c.l.b16 %v865
        %v889 = vunpack.c.l.b16 %v866
        %v890 = vunpack.c.l.b16 %v867
        %v891 = vunpack.c.l.b16 %v868
        %v892 = vunpack.c.l.b16 %v869
        %v893 = vunpack.c.l.b16 %v870
        %v894 = vunpack.c.l.b16 %v871
        %v895 = vunpack.c.l.b16 %v872
        %v896 = vpack.c.b16 %v889, %v888
        %v897 = vpack.c.b16 %v891, %v890
        %v898 = vpack.c.b16 %v893, %v892
        %v899 = vpack.c.b16 %v895, %v894
        %v905 = vsel %vm815, %v864, 0
        %907 = vmatprep.subr.bf16.mxu0 0
        %908 = vmatpush1.bf16.msra.mxu0 %v896
        %909 = vmatprep.subr.bf16.mxu0 0
        %910 = vmatpush1.bf16.msra.mxu0 %v897
        %911 = vmatprep.subr.bf16.mxu0 0
        %912 = vmatpush1.bf16.msra.mxu0 %v898
        %913 = vmatprep.subr.bf16.mxu0 0
        %914 = vmatpush1.bf16.msra.mxu0 %v899
        %915 = vmatprep.subr.bf16.mxu0 0
        %916 = vmatpush1.bf16.msra.mxu0 0
        %917 = vmatprep.subr.bf16.mxu0 0
        %918 = vmatpush1.bf16.msra.mxu0 0
        %919 = vmatprep.subr.bf16.mxu0 0
        %920 = vmatpush1.bf16.msra.mxu0 0
        %921 = vmatprep.subr.bf16.mxu0 0
        %922 = vmatpush1.bf16.msra.mxu0 0
        %923 = vmatprep.subr.bf16.mxu0 0
        %924 = vmatpush1.bf16.msra.mxu0 0
        %925 = vmatprep.subr.bf16.mxu0 0
        %926 = vmatpush1.bf16.msra.mxu0 0
        %927 = vmatprep.subr.bf16.mxu0 0
        %928 = vmatpush1.bf16.msra.mxu0 0
        %929 = vmatprep.subr.bf16.mxu0 0
        %930 = vmatpush1.bf16.msra.mxu0 0
        %931 = vmatprep.subr.bf16.mxu0 0
        %932 = vmatpush1.bf16.msra.mxu0 0
        %933 = vmatprep.subr.bf16.mxu0 0
        %934 = vmatpush1.bf16.msra.mxu0 0
        %935 = vmatprep.subr.bf16.mxu0 0
        %936 = vmatpush1.bf16.msra.mxu0 0
        %937 = vmatprep.subr.bf16.mxu0 0
        %938 = vmatpush1.bf16.msra.mxu0 0
        %939 = vmatprep.mubr.bf16.mxu0 0
        %940 = vmatmul.mubr.bf16.gmra.mrb[0].mxu0 %v905
        %v941 = vpop.f32.mrb[0].mxu0
        %v942 = vadd.f32 %v878, %v941
        %v943 = vpop.f32.mrb[0].mxu0
        %v944 = vpop.f32.mrb[0].mxu0
        %v945 = vadd.f32 %v878, %v944
        %v946 = vpop.f32.mrb[0].mxu0
        %947 = vdwg.mxu0
        %v948 = vmul.f32 %v942, 0.2
        %v949 = vmul.f32 %v945, 0.2
        %v950 = vmax.f32 %v942, %v948
        %v951 = vmax.f32 %v945, %v949
        %v952 = vpack.c.bf16 %v951, %v950
        %v953 = vld [vmem:[%s7] sm:$0xf]
        %v954 = vld [vmem:[%s7 + $0x4] sm:$0xf]
        %v955 = vld [vmem:[%s7 + $0x8] sm:$0xf]
        %v956 = vld [vmem:[%s7 + $0xc] sm:$0xf]
        %v957 = vld [vmem:[%s7 + $0x10] sm:$0xf]
        %v958 = vld [vmem:[%s7 + $0x14] sm:$0xf]
        %v959 = vld [vmem:[%s7 + $0x18] sm:$0xf]
        %v960 = vld [vmem:[%s7 + $0x1c] sm:$0xf]
        %v961 = vld [vmem:[#allocation11] sm:$0x1]
        %v963 = vlaneseq
        %v964 = vshrl.u32 %v963, 7
        %v965 = vsub.s32 0, %v964
        %v966 = vrot.slane %v961, %v965
        %v976 = vunpack.c.l.b16 %v953
        %v977 = vunpack.c.l.b16 %v954
        %v978 = vunpack.c.l.b16 %v955
        %v979 = vunpack.c.l.b16 %v956
        %v980 = vunpack.c.l.b16 %v957
        %v981 = vunpack.c.l.b16 %v958
        %v982 = vunpack.c.l.b16 %v959
        %v983 = vunpack.c.l.b16 %v960
        %v984 = vpack.c.b16 %v977, %v976
        %v985 = vpack.c.b16 %v979, %v978
        %v986 = vpack.c.b16 %v981, %v980
        %v987 = vpack.c.b16 %v983, %v982
        %v993 = vsel %vm815, %v952, 0
        %995 = vmatprep.subr.bf16.mxu0 0
        %996 = vmatpush1.bf16.msra.mxu0 %v984
        %997 = vmatprep.subr.bf16.mxu0 0
        %998 = vmatpush1.bf16.msra.mxu0 %v985
        %999 = vmatprep.subr.bf16.mxu0 0
        %1000 = vmatpush1.bf16.msra.mxu0 %v986
        %1001 = vmatprep.subr.bf16.mxu0 0
        %1002 = vmatpush1.bf16.msra.mxu0 %v987
        %1003 = vmatprep.subr.bf16.mxu0 0
        %1004 = vmatpush1.bf16.msra.mxu0 0
        %1005 = vmatprep.subr.bf16.mxu0 0
        %1006 = vmatpush1.bf16.msra.mxu0 0
        %1007 = vmatprep.subr.bf16.mxu0 0
        %1008 = vmatpush1.bf16.msra.mxu0 0
        %1009 = vmatprep.subr.bf16.mxu0 0
        %1010 = vmatpush1.bf16.msra.mxu0 0
        %1011 = vmatprep.subr.bf16.mxu0 0
        %1012 = vmatpush1.bf16.msra.mxu0 0
        %1013 = vmatprep.subr.bf16.mxu0 0
        %1014 = vmatpush1.bf16.msra.mxu0 0
        %1015 = vmatprep.subr.bf16.mxu0 0
        %1016 = vmatpush1.bf16.msra.mxu0 0
        %1017 = vmatprep.subr.bf16.mxu0 0
        %1018 = vmatpush1.bf16.msra.mxu0 0
        %1019 = vmatprep.subr.bf16.mxu0 0
        %1020 = vmatpush1.bf16.msra.mxu0 0
        %1021 = vmatprep.subr.bf16.mxu0 0
        %1022 = vmatpush1.bf16.msra.mxu0 0
        %1023 = vmatprep.subr.bf16.mxu0 0
        %1024 = vmatpush1.bf16.msra.mxu0 0
        %1025 = vmatprep.subr.bf16.mxu0 0
        %1026 = vmatpush1.bf16.msra.mxu0 0
        %1027 = vmatprep.mubr.bf16.mxu0 0
        %1028 = vmatmul.mubr.bf16.gmra.mrb[0].mxu0 %v993
        %v1029 = vpop.f32.mrb[0].mxu0
        %v1030 = vadd.f32 %v966, %v1029
        %v1031 = vpop.f32.mrb[0].mxu0
        %v1032 = vpop.f32.mrb[0].mxu0
        %v1033 = vadd.f32 %v966, %v1032
        %v1034 = vpop.f32.mrb[0].mxu0
        %1035 = vdwg.mxu0
        %v1036 = vmul.f32 %v1030, 0.2
        %v1037 = vmul.f32 %v1033, 0.2
        %v1038 = vmax.f32 %v1030, %v1036
        %v1039 = vmax.f32 %v1033, %v1037
        %v1040 = vpack.c.bf16 %v1039, %v1038
        %v1041 = vld [vmem:[#allocation12] sm:$0xff]
        %v1042 = vld [vmem:[#allocation12 + $0x8] sm:$0xff]
        %v1043 = vld [vmem:[#allocation12 + $0x10] sm:$0xff]
        %v1044 = vld [vmem:[#allocation12 + $0x18] sm:$0xff]
        %v1045 = vld [vmem:[#allocation12 + $0x20] sm:$0xff]
        %v1046 = vld [vmem:[#allocation12 + $0x28] sm:$0xff]
        %v1047 = vld [vmem:[#allocation12 + $0x30] sm:$0xff]
        %v1048 = vld [vmem:[#allocation12 + $0x38] sm:$0xff]
        %v1049 = vld [vmem:[#allocation12 + $0x40] sm:$0xff]
        %v1050 = vld [vmem:[#allocation12 + $0x48] sm:$0xff]
        %v1051 = vld [vmem:[#allocation12 + $0x50] sm:$0xff]
        %v1052 = vld [vmem:[#allocation12 + $0x58] sm:$0xff]
        %v1053 = vld [vmem:[#allocation12 + $0x60] sm:$0xff]
        %v1054 = vld [vmem:[#allocation12 + $0x68] sm:$0xff]
        %v1055 = vld [vmem:[#allocation12 + $0x70] sm:$0xff]
        %v1056 = vld [vmem:[#allocation12 + $0x78] sm:$0xff]
        %v1057 = vld [vmem:[#allocation12 + $0x80] sm:$0xff]
        %v1058 = vld [vmem:[#allocation12 + $0x88] sm:$0xff]
        %v1059 = vld [vmem:[#allocation12 + $0x90] sm:$0xff]
        %v1060 = vld [vmem:[#allocation12 + $0x98] sm:$0xff]
        %v1061 = vld [vmem:[#allocation12 + $0xa0] sm:$0xff]
        %v1062 = vld [vmem:[#allocation12 + $0xa8] sm:$0xff]
        %v1063 = vld [vmem:[#allocation12 + $0xb0] sm:$0xff]
        %v1064 = vld [vmem:[#allocation12 + $0xb8] sm:$0xff]
        %v1065 = vld [vmem:[#allocation12 + $0xc0] sm:$0xff]
        %v1066 = vld [vmem:[#allocation12 + $0xc8] sm:$0xff]
        %v1067 = vld [vmem:[#allocation12 + $0xd0] sm:$0xff]
        %v1068 = vld [vmem:[#allocation12 + $0xd8] sm:$0xff]
        %v1069 = vld [vmem:[#allocation12 + $0xe0] sm:$0xff]
        %v1070 = vld [vmem:[#allocation12 + $0xe8] sm:$0xff]
        %v1071 = vld [vmem:[#allocation12 + $0xf0] sm:$0xff]
        %v1072 = vld [vmem:[#allocation12 + $0xf8] sm:$0xff]
        %v1073 = vld [vmem:[#allocation12 + $0x100] sm:$0xff]
        %v1074 = vld [vmem:[#allocation12 + $0x108] sm:$0xff]
        %v1075 = vld [vmem:[#allocation12 + $0x110] sm:$0xff]
        %v1076 = vld [vmem:[#allocation12 + $0x118] sm:$0xff]
        %v1077 = vld [vmem:[#allocation12 + $0x120] sm:$0xff]
        %v1078 = vld [vmem:[#allocation12 + $0x128] sm:$0xff]
        %v1079 = vld [vmem:[#allocation12 + $0x130] sm:$0xff]
        %v1080 = vld [vmem:[#allocation12 + $0x138] sm:$0xff]
        %v1081 = vld [vmem:[#allocation12 + $0x140] sm:$0xff]
        %v1082 = vld [vmem:[#allocation12 + $0x148] sm:$0xff]
        %v1083 = vld [vmem:[#allocation12 + $0x150] sm:$0xff]
        %v1084 = vld [vmem:[#allocation12 + $0x158] sm:$0xff]
        %v1085 = vld [vmem:[#allocation12 + $0x160] sm:$0xff]
        %v1086 = vld [vmem:[#allocation12 + $0x168] sm:$0xff]
        %v1087 = vld [vmem:[#allocation12 + $0x170] sm:$0xff]
        %v1088 = vld [vmem:[#allocation12 + $0x178] sm:$0xff]
        %v1089 = vld [vmem:[#allocation12 + $0x180] sm:$0xff]
        %v1090 = vld [vmem:[#allocation12 + $0x188] sm:$0xff]
        %v1091 = vld [vmem:[#allocation12 + $0x190] sm:$0xff]
        %v1092 = vld [vmem:[#allocation12 + $0x198] sm:$0xff]
        %v1093 = vld [vmem:[#allocation12 + $0x1a0] sm:$0xff]
        %v1094 = vld [vmem:[#allocation12 + $0x1a8] sm:$0xff]
        %v1095 = vld [vmem:[#allocation12 + $0x1b0] sm:$0xff]
        %v1096 = vld [vmem:[#allocation12 + $0x1b8] sm:$0xff]
        %v1097 = vld [vmem:[#allocation12 + $0x1c0] sm:$0xff]
        %v1098 = vld [vmem:[#allocation12 + $0x1c8] sm:$0xff]
        %v1099 = vld [vmem:[#allocation12 + $0x1d0] sm:$0xff]
        %v1100 = vld [vmem:[#allocation12 + $0x1d8] sm:$0xff]
        %v1101 = vld [vmem:[#allocation12 + $0x1e0] sm:$0xff]
        %v1102 = vld [vmem:[#allocation12 + $0x1e8] sm:$0xff]
        %v1103 = vld [vmem:[#allocation12 + $0x1f0] sm:$0xff]
        %v1104 = vld [vmem:[#allocation12 + $0x1f8] sm:$0xff]
        %v1105 = vld [vmem:[%s10] sm:$0xff]
        %v1107 = vlaneseq
        %v1108 = vshrl.u32 %v1107, 7
        %v1109 = vsub.s32 0, %v1108
        %v1110 = vrot.slane %v1105, %v1109
        %v1111 = vlaneseq
        %v1112 = vshrl.u32 %v1111, 7
        %v1113 = vsub.s32 1, %v1112
        %v1114 = vrot.slane %v1105, %v1113
        %v1115 = vlaneseq
        %v1116 = vshrl.u32 %v1115, 7
        %v1117 = vsub.s32 2, %v1116
        %v1118 = vrot.slane %v1105, %v1117
        %v1119 = vlaneseq
        %v1120 = vshrl.u32 %v1119, 7
        %v1121 = vsub.s32 3, %v1120
        %v1122 = vrot.slane %v1105, %v1121
        %v1123 = vlaneseq
        %v1124 = vshrl.u32 %v1123, 7
        %v1125 = vsub.s32 4, %v1124
        %v1126 = vrot.slane %v1105, %v1125
        %v1127 = vlaneseq
        %v1128 = vshrl.u32 %v1127, 7
        %v1129 = vsub.s32 5, %v1128
        %v1130 = vrot.slane %v1105, %v1129
        %v1131 = vlaneseq
        %v1132 = vshrl.u32 %v1131, 7
        %v1133 = vsub.s32 6, %v1132
        %v1134 = vrot.slane %v1105, %v1133
        %v1135 = vlaneseq
        %v1136 = vshrl.u32 %v1135, 7
        %v1137 = vsub.s32 7, %v1136
        %v1138 = vrot.slane %v1105, %v1137
        %v1211 = vunpack.c.l.b16 %v1041
        %v1212 = vunpack.c.h.b16 %v1041
        %v1213 = vunpack.c.l.b16 %v1042
        %v1214 = vunpack.c.h.b16 %v1042
        %v1215 = vunpack.c.l.b16 %v1043
        %v1216 = vunpack.c.h.b16 %v1043
        %v1217 = vunpack.c.l.b16 %v1044
        %v1218 = vunpack.c.h.b16 %v1044
        %v1219 = vunpack.c.l.b16 %v1045
        %v1220 = vunpack.c.h.b16 %v1045
        %v1221 = vunpack.c.l.b16 %v1046
        %v1222 = vunpack.c.h.b16 %v1046
        %v1223 = vunpack.c.l.b16 %v1047
        %v1224 = vunpack.c.h.b16 %v1047
        %v1225 = vunpack.c.l.b16 %v1048
        %v1226 = vunpack.c.h.b16 %v1048
        %v1227 = vunpack.c.l.b16 %v1049
        %v1228 = vunpack.c.h.b16 %v1049
        %v1229 = vunpack.c.l.b16 %v1050
        %v1230 = vunpack.c.h.b16 %v1050
        %v1231 = vunpack.c.l.b16 %v1051
        %v1232 = vunpack.c.h.b16 %v1051
        %v1233 = vunpack.c.l.b16 %v1052
        %v1234 = vunpack.c.h.b16 %v1052
        %v1235 = vunpack.c.l.b16 %v1053
        %v1236 = vunpack.c.h.b16 %v1053
        %v1237 = vunpack.c.l.b16 %v1054
        %v1238 = vunpack.c.h.b16 %v1054
        %v1239 = vunpack.c.l.b16 %v1055
        %v1240 = vunpack.c.h.b16 %v1055
        %v1241 = vunpack.c.l.b16 %v1056
        %v1242 = vunpack.c.h.b16 %v1056
        %v1243 = vunpack.c.l.b16 %v1057
        %v1244 = vunpack.c.h.b16 %v1057
        %v1245 = vunpack.c.l.b16 %v1058
        %v1246 = vunpack.c.h.b16 %v1058
        %v1247 = vunpack.c.l.b16 %v1059
        %v1248 = vunpack.c.h.b16 %v1059
        %v1249 = vunpack.c.l.b16 %v1060
        %v1250 = vunpack.c.h.b16 %v1060
        %v1251 = vunpack.c.l.b16 %v1061
        %v1252 = vunpack.c.h.b16 %v1061
        %v1253 = vunpack.c.l.b16 %v1062
        %v1254 = vunpack.c.h.b16 %v1062
        %v1255 = vunpack.c.l.b16 %v1063
        %v1256 = vunpack.c.h.b16 %v1063
        %v1257 = vunpack.c.l.b16 %v1064
        %v1258 = vunpack.c.h.b16 %v1064
        %v1259 = vunpack.c.l.b16 %v1065
        %v1260 = vunpack.c.h.b16 %v1065
        %v1261 = vunpack.c.l.b16 %v1066
        %v1262 = vunpack.c.h.b16 %v1066
        %v1263 = vunpack.c.l.b16 %v1067
        %v1264 = vunpack.c.h.b16 %v1067
        %v1265 = vunpack.c.l.b16 %v1068
        %v1266 = vunpack.c.h.b16 %v1068
        %v1267 = vunpack.c.l.b16 %v1069
        %v1268 = vunpack.c.h.b16 %v1069
        %v1269 = vunpack.c.l.b16 %v1070
        %v1270 = vunpack.c.h.b16 %v1070
        %v1271 = vunpack.c.l.b16 %v1071
        %v1272 = vunpack.c.h.b16 %v1071
        %v1273 = vunpack.c.l.b16 %v1072
        %v1274 = vunpack.c.h.b16 %v1072
        %v1275 = vunpack.c.l.b16 %v1073
        %v1276 = vunpack.c.h.b16 %v1073
        %v1277 = vunpack.c.l.b16 %v1074
        %v1278 = vunpack.c.h.b16 %v1074
        %v1279 = vunpack.c.l.b16 %v1075
        %v1280 = vunpack.c.h.b16 %v1075
        %v1281 = vunpack.c.l.b16 %v1076
        %v1282 = vunpack.c.h.b16 %v1076
        %v1283 = vunpack.c.l.b16 %v1077
        %v1284 = vunpack.c.h.b16 %v1077
        %v1285 = vunpack.c.l.b16 %v1078
        %v1286 = vunpack.c.h.b16 %v1078
        %v1287 = vunpack.c.l.b16 %v1079
        %v1288 = vunpack.c.h.b16 %v1079
        %v1289 = vunpack.c.l.b16 %v1080
        %v1290 = vunpack.c.h.b16 %v1080
        %v1291 = vunpack.c.l.b16 %v1081
        %v1292 = vunpack.c.h.b16 %v1081
        %v1293 = vunpack.c.l.b16 %v1082
        %v1294 = vunpack.c.h.b16 %v1082
        %v1295 = vunpack.c.l.b16 %v1083
        %v1296 = vunpack.c.h.b16 %v1083
        %v1297 = vunpack.c.l.b16 %v1084
        %v1298 = vunpack.c.h.b16 %v1084
        %v1299 = vunpack.c.l.b16 %v1085
        %v1300 = vunpack.c.h.b16 %v1085
        %v1301 = vunpack.c.l.b16 %v1086
        %v1302 = vunpack.c.h.b16 %v1086
        %v1303 = vunpack.c.l.b16 %v1087
        %v1304 = vunpack.c.h.b16 %v1087
        %v1305 = vunpack.c.l.b16 %v1088
        %v1306 = vunpack.c.h.b16 %v1088
        %v1307 = vunpack.c.l.b16 %v1089
        %v1308 = vunpack.c.h.b16 %v1089
        %v1309 = vunpack.c.l.b16 %v1090
        %v1310 = vunpack.c.h.b16 %v1090
        %v1311 = vunpack.c.l.b16 %v1091
        %v1312 = vunpack.c.h.b16 %v1091
        %v1313 = vunpack.c.l.b16 %v1092
        %v1314 = vunpack.c.h.b16 %v1092
        %v1315 = vunpack.c.l.b16 %v1093
        %v1316 = vunpack.c.h.b16 %v1093
        %v1317 = vunpack.c.l.b16 %v1094
        %v1318 = vunpack.c.h.b16 %v1094
        %v1319 = vunpack.c.l.b16 %v1095
        %v1320 = vunpack.c.h.b16 %v1095
        %v1321 = vunpack.c.l.b16 %v1096
        %v1322 = vunpack.c.h.b16 %v1096
        %v1323 = vunpack.c.l.b16 %v1097
        %v1324 = vunpack.c.h.b16 %v1097
        %v1325 = vunpack.c.l.b16 %v1098
        %v1326 = vunpack.c.h.b16 %v1098
        %v1327 = vunpack.c.l.b16 %v1099
        %v1328 = vunpack.c.h.b16 %v1099
        %v1329 = vunpack.c.l.b16 %v1100
        %v1330 = vunpack.c.h.b16 %v1100
        %v1331 = vunpack.c.l.b16 %v1101
        %v1332 = vunpack.c.h.b16 %v1101
        %v1333 = vunpack.c.l.b16 %v1102
        %v1334 = vunpack.c.h.b16 %v1102
        %v1335 = vunpack.c.l.b16 %v1103
        %v1336 = vunpack.c.h.b16 %v1103
        %v1337 = vunpack.c.l.b16 %v1104
        %v1338 = vunpack.c.h.b16 %v1104
        %v1339 = vpack.c.b16 %v1219, %v1211
        %v1340 = vpack.c.b16 %v1220, %v1212
        %v1341 = vpack.c.b16 %v1221, %v1213
        %v1342 = vpack.c.b16 %v1222, %v1214
        %v1343 = vpack.c.b16 %v1223, %v1215
        %v1344 = vpack.c.b16 %v1224, %v1216
        %v1345 = vpack.c.b16 %v1225, %v1217
        %v1346 = vpack.c.b16 %v1226, %v1218
        %v1347 = vpack.c.b16 %v1235, %v1227
        %v1348 = vpack.c.b16 %v1236, %v1228
        %v1349 = vpack.c.b16 %v1237, %v1229
        %v1350 = vpack.c.b16 %v1238, %v1230
        %v1351 = vpack.c.b16 %v1239, %v1231
        %v1352 = vpack.c.b16 %v1240, %v1232
        %v1353 = vpack.c.b16 %v1241, %v1233
        %v1354 = vpack.c.b16 %v1242, %v1234
        %v1355 = vpack.c.b16 %v1251, %v1243
        %v1356 = vpack.c.b16 %v1252, %v1244
        %v1357 = vpack.c.b16 %v1253, %v1245
        %v1358 = vpack.c.b16 %v1254, %v1246
        %v1359 = vpack.c.b16 %v1255, %v1247
        %v1360 = vpack.c.b16 %v1256, %v1248
        %v1361 = vpack.c.b16 %v1257, %v1249
        %v1362 = vpack.c.b16 %v1258, %v1250
        %v1363 = vpack.c.b16 %v1267, %v1259
        %v1364 = vpack.c.b16 %v1268, %v1260
        %v1365 = vpack.c.b16 %v1269, %v1261
        %v1366 = vpack.c.b16 %v1270, %v1262
        %v1367 = vpack.c.b16 %v1271, %v1263
        %v1368 = vpack.c.b16 %v1272, %v1264
        %v1369 = vpack.c.b16 %v1273, %v1265
        %v1370 = vpack.c.b16 %v1274, %v1266
        %v1371 = vpack.c.b16 %v1283, %v1275
        %v1372 = vpack.c.b16 %v1284, %v1276
        %v1373 = vpack.c.b16 %v1285, %v1277
        %v1374 = vpack.c.b16 %v1286, %v1278
        %v1375 = vpack.c.b16 %v1287, %v1279
        %v1376 = vpack.c.b16 %v1288, %v1280
        %v1377 = vpack.c.b16 %v1289, %v1281
        %v1378 = vpack.c.b16 %v1290, %v1282
        %v1379 = vpack.c.b16 %v1299, %v1291
        %v1380 = vpack.c.b16 %v1300, %v1292
        %v1381 = vpack.c.b16 %v1301, %v1293
        %v1382 = vpack.c.b16 %v1302, %v1294
        %v1383 = vpack.c.b16 %v1303, %v1295
        %v1384 = vpack.c.b16 %v1304, %v1296
        %v1385 = vpack.c.b16 %v1305, %v1297
        %v1386 = vpack.c.b16 %v1306, %v1298
        %v1387 = vpack.c.b16 %v1315, %v1307
        %v1388 = vpack.c.b16 %v1316, %v1308
        %v1389 = vpack.c.b16 %v1317, %v1309
        %v1390 = vpack.c.b16 %v1318, %v1310
        %v1391 = vpack.c.b16 %v1319, %v1311
        %v1392 = vpack.c.b16 %v1320, %v1312
        %v1393 = vpack.c.b16 %v1321, %v1313
        %v1394 = vpack.c.b16 %v1322, %v1314
        %v1395 = vpack.c.b16 %v1331, %v1323
        %v1396 = vpack.c.b16 %v1332, %v1324
        %v1397 = vpack.c.b16 %v1333, %v1325
        %v1398 = vpack.c.b16 %v1334, %v1326
        %v1399 = vpack.c.b16 %v1335, %v1327
        %v1400 = vpack.c.b16 %v1336, %v1328
        %v1401 = vpack.c.b16 %v1337, %v1329
        %v1402 = vpack.c.b16 %v1338, %v1330
        %1467 = vmatprep.subr.bf16.mxu0 %v1340
        %1468 = vmatpush1.bf16.msra.mxu0 %v1339
        %1469 = vmatprep.subr.bf16.mxu0 %v1348
        %1470 = vmatpush1.bf16.msra.mxu0 %v1347
        %1471 = vmatprep.subr.bf16.mxu0 %v1356
        %1472 = vmatpush1.bf16.msra.mxu0 %v1355
        %1473 = vmatprep.subr.bf16.mxu0 %v1364
        %1474 = vmatpush1.bf16.msra.mxu0 %v1363
        %1475 = vmatprep.subr.bf16.mxu0 %v1372
        %1476 = vmatpush1.bf16.msra.mxu0 %v1371
        %1477 = vmatprep.subr.bf16.mxu0 %v1380
        %1478 = vmatpush1.bf16.msra.mxu0 %v1379
        %1479 = vmatprep.subr.bf16.mxu0 %v1388
        %1480 = vmatpush1.bf16.msra.mxu0 %v1387
        %1481 = vmatprep.subr.bf16.mxu0 %v1396
        %1482 = vmatpush1.bf16.msra.mxu0 %v1395
        %1483 = vmatprep.subr.bf16.mxu0 0
        %1484 = vmatpush1.bf16.msra.mxu0 0
        %1485 = vmatprep.subr.bf16.mxu0 0
        %1486 = vmatpush1.bf16.msra.mxu0 0
        %1487 = vmatprep.subr.bf16.mxu0 0
        %1488 = vmatpush1.bf16.msra.mxu0 0
        %1489 = vmatprep.subr.bf16.mxu0 0
        %1490 = vmatpush1.bf16.msra.mxu0 0
        %1491 = vmatprep.subr.bf16.mxu0 0
        %1492 = vmatpush1.bf16.msra.mxu0 0
        %1493 = vmatprep.subr.bf16.mxu0 0
        %1494 = vmatpush1.bf16.msra.mxu0 0
        %1495 = vmatprep.subr.bf16.mxu0 0
        %1496 = vmatpush1.bf16.msra.mxu0 0
        %1497 = vmatprep.subr.bf16.mxu0 0
        %1498 = vmatpush1.bf16.msra.mxu0 0
        %1499 = vmatprep.mubr.bf16.mxu0 0
        %1500 = vmatmul.mubr.bf16.gmra.mrb[0].mxu0 %v1040
        %v1501 = vpop.f32.mrb[0].mxu0
        %v1502 = vadd.f32 %v1110, %v1501
        %v1503 = vpop.f32.mrb[0].mxu0
        %v1504 = vadd.f32 %v1114, %v1503
        %v1505 = vpop.f32.mrb[0].mxu0
        %v1506 = vadd.f32 %v1110, %v1505
        %v1507 = vpop.f32.mrb[0].mxu0
        %v1508 = vadd.f32 %v1114, %v1507
        %1509 = vdwg.mxu0
        %1510 = vmatprep.subr.bf16.mxu0 %v1342
        %1511 = vmatpush1.bf16.msra.mxu0 %v1341
        %1512 = vmatprep.subr.bf16.mxu0 %v1350
        %1513 = vmatpush1.bf16.msra.mxu0 %v1349
        %1514 = vmatprep.subr.bf16.mxu0 %v1358
        %1515 = vmatpush1.bf16.msra.mxu0 %v1357
        %1516 = vmatprep.subr.bf16.mxu0 %v1366
        %1517 = vmatpush1.bf16.msra.mxu0 %v1365
        %1518 = vmatprep.subr.bf16.mxu0 %v1374
        %1519 = vmatpush1.bf16.msra.mxu0 %v1373
        %1520 = vmatprep.subr.bf16.mxu0 %v1382
        %1521 = vmatpush1.bf16.msra.mxu0 %v1381
        %1522 = vmatprep.subr.bf16.mxu0 %v1390
        %1523 = vmatpush1.bf16.msra.mxu0 %v1389
        %1524 = vmatprep.subr.bf16.mxu0 %v1398
        %1525 = vmatpush1.bf16.msra.mxu0 %v1397
        %1526 = vmatprep.subr.bf16.mxu0 0
        %1527 = vmatpush1.bf16.msra.mxu0 0
        %1528 = vmatprep.subr.bf16.mxu0 0
        %1529 = vmatpush1.bf16.msra.mxu0 0
        %1530 = vmatprep.subr.bf16.mxu0 0
        %1531 = vmatpush1.bf16.msra.mxu0 0
        %1532 = vmatprep.subr.bf16.mxu0 0
        %1533 = vmatpush1.bf16.msra.mxu0 0
        %1534 = vmatprep.subr.bf16.mxu0 0
        %1535 = vmatpush1.bf16.msra.mxu0 0
        %1536 = vmatprep.subr.bf16.mxu0 0
        %1537 = vmatpush1.bf16.msra.mxu0 0
        %1538 = vmatprep.subr.bf16.mxu0 0
        %1539 = vmatpush1.bf16.msra.mxu0 0
        %1540 = vmatprep.subr.bf16.mxu0 0
        %1541 = vmatpush1.bf16.msra.mxu0 0
        %1542 = vmatprep.mubr.bf16.mxu0 0
        %1543 = vmatmul.mubr.bf16.gmra.mrb[0].mxu0 %v1040
        %v1544 = vpop.f32.mrb[0].mxu0
        %v1545 = vadd.f32 %v1118, %v1544
        %v1546 = vpop.f32.mrb[0].mxu0
        %v1547 = vadd.f32 %v1122, %v1546
        %v1548 = vpop.f32.mrb[0].mxu0
        %v1549 = vadd.f32 %v1118, %v1548
        %v1550 = vpop.f32.mrb[0].mxu0
        %v1551 = vadd.f32 %v1122, %v1550
        %1552 = vdwg.mxu0
        %1553 = vmatprep.subr.bf16.mxu0 %v1344
        %1554 = vmatpush1.bf16.msra.mxu0 %v1343
        %1555 = vmatprep.subr.bf16.mxu0 %v1352
        %1556 = vmatpush1.bf16.msra.mxu0 %v1351
        %1557 = vmatprep.subr.bf16.mxu0 %v1360
        %1558 = vmatpush1.bf16.msra.mxu0 %v1359
        %1559 = vmatprep.subr.bf16.mxu0 %v1368
        %1560 = vmatpush1.bf16.msra.mxu0 %v1367
        %1561 = vmatprep.subr.bf16.mxu0 %v1376
        %1562 = vmatpush1.bf16.msra.mxu0 %v1375
        %1563 = vmatprep.subr.bf16.mxu0 %v1384
        %1564 = vmatpush1.bf16.msra.mxu0 %v1383
        %1565 = vmatprep.subr.bf16.mxu0 %v1392
        %1566 = vmatpush1.bf16.msra.mxu0 %v1391
        %1567 = vmatprep.subr.bf16.mxu0 %v1400
        %1568 = vmatpush1.bf16.msra.mxu0 %v1399
        %1569 = vmatprep.subr.bf16.mxu0 0
        %1570 = vmatpush1.bf16.msra.mxu0 0
        %1571 = vmatprep.subr.bf16.mxu0 0
        %1572 = vmatpush1.bf16.msra.mxu0 0
        %1573 = vmatprep.subr.bf16.mxu0 0
        %1574 = vmatpush1.bf16.msra.mxu0 0
        %1575 = vmatprep.subr.bf16.mxu0 0
        %1576 = vmatpush1.bf16.msra.mxu0 0
        %1577 = vmatprep.subr.bf16.mxu0 0
        %1578 = vmatpush1.bf16.msra.mxu0 0
        %1579 = vmatprep.subr.bf16.mxu0 0
        %1580 = vmatpush1.bf16.msra.mxu0 0
        %1581 = vmatprep.subr.bf16.mxu0 0
        %1582 = vmatpush1.bf16.msra.mxu0 0
        %1583 = vmatprep.subr.bf16.mxu0 0
        %1584 = vmatpush1.bf16.msra.mxu0 0
        %1585 = vmatprep.mubr.bf16.mxu0 0
        %1586 = vmatmul.mubr.bf16.gmra.mrb[0].mxu0 %v1040
        %v1587 = vpop.f32.mrb[0].mxu0
        %v1588 = vadd.f32 %v1126, %v1587
        %v1589 = vpop.f32.mrb[0].mxu0
        %v1590 = vadd.f32 %v1130, %v1589
        %v1591 = vpop.f32.mrb[0].mxu0
        %v1592 = vadd.f32 %v1126, %v1591
        %v1593 = vpop.f32.mrb[0].mxu0
        %v1594 = vadd.f32 %v1130, %v1593
        %1595 = vdwg.mxu0
        %1596 = vmatprep.subr.bf16.mxu0 %v1346
        %1597 = vmatpush1.bf16.msra.mxu0 %v1345
        %1598 = vmatprep.subr.bf16.mxu0 %v1354
        %1599 = vmatpush1.bf16.msra.mxu0 %v1353
        %1600 = vmatprep.subr.bf16.mxu0 %v1362
        %1601 = vmatpush1.bf16.msra.mxu0 %v1361
        %1602 = vmatprep.subr.bf16.mxu0 %v1370
        %1603 = vmatpush1.bf16.msra.mxu0 %v1369
        %1604 = vmatprep.subr.bf16.mxu0 %v1378
        %1605 = vmatpush1.bf16.msra.mxu0 %v1377
        %1606 = vmatprep.subr.bf16.mxu0 %v1386
        %1607 = vmatpush1.bf16.msra.mxu0 %v1385
        %1608 = vmatprep.subr.bf16.mxu0 %v1394
        %1609 = vmatpush1.bf16.msra.mxu0 %v1393
        %1610 = vmatprep.subr.bf16.mxu0 %v1402
        %1611 = vmatpush1.bf16.msra.mxu0 %v1401
        %1612 = vmatprep.subr.bf16.mxu0 0
        %1613 = vmatpush1.bf16.msra.mxu0 0
        %1614 = vmatprep.subr.bf16.mxu0 0
        %1615 = vmatpush1.bf16.msra.mxu0 0
        %1616 = vmatprep.subr.bf16.mxu0 0
        %1617 = vmatpush1.bf16.msra.mxu0 0
        %1618 = vmatprep.subr.bf16.mxu0 0
        %1619 = vmatpush1.bf16.msra.mxu0 0
        %1620 = vmatprep.subr.bf16.mxu0 0
        %1621 = vmatpush1.bf16.msra.mxu0 0
        %1622 = vmatprep.subr.bf16.mxu0 0
        %1623 = vmatpush1.bf16.msra.mxu0 0
        %1624 = vmatprep.subr.bf16.mxu0 0
        %1625 = vmatpush1.bf16.msra.mxu0 0
        %1626 = vmatprep.subr.bf16.mxu0 0
        %1627 = vmatpush1.bf16.msra.mxu0 0
        %1628 = vmatprep.mubr.bf16.mxu0 0
        %1629 = vmatmul.mubr.bf16.gmra.mrb[0].mxu0 %v1040
        %v1630 = vpop.f32.mrb[0].mxu0
        %v1631 = vadd.f32 %v1134, %v1630
        %v1632 = vpop.f32.mrb[0].mxu0
        %v1633 = vadd.f32 %v1138, %v1632
        %v1634 = vpop.f32.mrb[0].mxu0
        %v1635 = vadd.f32 %v1134, %v1634
        %v1636 = vpop.f32.mrb[0].mxu0
        %v1637 = vadd.f32 %v1138, %v1636
        %1638 = vdwg.mxu0
        %v1639 = vlaneseq
        %v1640 = vshrl.u32 %v1639, 7
        %v1641 = vadd.s32 %v1640, 8
        %s1642 = smul.u32 %s41, 16
        %v1643 = vstv %s1642
        %v1644 = vadd.s32 %v1643, %v1640
        %v1645 = vadd.s32 %v1643, %v1641
        %vm1646 = vcmp.lt.s32.totalorder %v1644, 16
        %vm1647 = vcmp.lt.s32.totalorder %v1645, 16
        %v1648 = vsel %vm1646, 1, 0
        %v1649 = vsel %vm1647, 1, 0
        %vm1650 = vcmp.eq.s32.totalorder %v1648, 1
        %vm1651 = vcmp.eq.s32.totalorder %v1649, 1
        %v1652 = vsel %vm1650, %v1502, -inf
        %v1653 = vsel %vm1650, %v1504, -inf
        %v1654 = vsel %vm1650, %v1545, -inf
        %v1655 = vsel %vm1650, %v1547, -inf
        %v1656 = vsel %vm1650, %v1588, -inf
        %v1657 = vsel %vm1650, %v1590, -inf
        %v1658 = vsel %vm1650, %v1631, -inf
        %v1659 = vsel %vm1650, %v1633, -inf
        %v1660 = vsel %vm1651, %v1506, -inf
        %v1661 = vsel %vm1651, %v1508, -inf
        %v1662 = vsel %vm1651, %v1549, -inf
        %v1663 = vsel %vm1651, %v1551, -inf
        %v1664 = vsel %vm1651, %v1592, -inf
        %v1665 = vsel %vm1651, %v1594, -inf
        %v1666 = vsel %vm1651, %v1635, -inf
        %v1667 = vsel %vm1651, %v1637, -inf
        %v1668 = vld [vmem:[#allocation2] sm:$0xff]
        %v1669 = vld [vmem:[#allocation2 + $0x8] sm:$0xff]
        %v1670 = vld [vmem:[#allocation2 + $0x10] sm:$0xff]
        %v1671 = vld [vmem:[#allocation2 + $0x18] sm:$0xff]
        %v1672 = vld [vmem:[#allocation2 + $0x20] sm:$0xff]
        %v1673 = vld [vmem:[#allocation2 + $0x28] sm:$0xff]
        %v1674 = vld [vmem:[#allocation2 + $0x30] sm:$0xff]
        %v1675 = vld [vmem:[#allocation2 + $0x38] sm:$0xff]
        %v1676 = vmax.f32 %v1652, %v1660
        %v1677 = vrot.slane %v1676, 4
        %v1678 = vmax.f32 %v1676, %v1677
        %v1679 = vrot.slane %v1678, 2
        %v1680 = vmax.f32 %v1678, %v1679
        %v1681 = vrot.slane %v1680, 1
        %v1682 = vmax.f32 %v1680, %v1681
        %v1683 = vmax.f32 %v1653, %v1661
        %v1684 = vrot.slane %v1683, 4
        %v1685 = vmax.f32 %v1683, %v1684
        %v1686 = vrot.slane %v1685, 2
        %v1687 = vmax.f32 %v1685, %v1686
        %v1688 = vrot.slane %v1687, 1
        %v1689 = vmax.f32 %v1687, %v1688
        %v1690 = vmax.f32 %v1654, %v1662
        %v1691 = vrot.slane %v1690, 4
        %v1692 = vmax.f32 %v1690, %v1691
        %v1693 = vrot.slane %v1692, 2
        %v1694 = vmax.f32 %v1692, %v1693
        %v1695 = vrot.slane %v1694, 1
        %v1696 = vmax.f32 %v1694, %v1695
        %v1697 = vmax.f32 %v1655, %v1663
        %v1698 = vrot.slane %v1697, 4
        %v1699 = vmax.f32 %v1697, %v1698
        %v1700 = vrot.slane %v1699, 2
        %v1701 = vmax.f32 %v1699, %v1700
        %v1702 = vrot.slane %v1701, 1
        %v1703 = vmax.f32 %v1701, %v1702
        %v1704 = vmax.f32 %v1656, %v1664
        %v1705 = vrot.slane %v1704, 4
        %v1706 = vmax.f32 %v1704, %v1705
        %v1707 = vrot.slane %v1706, 2
        %v1708 = vmax.f32 %v1706, %v1707
        %v1709 = vrot.slane %v1708, 1
        %v1710 = vmax.f32 %v1708, %v1709
        %v1711 = vmax.f32 %v1657, %v1665
        %v1712 = vrot.slane %v1711, 4
        %v1713 = vmax.f32 %v1711, %v1712
        %v1714 = vrot.slane %v1713, 2
        %v1715 = vmax.f32 %v1713, %v1714
        %v1716 = vrot.slane %v1715, 1
        %v1717 = vmax.f32 %v1715, %v1716
        %v1718 = vmax.f32 %v1658, %v1666
        %v1719 = vrot.slane %v1718, 4
        %v1720 = vmax.f32 %v1718, %v1719
        %v1721 = vrot.slane %v1720, 2
        %v1722 = vmax.f32 %v1720, %v1721
        %v1723 = vrot.slane %v1722, 1
        %v1724 = vmax.f32 %v1722, %v1723
        %v1725 = vmax.f32 %v1659, %v1667
        %v1726 = vrot.slane %v1725, 4
        %v1727 = vmax.f32 %v1725, %v1726
        %v1728 = vrot.slane %v1727, 2
        %v1729 = vmax.f32 %v1727, %v1728
        %v1730 = vrot.slane %v1729, 1
        %v1731 = vmax.f32 %v1729, %v1730
        %v1732 = vmax.f32 %v1668, %v1682
        %v1733 = vmax.f32 %v1669, %v1689
        %v1734 = vmax.f32 %v1670, %v1696
        %v1735 = vmax.f32 %v1671, %v1703
        %v1736 = vmax.f32 %v1672, %v1710
        %v1737 = vmax.f32 %v1673, %v1717
        %v1738 = vmax.f32 %v1674, %v1724
        %v1739 = vmax.f32 %v1675, %v1731
        %1740 = vst [vmem:[#allocation2] sm:$0xff] %v1732
        %1741 = vst [vmem:[#allocation2 + $0x8] sm:$0xff] %v1733
        %1742 = vst [vmem:[#allocation2 + $0x10] sm:$0xff] %v1734
        %1743 = vst [vmem:[#allocation2 + $0x18] sm:$0xff] %v1735
        %1744 = vst [vmem:[#allocation2 + $0x20] sm:$0xff] %v1736
        %1745 = vst [vmem:[#allocation2 + $0x28] sm:$0xff] %v1737
        %1746 = vst [vmem:[#allocation2 + $0x30] sm:$0xff] %v1738
        %1747 = vst [vmem:[#allocation2 + $0x38] sm:$0xff] %v1739
        // Predicated region
        $region129: #{tpu_custom_call.1} parent=87 // pred_check
          %p1748 = pneg %p699
        $region130: #{tpu_custom_call.1} parent=87 // pred_check_branch
          %1750 = sbr.rel (%p1748) target = $region132
        $region131: #{tpu_custom_call.1} parent=87 // pred_region
          %v1751 = vld [vmem:[#allocation2] sm:$0xff]
          %v1752 = vld [vmem:[#allocation2 + $0x8] sm:$0xff]
          %v1753 = vld [vmem:[#allocation2 + $0x10] sm:$0xff]
          %v1754 = vld [vmem:[#allocation2 + $0x18] sm:$0xff]
          %v1755 = vld [vmem:[#allocation2 + $0x20] sm:$0xff]
          %v1756 = vld [vmem:[#allocation2 + $0x28] sm:$0xff]
          %v1757 = vld [vmem:[#allocation2 + $0x30] sm:$0xff]
          %v1758 = vld [vmem:[#allocation2 + $0x38] sm:$0xff]
          %v1759 = vpack.c.bf16 %v1751, %v1751
          %v1760 = vpack.c.bf16 %v1752, %v1752
          %v1761 = vpack.c.bf16 %v1753, %v1753
          %v1762 = vpack.c.bf16 %v1754, %v1754
          %v1763 = vpack.c.bf16 %v1755, %v1755
          %v1764 = vpack.c.bf16 %v1756, %v1756
          %v1765 = vpack.c.bf16 %v1757, %v1757
          %v1766 = vpack.c.bf16 %v1758, %v1758
          %v1767 = vld [vmem:[#allocation14] sm:$0xff]
          %v1768 = vld [vmem:[#allocation14 + $0x8] sm:$0xff]
          %v1769 = vld [vmem:[#allocation14 + $0x10] sm:$0xff]
          %v1770 = vld [vmem:[#allocation14 + $0x18] sm:$0xff]
          %v1771 = vld [vmem:[#allocation14 + $0x20] sm:$0xff]
          %v1772 = vld [vmem:[#allocation14 + $0x28] sm:$0xff]
          %v1773 = vld [vmem:[#allocation14 + $0x30] sm:$0xff]
          %v1774 = vld [vmem:[#allocation14 + $0x38] sm:$0xff]
          %v1775 = vld [vmem:[#allocation14 + $0x40] sm:$0xff]
          %v1776 = vld [vmem:[#allocation14 + $0x48] sm:$0xff]
          %v1777 = vld [vmem:[#allocation14 + $0x50] sm:$0xff]
          %v1778 = vld [vmem:[#allocation14 + $0x58] sm:$0xff]
          %v1779 = vld [vmem:[#allocation14 + $0x60] sm:$0xff]
          %v1780 = vld [vmem:[#allocation14 + $0x68] sm:$0xff]
          %v1781 = vld [vmem:[#allocation14 + $0x70] sm:$0xff]
          %v1782 = vld [vmem:[#allocation14 + $0x78] sm:$0xff]
          %v1783 = vld [vmem:[#allocation14 + $0x80] sm:$0xff]
          %v1784 = vld [vmem:[#allocation14 + $0x88] sm:$0xff]
          %v1785 = vld [vmem:[#allocation14 + $0x90] sm:$0xff]
          %v1786 = vld [vmem:[#allocation14 + $0x98] sm:$0xff]
          %v1787 = vld [vmem:[#allocation14 + $0xa0] sm:$0xff]
          %v1788 = vld [vmem:[#allocation14 + $0xa8] sm:$0xff]
          %v1789 = vld [vmem:[#allocation14 + $0xb0] sm:$0xff]
          %v1790 = vld [vmem:[#allocation14 + $0xb8] sm:$0xff]
          %v1791 = vld [vmem:[#allocation14 + $0xc0] sm:$0xff]
          %v1792 = vld [vmem:[#allocation14 + $0xc8] sm:$0xff]
          %v1793 = vld [vmem:[#allocation14 + $0xd0] sm:$0xff]
          %v1794 = vld [vmem:[#allocation14 + $0xd8] sm:$0xff]
          %v1795 = vld [vmem:[#allocation14 + $0xe0] sm:$0xff]
          %v1796 = vld [vmem:[#allocation14 + $0xe8] sm:$0xff]
          %v1797 = vld [vmem:[#allocation14 + $0xf0] sm:$0xff]
          %v1798 = vld [vmem:[#allocation14 + $0xf8] sm:$0xff]
          %v1799 = vld [vmem:[#allocation14 + $0x100] sm:$0xff]
          %v1800 = vld [vmem:[#allocation14 + $0x108] sm:$0xff]
          %v1801 = vld [vmem:[#allocation14 + $0x110] sm:$0xff]
          %v1802 = vld [vmem:[#allocation14 + $0x118] sm:$0xff]
          %v1803 = vld [vmem:[#allocation14 + $0x120] sm:$0xff]
          %v1804 = vld [vmem:[#allocation14 + $0x128] sm:$0xff]
          %v1805 = vld [vmem:[#allocation14 + $0x130] sm:$0xff]
          %v1806 = vld [vmem:[#allocation14 + $0x138] sm:$0xff]
          %v1807 = vld [vmem:[#allocation14 + $0x140] sm:$0xff]
          %v1808 = vld [vmem:[#allocation14 + $0x148] sm:$0xff]
          %v1809 = vld [vmem:[#allocation14 + $0x150] sm:$0xff]
          %v1810 = vld [vmem:[#allocation14 + $0x158] sm:$0xff]
          %v1811 = vld [vmem:[#allocation14 + $0x160] sm:$0xff]
          %v1812 = vld [vmem:[#allocation14 + $0x168] sm:$0xff]
          %v1813 = vld [vmem:[#allocation14 + $0x170] sm:$0xff]
          %v1814 = vld [vmem:[#allocation14 + $0x178] sm:$0xff]
          %v1815 = vld [vmem:[#allocation14 + $0x180] sm:$0xff]
          %v1816 = vld [vmem:[#allocation14 + $0x188] sm:$0xff]
          %v1817 = vld [vmem:[#allocation14 + $0x190] sm:$0xff]
          %v1818 = vld [vmem:[#allocation14 + $0x198] sm:$0xff]
          %v1819 = vld [vmem:[#allocation14 + $0x1a0] sm:$0xff]
          %v1820 = vld [vmem:[#allocation14 + $0x1a8] sm:$0xff]
          %v1821 = vld [vmem:[#allocation14 + $0x1b0] sm:$0xff]
          %v1822 = vld [vmem:[#allocation14 + $0x1b8] sm:$0xff]
          %v1823 = vld [vmem:[#allocation14 + $0x1c0] sm:$0xff]
          %v1824 = vld [vmem:[#allocation14 + $0x1c8] sm:$0xff]
          %v1825 = vld [vmem:[#allocation14 + $0x1d0] sm:$0xff]
          %v1826 = vld [vmem:[#allocation14 + $0x1d8] sm:$0xff]
          %v1827 = vld [vmem:[#allocation14 + $0x1e0] sm:$0xff]
          %v1828 = vld [vmem:[#allocation14 + $0x1e8] sm:$0xff]
          %v1829 = vld [vmem:[#allocation14 + $0x1f0] sm:$0xff]
          %v1830 = vld [vmem:[#allocation14 + $0x1f8] sm:$0xff]
          %v1831 = vld [vmem:[#allocation14 + $0x200] sm:$0xff]
          %v1832 = vld [vmem:[#allocation14 + $0x208] sm:$0xff]
          %v1833 = vld [vmem:[#allocation14 + $0x210] sm:$0xff]
          %v1834 = vld [vmem:[#allocation14 + $0x218] sm:$0xff]
          %v1835 = vld [vmem:[#allocation14 + $0x220] sm:$0xff]
          %v1836 = vld [vmem:[#allocation14 + $0x228] sm:$0xff]
          %v1837 = vld [vmem:[#allocation14 + $0x230] sm:$0xff]
          %v1838 = vld [vmem:[#allocation14 + $0x238] sm:$0xff]
          %v1839 = vld [vmem:[#allocation14 + $0x240] sm:$0xff]
          %v1840 = vld [vmem:[#allocation14 + $0x248] sm:$0xff]
          %v1841 = vld [vmem:[#allocation14 + $0x250] sm:$0xff]
          %v1842 = vld [vmem:[#allocation14 + $0x258] sm:$0xff]
          %v1843 = vld [vmem:[#allocation14 + $0x260] sm:$0xff]
          %v1844 = vld [vmem:[#allocation14 + $0x268] sm:$0xff]
          %v1845 = vld [vmem:[#allocation14 + $0x270] sm:$0xff]
          %v1846 = vld [vmem:[#allocation14 + $0x278] sm:$0xff]
          %v1847 = vld [vmem:[#allocation14 + $0x280] sm:$0xff]
          %v1848 = vld [vmem:[#allocation14 + $0x288] sm:$0xff]
          %v1849 = vld [vmem:[#allocation14 + $0x290] sm:$0xff]
          %v1850 = vld [vmem:[#allocation14 + $0x298] sm:$0xff]
          %v1851 = vld [vmem:[#allocation14 + $0x2a0] sm:$0xff]
          %v1852 = vld [vmem:[#allocation14 + $0x2a8] sm:$0xff]
          %v1853 = vld [vmem:[#allocation14 + $0x2b0] sm:$0xff]
          %v1854 = vld [vmem:[#allocation14 + $0x2b8] sm:$0xff]
          %v1855 = vld [vmem:[#allocation14 + $0x2c0] sm:$0xff]
          %v1856 = vld [vmem:[#allocation14 + $0x2c8] sm:$0xff]
          %v1857 = vld [vmem:[#allocation14 + $0x2d0] sm:$0xff]
          %v1858 = vld [vmem:[#allocation14 + $0x2d8] sm:$0xff]
          %v1859 = vld [vmem:[#allocation14 + $0x2e0] sm:$0xff]
          %v1860 = vld [vmem:[#allocation14 + $0x2e8] sm:$0xff]
          %v1861 = vld [vmem:[#allocation14 + $0x2f0] sm:$0xff]
          %v1862 = vld [vmem:[#allocation14 + $0x2f8] sm:$0xff]
          %v1863 = vld [vmem:[#allocation14 + $0x300] sm:$0xff]
          %v1864 = vld [vmem:[#allocation14 + $0x308] sm:$0xff]
          %v1865 = vld [vmem:[#allocation14 + $0x310] sm:$0xff]
          %v1866 = vld [vmem:[#allocation14 + $0x318] sm:$0xff]
          %v1867 = vld [vmem:[#allocation14 + $0x320] sm:$0xff]
          %v1868 = vld [vmem:[#allocation14 + $0x328] sm:$0xff]
          %v1869 = vld [vmem:[#allocation14 + $0x330] sm:$0xff]
          %v1870 = vld [vmem:[#allocation14 + $0x338] sm:$0xff]
          %v1871 = vld [vmem:[#allocation14 + $0x340] sm:$0xff]
          %v1872 = vld [vmem:[#allocation14 + $0x348] sm:$0xff]
          %v1873 = vld [vmem:[#allocation14 + $0x350] sm:$0xff]
          %v1874 = vld [vmem:[#allocation14 + $0x358] sm:$0xff]
          %v1875 = vld [vmem:[#allocation14 + $0x360] sm:$0xff]
          %v1876 = vld [vmem:[#allocation14 + $0x368] sm:$0xff]
          %v1877 = vld [vmem:[#allocation14 + $0x370] sm:$0xff]
          %v1878 = vld [vmem:[#allocation14 + $0x378] sm:$0xff]
          %v1879 = vld [vmem:[#allocation14 + $0x380] sm:$0xff]
          %v1880 = vld [vmem:[#allocation14 + $0x388] sm:$0xff]
          %v1881 = vld [vmem:[#allocation14 + $0x390] sm:$0xff]
          %v1882 = vld [vmem:[#allocation14 + $0x398] sm:$0xff]
          %v1883 = vld [vmem:[#allocation14 + $0x3a0] sm:$0xff]
          %v1884 = vld [vmem:[#allocation14 + $0x3a8] sm:$0xff]
          %v1885 = vld [vmem:[#allocation14 + $0x3b0] sm:$0xff]
          %v1886 = vld [vmem:[#allocation14 + $0x3b8] sm:$0xff]
          %v1887 = vld [vmem:[#allocation14 + $0x3c0] sm:$0xff]
          %v1888 = vld [vmem:[#allocation14 + $0x3c8] sm:$0xff]
          %v1889 = vld [vmem:[#allocation14 + $0x3d0] sm:$0xff]
          %v1890 = vld [vmem:[#allocation14 + $0x3d8] sm:$0xff]
          %v1891 = vld [vmem:[#allocation14 + $0x3e0] sm:$0xff]
          %v1892 = vld [vmem:[#allocation14 + $0x3e8] sm:$0xff]
          %v1893 = vld [vmem:[#allocation14 + $0x3f0] sm:$0xff]
          %v1894 = vld [vmem:[#allocation14 + $0x3f8] sm:$0xff]
          %v1895 = vld [vmem:[#allocation14 + $0x400] sm:$0xff]
          %v1896 = vld [vmem:[#allocation14 + $0x408] sm:$0xff]
          %v1897 = vld [vmem:[#allocation14 + $0x410] sm:$0xff]
          %v1898 = vld [vmem:[#allocation14 + $0x418] sm:$0xff]
          %v1899 = vld [vmem:[#allocation14 + $0x420] sm:$0xff]
          %v1900 = vld [vmem:[#allocation14 + $0x428] sm:$0xff]
          %v1901 = vld [vmem:[#allocation14 + $0x430] sm:$0xff]
          %v1902 = vld [vmem:[#allocation14 + $0x438] sm:$0xff]
          %v1903 = vld [vmem:[#allocation14 + $0x440] sm:$0xff]
          %v1904 = vld [vmem:[#allocation14 + $0x448] sm:$0xff]
          %v1905 = vld [vmem:[#allocation14 + $0x450] sm:$0xff]
          %v1906 = vld [vmem:[#allocation14 + $0x458] sm:$0xff]
          %v1907 = vld [vmem:[#allocation14 + $0x460] sm:$0xff]
          %v1908 = vld [vmem:[#allocation14 + $0x468] sm:$0xff]
          %v1909 = vld [vmem:[#allocation14 + $0x470] sm:$0xff]
          %v1910 = vld [vmem:[#allocation14 + $0x478] sm:$0xff]
          %v1911 = vld [vmem:[#allocation14 + $0x480] sm:$0xff]
          %v1912 = vld [vmem:[#allocation14 + $0x488] sm:$0xff]
          %v1913 = vld [vmem:[#allocation14 + $0x490] sm:$0xff]
          %v1914 = vld [vmem:[#allocation14 + $0x498] sm:$0xff]
          %v1915 = vld [vmem:[#allocation14 + $0x4a0] sm:$0xff]
          %v1916 = vld [vmem:[#allocation14 + $0x4a8] sm:$0xff]
          %v1917 = vld [vmem:[#allocation14 + $0x4b0] sm:$0xff]
          %v1918 = vld [vmem:[#allocation14 + $0x4b8] sm:$0xff]
          %v1919 = vld [vmem:[#allocation14 + $0x4c0] sm:$0xff]
          %v1920 = vld [vmem:[#allocation14 + $0x4c8] sm:$0xff]
          %v1921 = vld [vmem:[#allocation14 + $0x4d0] sm:$0xff]
          %v1922 = vld [vmem:[#allocation14 + $0x4d8] sm:$0xff]
          %v1923 = vld [vmem:[#allocation14 + $0x4e0] sm:$0xff]
          %v1924 = vld [vmem:[#allocation14 + $0x4e8] sm:$0xff]
          %v1925 = vld [vmem:[#allocation14 + $0x4f0] sm:$0xff]
          %v1926 = vld [vmem:[#allocation14 + $0x4f8] sm:$0xff]
          %v1927 = vld [vmem:[#allocation14 + $0x500] sm:$0xff]
          %v1928 = vld [vmem:[#allocation14 + $0x508] sm:$0xff]
          %v1929 = vld [vmem:[#allocation14 + $0x510] sm:$0xff]
          %v1930 = vld [vmem:[#allocation14 + $0x518] sm:$0xff]
          %v1931 = vld [vmem:[#allocation14 + $0x520] sm:$0xff]
          %v1932 = vld [vmem:[#allocation14 + $0x528] sm:$0xff]
          %v1933 = vld [vmem:[#allocation14 + $0x530] sm:$0xff]
          %v1934 = vld [vmem:[#allocation14 + $0x538] sm:$0xff]
          %v1935 = vld [vmem:[#allocation14 + $0x540] sm:$0xff]
          %v1936 = vld [vmem:[#allocation14 + $0x548] sm:$0xff]
          %v1937 = vld [vmem:[#allocation14 + $0x550] sm:$0xff]
          %v1938 = vld [vmem:[#allocation14 + $0x558] sm:$0xff]
          %v1939 = vld [vmem:[#allocation14 + $0x560] sm:$0xff]
          %v1940 = vld [vmem:[#allocation14 + $0x568] sm:$0xff]
          %v1941 = vld [vmem:[#allocation14 + $0x570] sm:$0xff]
          %v1942 = vld [vmem:[#allocation14 + $0x578] sm:$0xff]
          %v1943 = vld [vmem:[#allocation14 + $0x580] sm:$0xff]
          %v1944 = vld [vmem:[#allocation14 + $0x588] sm:$0xff]
          %v1945 = vld [vmem:[#allocation14 + $0x590] sm:$0xff]
          %v1946 = vld [vmem:[#allocation14 + $0x598] sm:$0xff]
          %v1947 = vld [vmem:[#allocation14 + $0x5a0] sm:$0xff]
          %v1948 = vld [vmem:[#allocation14 + $0x5a8] sm:$0xff]
          %v1949 = vld [vmem:[#allocation14 + $0x5b0] sm:$0xff]
          %v1950 = vld [vmem:[#allocation14 + $0x5b8] sm:$0xff]
          %v1951 = vld [vmem:[#allocation14 + $0x5c0] sm:$0xff]
          %v1952 = vld [vmem:[#allocation14 + $0x5c8] sm:$0xff]
          %v1953 = vld [vmem:[#allocation14 + $0x5d0] sm:$0xff]
          %v1954 = vld [vmem:[#allocation14 + $0x5d8] sm:$0xff]
          %v1955 = vld [vmem:[#allocation14 + $0x5e0] sm:$0xff]
          %v1956 = vld [vmem:[#allocation14 + $0x5e8] sm:$0xff]
          %v1957 = vld [vmem:[#allocation14 + $0x5f0] sm:$0xff]
          %v1958 = vld [vmem:[#allocation14 + $0x5f8] sm:$0xff]
          %v1959 = vld [vmem:[#allocation14 + $0x600] sm:$0xff]
          %v1960 = vld [vmem:[#allocation14 + $0x608] sm:$0xff]
          %v1961 = vld [vmem:[#allocation14 + $0x610] sm:$0xff]
          %v1962 = vld [vmem:[#allocation14 + $0x618] sm:$0xff]
          %v1963 = vld [vmem:[#allocation14 + $0x620] sm:$0xff]
          %v1964 = vld [vmem:[#allocation14 + $0x628] sm:$0xff]
          %v1965 = vld [vmem:[#allocation14 + $0x630] sm:$0xff]
          %v1966 = vld [vmem:[#allocation14 + $0x638] sm:$0xff]
          %v1967 = vld [vmem:[#allocation14 + $0x640] sm:$0xff]
          %v1968 = vld [vmem:[#allocation14 + $0x648] sm:$0xff]
          %v1969 = vld [vmem:[#allocation14 + $0x650] sm:$0xff]
          %v1970 = vld [vmem:[#allocation14 + $0x658] sm:$0xff]
          %v1971 = vld [vmem:[#allocation14 + $0x660] sm:$0xff]
          %v1972 = vld [vmem:[#allocation14 + $0x668] sm:$0xff]
          %v1973 = vld [vmem:[#allocation14 + $0x670] sm:$0xff]
          %v1974 = vld [vmem:[#allocation14 + $0x678] sm:$0xff]
          %v1975 = vld [vmem:[#allocation14 + $0x680] sm:$0xff]
          %v1976 = vld [vmem:[#allocation14 + $0x688] sm:$0xff]
          %v1977 = vld [vmem:[#allocation14 + $0x690] sm:$0xff]
          %v1978 = vld [vmem:[#allocation14 + $0x698] sm:$0xff]
          %v1979 = vld [vmem:[#allocation14 + $0x6a0] sm:$0xff]
          %v1980 = vld [vmem:[#allocation14 + $0x6a8] sm:$0xff]
          %v1981 = vld [vmem:[#allocation14 + $0x6b0] sm:$0xff]
          %v1982 = vld [vmem:[#allocation14 + $0x6b8] sm:$0xff]
          %v1983 = vld [vmem:[#allocation14 + $0x6c0] sm:$0xff]
          %v1984 = vld [vmem:[#allocation14 + $0x6c8] sm:$0xff]
          %v1985 = vld [vmem:[#allocation14 + $0x6d0] sm:$0xff]
          %v1986 = vld [vmem:[#allocation14 + $0x6d8] sm:$0xff]
          %v1987 = vld [vmem:[#allocation14 + $0x6e0] sm:$0xff]
          %v1988 = vld [vmem:[#allocation14 + $0x6e8] sm:$0xff]
          %v1989 = vld [vmem:[#allocation14 + $0x6f0] sm:$0xff]
          %v1990 = vld [vmem:[#allocation14 + $0x6f8] sm:$0xff]
          %v1991 = vld [vmem:[#allocation14 + $0x700] sm:$0xff]
          %v1992 = vld [vmem:[#allocation14 + $0x708] sm:$0xff]
          %v1993 = vld [vmem:[#allocation14 + $0x710] sm:$0xff]
          %v1994 = vld [vmem:[#allocation14 + $0x718] sm:$0xff]
          %v1995 = vld [vmem:[#allocation14 + $0x720] sm:$0xff]
          %v1996 = vld [vmem:[#allocation14 + $0x728] sm:$0xff]
          %v1997 = vld [vmem:[#allocation14 + $0x730] sm:$0xff]
          %v1998 = vld [vmem:[#allocation14 + $0x738] sm:$0xff]
          %v1999 = vld [vmem:[#allocation14 + $0x740] sm:$0xff]
          %v2000 = vld [vmem:[#allocation14 + $0x748] sm:$0xff]
          %v2001 = vld [vmem:[#allocation14 + $0x750] sm:$0xff]
          %v2002 = vld [vmem:[#allocation14 + $0x758] sm:$0xff]
          %v2003 = vld [vmem:[#allocation14 + $0x760] sm:$0xff]
          %v2004 = vld [vmem:[#allocation14 + $0x768] sm:$0xff]
          %v2005 = vld [vmem:[#allocation14 + $0x770] sm:$0xff]
          %v2006 = vld [vmem:[#allocation14 + $0x778] sm:$0xff]
          %v2007 = vld [vmem:[#allocation14 + $0x780] sm:$0xff]
          %v2008 = vld [vmem:[#allocation14 + $0x788] sm:$0xff]
          %v2009 = vld [vmem:[#allocation14 + $0x790] sm:$0xff]
          %v2010 = vld [vmem:[#allocation14 + $0x798] sm:$0xff]
          %v2011 = vld [vmem:[#allocation14 + $0x7a0] sm:$0xff]
          %v2012 = vld [vmem:[#allocation14 + $0x7a8] sm:$0xff]
          %v2013 = vld [vmem:[#allocation14 + $0x7b0] sm:$0xff]
          %v2014 = vld [vmem:[#allocation14 + $0x7b8] sm:$0xff]
          %v2015 = vld [vmem:[#allocation14 + $0x7c0] sm:$0xff]
          %v2016 = vld [vmem:[#allocation14 + $0x7c8] sm:$0xff]
          %v2017 = vld [vmem:[#allocation14 + $0x7d0] sm:$0xff]
          %v2018 = vld [vmem:[#allocation14 + $0x7d8] sm:$0xff]
          %v2019 = vld [vmem:[#allocation14 + $0x7e0] sm:$0xff]
          %v2020 = vld [vmem:[#allocation14 + $0x7e8] sm:$0xff]
          %v2021 = vld [vmem:[#allocation14 + $0x7f0] sm:$0xff]
          %v2022 = vld [vmem:[#allocation14 + $0x7f8] sm:$0xff]
          %v2023 = vld [vmem:[%s12] sm:$0xf]
          %v2025 = vlaneseq
          %v2026 = vshrl.u32 %v2025, 7
          %v2027 = vsub.s32 0, %v2026
          %v2028 = vrot.slane %v2023, %v2027
          %v2029 = vlaneseq
          %v2030 = vshrl.u32 %v2029, 7
          %v2031 = vsub.s32 1, %v2030
          %v2032 = vrot.slane %v2023, %v2031
          %v2033 = vlaneseq
          %v2034 = vshrl.u32 %v2033, 7
          %v2035 = vsub.s32 2, %v2034
          %v2036 = vrot.slane %v2023, %v2035
          %v2037 = vlaneseq
          %v2038 = vshrl.u32 %v2037, 7
          %v2039 = vsub.s32 3, %v2038
          %v2040 = vrot.slane %v2023, %v2039
          %v2301 = vunpack.c.l.b16 %v1767
          %v2302 = vunpack.c.h.b16 %v1767
          %v2303 = vunpack.c.l.b16 %v1768
          %v2304 = vunpack.c.h.b16 %v1768
          %v2305 = vunpack.c.l.b16 %v1769
          %v2306 = vunpack.c.h.b16 %v1769
          %v2307 = vunpack.c.l.b16 %v1770
          %v2308 = vunpack.c.h.b16 %v1770
          %v2309 = vunpack.c.l.b16 %v1771
          %v2310 = vunpack.c.h.b16 %v1771
          %v2311 = vunpack.c.l.b16 %v1772
          %v2312 = vunpack.c.h.b16 %v1772
          %v2313 = vunpack.c.l.b16 %v1773
          %v2314 = vunpack.c.h.b16 %v1773
          %v2315 = vunpack.c.l.b16 %v1774
          %v2316 = vunpack.c.h.b16 %v1774
          %v2317 = vunpack.c.l.b16 %v1775
          %v2318 = vunpack.c.h.b16 %v1775
          %v2319 = vunpack.c.l.b16 %v1776
          %v2320 = vunpack.c.h.b16 %v1776
          %v2321 = vunpack.c.l.b16 %v1777
          %v2322 = vunpack.c.h.b16 %v1777
          %v2323 = vunpack.c.l.b16 %v1778
          %v2324 = vunpack.c.h.b16 %v1778
          %v2325 = vunpack.c.l.b16 %v1779
          %v2326 = vunpack.c.h.b16 %v1779
          %v2327 = vunpack.c.l.b16 %v1780
          %v2328 = vunpack.c.h.b16 %v1780
          %v2329 = vunpack.c.l.b16 %v1781
          %v2330 = vunpack.c.h.b16 %v1781
          %v2331 = vunpack.c.l.b16 %v1782
          %v2332 = vunpack.c.h.b16 %v1782
          %v2333 = vunpack.c.l.b16 %v1783
          %v2334 = vunpack.c.h.b16 %v1783
          %v2335 = vunpack.c.l.b16 %v1784
          %v2336 = vunpack.c.h.b16 %v1784
          %v2337 = vunpack.c.l.b16 %v1785
          %v2338 = vunpack.c.h.b16 %v1785
          %v2339 = vunpack.c.l.b16 %v1786
          %v2340 = vunpack.c.h.b16 %v1786
          %v2341 = vunpack.c.l.b16 %v1787
          %v2342 = vunpack.c.h.b16 %v1787
          %v2343 = vunpack.c.l.b16 %v1788
          %v2344 = vunpack.c.h.b16 %v1788
          %v2345 = vunpack.c.l.b16 %v1789
          %v2346 = vunpack.c.h.b16 %v1789
          %v2347 = vunpack.c.l.b16 %v1790
          %v2348 = vunpack.c.h.b16 %v1790
          %v2349 = vunpack.c.l.b16 %v1791
          %v2350 = vunpack.c.h.b16 %v1791
          %v2351 = vunpack.c.l.b16 %v1792
          %v2352 = vunpack.c.h.b16 %v1792
          %v2353 = vunpack.c.l.b16 %v1793
          %v2354 = vunpack.c.h.b16 %v1793
          %v2355 = vunpack.c.l.b16 %v1794
          %v2356 = vunpack.c.h.b16 %v1794
          %v2357 = vunpack.c.l.b16 %v1795
          %v2358 = vunpack.c.h.b16 %v1795
          %v2359 = vunpack.c.l.b16 %v1796
          %v2360 = vunpack.c.h.b16 %v1796
          %v2361 = vunpack.c.l.b16 %v1797
          %v2362 = vunpack.c.h.b16 %v1797
          %v2363 = vunpack.c.l.b16 %v1798
          %v2364 = vunpack.c.h.b16 %v1798
          %v2365 = vunpack.c.l.b16 %v1799
          %v2366 = vunpack.c.h.b16 %v1799
          %v2367 = vunpack.c.l.b16 %v1800
          %v2368 = vunpack.c.h.b16 %v1800
          %v2369 = vunpack.c.l.b16 %v1801
          %v2370 = vunpack.c.h.b16 %v1801
          %v2371 = vunpack.c.l.b16 %v1802
          %v2372 = vunpack.c.h.b16 %v1802
          %v2373 = vunpack.c.l.b16 %v1803
          %v2374 = vunpack.c.h.b16 %v1803
          %v2375 = vunpack.c.l.b16 %v1804
          %v2376 = vunpack.c.h.b16 %v1804
          %v2377 = vunpack.c.l.b16 %v1805
          %v2378 = vunpack.c.h.b16 %v1805
          %v2379 = vunpack.c.l.b16 %v1806
          %v2380 = vunpack.c.h.b16 %v1806
          %v2381 = vunpack.c.l.b16 %v1807
          %v2382 = vunpack.c.h.b16 %v1807
          %v2383 = vunpack.c.l.b16 %v1808
          %v2384 = vunpack.c.h.b16 %v1808
          %v2385 = vunpack.c.l.b16 %v1809
          %v2386 = vunpack.c.h.b16 %v1809
          %v2387 = vunpack.c.l.b16 %v1810
          %v2388 = vunpack.c.h.b16 %v1810
          %v2389 = vunpack.c.l.b16 %v1811
          %v2390 = vunpack.c.h.b16 %v1811
          %v2391 = vunpack.c.l.b16 %v1812
          %v2392 = vunpack.c.h.b16 %v1812
          %v2393 = vunpack.c.l.b16 %v1813
          %v2394 = vunpack.c.h.b16 %v1813
          %v2395 = vunpack.c.l.b16 %v1814
          %v2396 = vunpack.c.h.b16 %v1814
          %v2397 = vunpack.c.l.b16 %v1815
          %v2398 = vunpack.c.h.b16 %v1815
          %v2399 = vunpack.c.l.b16 %v1816
          %v2400 = vunpack.c.h.b16 %v1816
          %v2401 = vunpack.c.l.b16 %v1817
          %v2402 = vunpack.c.h.b16 %v1817
          %v2403 = vunpack.c.l.b16 %v1818
          %v2404 = vunpack.c.h.b16 %v1818
          %v2405 = vunpack.c.l.b16 %v1819
          %v2406 = vunpack.c.h.b16 %v1819
          %v2407 = vunpack.c.l.b16 %v1820
          %v2408 = vunpack.c.h.b16 %v1820
          %v2409 = vunpack.c.l.b16 %v1821
          %v2410 = vunpack.c.h.b16 %v1821
          %v2411 = vunpack.c.l.b16 %v1822
          %v2412 = vunpack.c.h.b16 %v1822
          %v2413 = vunpack.c.l.b16 %v1823
          %v2414 = vunpack.c.h.b16 %v1823
          %v2415 = vunpack.c.l.b16 %v1824
          %v2416 = vunpack.c.h.b16 %v1824
          %v2417 = vunpack.c.l.b16 %v1825
          %v2418 = vunpack.c.h.b16 %v1825
          %v2419 = vunpack.c.l.b16 %v1826
          %v2420 = vunpack.c.h.b16 %v1826
          %v2421 = vunpack.c.l.b16 %v1827
          %v2422 = vunpack.c.h.b16 %v1827
          %v2423 = vunpack.c.l.b16 %v1828
          %v2424 = vunpack.c.h.b16 %v1828
          %v2425 = vunpack.c.l.b16 %v1829
          %v2426 = vunpack.c.h.b16 %v1829
          %v2427 = vunpack.c.l.b16 %v1830
          %v2428 = vunpack.c.h.b16 %v1830
          %v2429 = vunpack.c.l.b16 %v1831
          %v2430 = vunpack.c.h.b16 %v1831
          %v2431 = vunpack.c.l.b16 %v1832
          %v2432 = vunpack.c.h.b16 %v1832
          %v2433 = vunpack.c.l.b16 %v1833
          %v2434 = vunpack.c.h.b16 %v1833
          %v2435 = vunpack.c.l.b16 %v1834
          %v2436 = vunpack.c.h.b16 %v1834
          %v2437 = vunpack.c.l.b16 %v1835
          %v2438 = vunpack.c.h.b16 %v1835
          %v2439 = vunpack.c.l.b16 %v1836
          %v2440 = vunpack.c.h.b16 %v1836
          %v2441 = vunpack.c.l.b16 %v1837
          %v2442 = vunpack.c.h.b16 %v1837
          %v2443 = vunpack.c.l.b16 %v1838
          %v2444 = vunpack.c.h.b16 %v1838
          %v2445 = vunpack.c.l.b16 %v1839
          %v2446 = vunpack.c.h.b16 %v1839
          %v2447 = vunpack.c.l.b16 %v1840
          %v2448 = vunpack.c.h.b16 %v1840
          %v2449 = vunpack.c.l.b16 %v1841
          %v2450 = vunpack.c.h.b16 %v1841
          %v2451 = vunpack.c.l.b16 %v1842
          %v2452 = vunpack.c.h.b16 %v1842
          %v2453 = vunpack.c.l.b16 %v1843
          %v2454 = vunpack.c.h.b16 %v1843
          %v2455 = vunpack.c.l.b16 %v1844
          %v2456 = vunpack.c.h.b16 %v1844
          %v2457 = vunpack.c.l.b16 %v1845
          %v2458 = vunpack.c.h.b16 %v1845
          %v2459 = vunpack.c.l.b16 %v1846
          %v2460 = vunpack.c.h.b16 %v1846
          %v2461 = vunpack.c.l.b16 %v1847
          %v2462 = vunpack.c.h.b16 %v1847
          %v2463 = vunpack.c.l.b16 %v1848
          %v2464 = vunpack.c.h.b16 %v1848
          %v2465 = vunpack.c.l.b16 %v1849
          %v2466 = vunpack.c.h.b16 %v1849
          %v2467 = vunpack.c.l.b16 %v1850
          %v2468 = vunpack.c.h.b16 %v1850
          %v2469 = vunpack.c.l.b16 %v1851
          %v2470 = vunpack.c.h.b16 %v1851
          %v2471 = vunpack.c.l.b16 %v1852
          %v2472 = vunpack.c.h.b16 %v1852
          %v2473 = vunpack.c.l.b16 %v1853
          %v2474 = vunpack.c.h.b16 %v1853
          %v2475 = vunpack.c.l.b16 %v1854
          %v2476 = vunpack.c.h.b16 %v1854
          %v2477 = vunpack.c.l.b16 %v1855
          %v2478 = vunpack.c.h.b16 %v1855
          %v2479 = vunpack.c.l.b16 %v1856
          %v2480 = vunpack.c.h.b16 %v1856
          %v2481 = vunpack.c.l.b16 %v1857
          %v2482 = vunpack.c.h.b16 %v1857
          %v2483 = vunpack.c.l.b16 %v1858
          %v2484 = vunpack.c.h.b16 %v1858
          %v2485 = vunpack.c.l.b16 %v1859
          %v2486 = vunpack.c.h.b16 %v1859
          %v2487 = vunpack.c.l.b16 %v1860
          %v2488 = vunpack.c.h.b16 %v1860
          %v2489 = vunpack.c.l.b16 %v1861
          %v2490 = vunpack.c.h.b16 %v1861
          %v2491 = vunpack.c.l.b16 %v1862
          %v2492 = vunpack.c.h.b16 %v1862
          %v2493 = vunpack.c.l.b16 %v1863
          %v2494 = vunpack.c.h.b16 %v1863
          %v2495 = vunpack.c.l.b16 %v1864
          %v2496 = vunpack.c.h.b16 %v1864
          %v2497 = vunpack.c.l.b16 %v1865
          %v2498 = vunpack.c.h.b16 %v1865
          %v2499 = vunpack.c.l.b16 %v1866
          %v2500 = vunpack.c.h.b16 %v1866
          %v2501 = vunpack.c.l.b16 %v1867
          %v2502 = vunpack.c.h.b16 %v1867
          %v2503 = vunpack.c.l.b16 %v1868
          %v2504 = vunpack.c.h.b16 %v1868
          %v2505 = vunpack.c.l.b16 %v1869
          %v2506 = vunpack.c.h.b16 %v1869
          %v2507 = vunpack.c.l.b16 %v1870
          %v2508 = vunpack.c.h.b16 %v1870
          %v2509 = vunpack.c.l.b16 %v1871
          %v2510 = vunpack.c.h.b16 %v1871
          %v2511 = vunpack.c.l.b16 %v1872
          %v2512 = vunpack.c.h.b16 %v1872
          %v2513 = vunpack.c.l.b16 %v1873
          %v2514 = vunpack.c.h.b16 %v1873
          %v2515 = vunpack.c.l.b16 %v1874
          %v2516 = vunpack.c.h.b16 %v1874
          %v2517 = vunpack.c.l.b16 %v1875
          %v2518 = vunpack.c.h.b16 %v1875
          %v2519 = vunpack.c.l.b16 %v1876
          %v2520 = vunpack.c.h.b16 %v1876
          %v2521 = vunpack.c.l.b16 %v1877
          %v2522 = vunpack.c.h.b16 %v1877
          %v2523 = vunpack.c.l.b16 %v1878
          %v2524 = vunpack.c.h.b16 %v1878
          %v2525 = vunpack.c.l.b16 %v1879
          %v2526 = vunpack.c.h.b16 %v1879
          %v2527 = vunpack.c.l.b16 %v1880
          %v2528 = vunpack.c.h.b16 %v1880
          %v2529 = vunpack.c.l.b16 %v1881
          %v2530 = vunpack.c.h.b16 %v1881
          %v2531 = vunpack.c.l.b16 %v1882
          %v2532 = vunpack.c.h.b16 %v1882
          %v2533 = vunpack.c.l.b16 %v1883
          %v2534 = vunpack.c.h.b16 %v1883
          %v2535 = vunpack.c.l.b16 %v1884
          %v2536 = vunpack.c.h.b16 %v1884
          %v2537 = vunpack.c.l.b16 %v1885
          %v2538 = vunpack.c.h.b16 %v1885
          %v2539 = vunpack.c.l.b16 %v1886
          %v2540 = vunpack.c.h.b16 %v1886
          %v2541 = vunpack.c.l.b16 %v1887
          %v2542 = vunpack.c.h.b16 %v1887
          %v2543 = vunpack.c.l.b16 %v1888
          %v2544 = vunpack.c.h.b16 %v1888
          %v2545 = vunpack.c.l.b16 %v1889
          %v2546 = vunpack.c.h.b16 %v1889
          %v2547 = vunpack.c.l.b16 %v1890
          %v2548 = vunpack.c.h.b16 %v1890
          %v2549 = vunpack.c.l.b16 %v1891
          %v2550 = vunpack.c.h.b16 %v1891
          %v2551 = vunpack.c.l.b16 %v1892
          %v2552 = vunpack.c.h.b16 %v1892
          %v2553 = vunpack.c.l.b16 %v1893
          %v2554 = vunpack.c.h.b16 %v1893
          %v2555 = vunpack.c.l.b16 %v1894
          %v2556 = vunpack.c.h.b16 %v1894
          %v2557 = vunpack.c.l.b16 %v1895
          %v2558 = vunpack.c.h.b16 %v1895
          %v2559 = vunpack.c.l.b16 %v1896
          %v2560 = vunpack.c.h.b16 %v1896
          %v2561 = vunpack.c.l.b16 %v1897
          %v2562 = vunpack.c.h.b16 %v1897
          %v2563 = vunpack.c.l.b16 %v1898
          %v2564 = vunpack.c.h.b16 %v1898
          %v2565 = vunpack.c.l.b16 %v1899
          %v2566 = vunpack.c.h.b16 %v1899
          %v2567 = vunpack.c.l.b16 %v1900
          %v2568 = vunpack.c.h.b16 %v1900
          %v2569 = vunpack.c.l.b16 %v1901
          %v2570 = vunpack.c.h.b16 %v1901
          %v2571 = vunpack.c.l.b16 %v1902
          %v2572 = vunpack.c.h.b16 %v1902
          %v2573 = vunpack.c.l.b16 %v1903
          %v2574 = vunpack.c.h.b16 %v1903
          %v2575 = vunpack.c.l.b16 %v1904
          %v2576 = vunpack.c.h.b16 %v1904
          %v2577 = vunpack.c.l.b16 %v1905
          %v2578 = vunpack.c.h.b16 %v1905
          %v2579 = vunpack.c.l.b16 %v1906
          %v2580 = vunpack.c.h.b16 %v1906
          %v2581 = vunpack.c.l.b16 %v1907
          %v2582 = vunpack.c.h.b16 %v1907
          %v2583 = vunpack.c.l.b16 %v1908
          %v2584 = vunpack.c.h.b16 %v1908
          %v2585 = vunpack.c.l.b16 %v1909
          %v2586 = vunpack.c.h.b16 %v1909
          %v2587 = vunpack.c.l.b16 %v1910
          %v2588 = vunpack.c.h.b16 %v1910
          %v2589 = vunpack.c.l.b16 %v1911
          %v2590 = vunpack.c.h.b16 %v1911
          %v2591 = vunpack.c.l.b16 %v1912
          %v2592 = vunpack.c.h.b16 %v1912
          %v2593 = vunpack.c.l.b16 %v1913
          %v2594 = vunpack.c.h.b16 %v1913
          %v2595 = vunpack.c.l.b16 %v1914
          %v2596 = vunpack.c.h.b16 %v1914
          %v2597 = vunpack.c.l.b16 %v1915
          %v2598 = vunpack.c.h.b16 %v1915
          %v2599 = vunpack.c.l.b16 %v1916
          %v2600 = vunpack.c.h.b16 %v1916
          %v2601 = vunpack.c.l.b16 %v1917
          %v2602 = vunpack.c.h.b16 %v1917
          %v2603 = vunpack.c.l.b16 %v1918
          %v2604 = vunpack.c.h.b16 %v1918
          %v2605 = vunpack.c.l.b16 %v1919
          %v2606 = vunpack.c.h.b16 %v1919
          %v2607 = vunpack.c.l.b16 %v1920
          %v2608 = vunpack.c.h.b16 %v1920
          %v2609 = vunpack.c.l.b16 %v1921
          %v2610 = vunpack.c.h.b16 %v1921
          %v2611 = vunpack.c.l.b16 %v1922
          %v2612 = vunpack.c.h.b16 %v1922
          %v2613 = vunpack.c.l.b16 %v1923
          %v2614 = vunpack.c.h.b16 %v1923
          %v2615 = vunpack.c.l.b16 %v1924
          %v2616 = vunpack.c.h.b16 %v1924
          %v2617 = vunpack.c.l.b16 %v1925
          %v2618 = vunpack.c.h.b16 %v1925
          %v2619 = vunpack.c.l.b16 %v1926
          %v2620 = vunpack.c.h.b16 %v1926
          %v2621 = vunpack.c.l.b16 %v1927
          %v2622 = vunpack.c.h.b16 %v1927
          %v2623 = vunpack.c.l.b16 %v1928
          %v2624 = vunpack.c.h.b16 %v1928
          %v2625 = vunpack.c.l.b16 %v1929
          %v2626 = vunpack.c.h.b16 %v1929
          %v2627 = vunpack.c.l.b16 %v1930
          %v2628 = vunpack.c.h.b16 %v1930
          %v2629 = vunpack.c.l.b16 %v1931
          %v2630 = vunpack.c.h.b16 %v1931
          %v2631 = vunpack.c.l.b16 %v1932
          %v2632 = vunpack.c.h.b16 %v1932
          %v2633 = vunpack.c.l.b16 %v1933
          %v2634 = vunpack.c.h.b16 %v1933
          %v2635 = vunpack.c.l.b16 %v1934
          %v2636 = vunpack.c.h.b16 %v1934
          %v2637 = vunpack.c.l.b16 %v1935
          %v2638 = vunpack.c.h.b16 %v1935
          %v2639 = vunpack.c.l.b16 %v1936
          %v2640 = vunpack.c.h.b16 %v1936
          %v2641 = vunpack.c.l.b16 %v1937
          %v2642 = vunpack.c.h.b16 %v1937
          %v2643 = vunpack.c.l.b16 %v1938
          %v2644 = vunpack.c.h.b16 %v1938
          %v2645 = vunpack.c.l.b16 %v1939
          %v2646 = vunpack.c.h.b16 %v1939
          %v2647 = vunpack.c.l.b16 %v1940
          %v2648 = vunpack.c.h.b16 %v1940
          %v2649 = vunpack.c.l.b16 %v1941
          %v2650 = vunpack.c.h.b16 %v1941
          %v2651 = vunpack.c.l.b16 %v1942
          %v2652 = vunpack.c.h.b16 %v1942
          %v2653 = vunpack.c.l.b16 %v1943
          %v2654 = vunpack.c.h.b16 %v1943
          %v2655 = vunpack.c.l.b16 %v1944
          %v2656 = vunpack.c.h.b16 %v1944
          %v2657 = vunpack.c.l.b16 %v1945
          %v2658 = vunpack.c.h.b16 %v1945
          %v2659 = vunpack.c.l.b16 %v1946
          %v2660 = vunpack.c.h.b16 %v1946
          %v2661 = vunpack.c.l.b16 %v1947
          %v2662 = vunpack.c.h.b16 %v1947
          %v2663 = vunpack.c.l.b16 %v1948
          %v2664 = vunpack.c.h.b16 %v1948
          %v2665 = vunpack.c.l.b16 %v1949
          %v2666 = vunpack.c.h.b16 %v1949
          %v2667 = vunpack.c.l.b16 %v1950
          %v2668 = vunpack.c.h.b16 %v1950
          %v2669 = vunpack.c.l.b16 %v1951
          %v2670 = vunpack.c.h.b16 %v1951
          %v2671 = vunpack.c.l.b16 %v1952
          %v2672 = vunpack.c.h.b16 %v1952
          %v2673 = vunpack.c.l.b16 %v1953
          %v2674 = vunpack.c.h.b16 %v1953
          %v2675 = vunpack.c.l.b16 %v1954
          %v2676 = vunpack.c.h.b16 %v1954
          %v2677 = vunpack.c.l.b16 %v1955
          %v2678 = vunpack.c.h.b16 %v1955
          %v2679 = vunpack.c.l.b16 %v1956
          %v2680 = vunpack.c.h.b16 %v1956
          %v2681 = vunpack.c.l.b16 %v1957
          %v2682 = vunpack.c.h.b16 %v1957
          %v2683 = vunpack.c.l.b16 %v1958
          %v2684 = vunpack.c.h.b16 %v1958
          %v2685 = vunpack.c.l.b16 %v1959
          %v2686 = vunpack.c.h.b16 %v1959
          %v2687 = vunpack.c.l.b16 %v1960
          %v2688 = vunpack.c.h.b16 %v1960
          %v2689 = vunpack.c.l.b16 %v1961
          %v2690 = vunpack.c.h.b16 %v1961
          %v2691 = vunpack.c.l.b16 %v1962
          %v2692 = vunpack.c.h.b16 %v1962
          %v2693 = vunpack.c.l.b16 %v1963
          %v2694 = vunpack.c.h.b16 %v1963
          %v2695 = vunpack.c.l.b16 %v1964
          %v2696 = vunpack.c.h.b16 %v1964
          %v2697 = vunpack.c.l.b16 %v1965
          %v2698 = vunpack.c.h.b16 %v1965
          %v2699 = vunpack.c.l.b16 %v1966
          %v2700 = vunpack.c.h.b16 %v1966
          %v2701 = vunpack.c.l.b16 %v1967
          %v2702 = vunpack.c.h.b16 %v1967
          %v2703 = vunpack.c.l.b16 %v1968
          %v2704 = vunpack.c.h.b16 %v1968
          %v2705 = vunpack.c.l.b16 %v1969
          %v2706 = vunpack.c.h.b16 %v1969
          %v2707 = vunpack.c.l.b16 %v1970
          %v2708 = vunpack.c.h.b16 %v1970
          %v2709 = vunpack.c.l.b16 %v1971
          %v2710 = vunpack.c.h.b16 %v1971
          %v2711 = vunpack.c.l.b16 %v1972
          %v2712 = vunpack.c.h.b16 %v1972
          %v2713 = vunpack.c.l.b16 %v1973
          %v2714 = vunpack.c.h.b16 %v1973
          %v2715 = vunpack.c.l.b16 %v1974
          %v2716 = vunpack.c.h.b16 %v1974
          %v2717 = vunpack.c.l.b16 %v1975
          %v2718 = vunpack.c.h.b16 %v1975
          %v2719 = vunpack.c.l.b16 %v1976
          %v2720 = vunpack.c.h.b16 %v1976
          %v2721 = vunpack.c.l.b16 %v1977
          %v2722 = vunpack.c.h.b16 %v1977
          %v2723 = vunpack.c.l.b16 %v1978
          %v2724 = vunpack.c.h.b16 %v1978
          %v2725 = vunpack.c.l.b16 %v1979
          %v2726 = vunpack.c.h.b16 %v1979
          %v2727 = vunpack.c.l.b16 %v1980
          %v2728 = vunpack.c.h.b16 %v1980
          %v2729 = vunpack.c.l.b16 %v1981
          %v2730 = vunpack.c.h.b16 %v1981
          %v2731 = vunpack.c.l.b16 %v1982
          %v2732 = vunpack.c.h.b16 %v1982
          %v2733 = vunpack.c.l.b16 %v1983
          %v2734 = vunpack.c.h.b16 %v1983
          %v2735 = vunpack.c.l.b16 %v1984
          %v2736 = vunpack.c.h.b16 %v1984
          %v2737 = vunpack.c.l.b16 %v1985
          %v2738 = vunpack.c.h.b16 %v1985
          %v2739 = vunpack.c.l.b16 %v1986
          %v2740 = vunpack.c.h.b16 %v1986
          %v2741 = vunpack.c.l.b16 %v1987
          %v2742 = vunpack.c.h.b16 %v1987
          %v2743 = vunpack.c.l.b16 %v1988
          %v2744 = vunpack.c.h.b16 %v1988
          %v2745 = vunpack.c.l.b16 %v1989
          %v2746 = vunpack.c.h.b16 %v1989
          %v2747 = vunpack.c.l.b16 %v1990
          %v2748 = vunpack.c.h.b16 %v1990
          %v2749 = vunpack.c.l.b16 %v1991
          %v2750 = vunpack.c.h.b16 %v1991
          %v2751 = vunpack.c.l.b16 %v1992
          %v2752 = vunpack.c.h.b16 %v1992
          %v2753 = vunpack.c.l.b16 %v1993
          %v2754 = vunpack.c.h.b16 %v1993
          %v2755 = vunpack.c.l.b16 %v1994
          %v2756 = vunpack.c.h.b16 %v1994
          %v2757 = vunpack.c.l.b16 %v1995
          %v2758 = vunpack.c.h.b16 %v1995
          %v2759 = vunpack.c.l.b16 %v1996
          %v2760 = vunpack.c.h.b16 %v1996
          %v2761 = vunpack.c.l.b16 %v1997
          %v2762 = vunpack.c.h.b16 %v1997
          %v2763 = vunpack.c.l.b16 %v1998
          %v2764 = vunpack.c.h.b16 %v1998
          %v2765 = vunpack.c.l.b16 %v1999
          %v2766 = vunpack.c.h.b16 %v1999
          %v2767 = vunpack.c.l.b16 %v2000
          %v2768 = vunpack.c.h.b16 %v2000
          %v2769 = vunpack.c.l.b16 %v2001
          %v2770 = vunpack.c.h.b16 %v2001
          %v2771 = vunpack.c.l.b16 %v2002
          %v2772 = vunpack.c.h.b16 %v2002
          %v2773 = vunpack.c.l.b16 %v2003
          %v2774 = vunpack.c.h.b16 %v2003
          %v2775 = vunpack.c.l.b16 %v2004
          %v2776 = vunpack.c.h.b16 %v2004
          %v2777 = vunpack.c.l.b16 %v2005
          %v2778 = vunpack.c.h.b16 %v2005
          %v2779 = vunpack.c.l.b16 %v2006
          %v2780 = vunpack.c.h.b16 %v2006
          %v2781 = vunpack.c.l.b16 %v2007
          %v2782 = vunpack.c.h.b16 %v2007
          %v2783 = vunpack.c.l.b16 %v2008
          %v2784 = vunpack.c.h.b16 %v2008
          %v2785 = vunpack.c.l.b16 %v2009
          %v2786 = vunpack.c.h.b16 %v2009
          %v2787 = vunpack.c.l.b16 %v2010
          %v2788 = vunpack.c.h.b16 %v2010
          %v2789 = vunpack.c.l.b16 %v2011
          %v2790 = vunpack.c.h.b16 %v2011
          %v2791 = vunpack.c.l.b16 %v2012
          %v2792 = vunpack.c.h.b16 %v2012
          %v2793 = vunpack.c.l.b16 %v2013
          %v2794 = vunpack.c.h.b16 %v2013
          %v2795 = vunpack.c.l.b16 %v2014
          %v2796 = vunpack.c.h.b16 %v2014
          %v2797 = vunpack.c.l.b16 %v2015
          %v2798 = vunpack.c.h.b16 %v2015
          %v2799 = vunpack.c.l.b16 %v2016
          %v2800 = vunpack.c.h.b16 %v2016
          %v2801 = vunpack.c.l.b16 %v2017
          %v2802 = vunpack.c.h.b16 %v2017
          %v2803 = vunpack.c.l.b16 %v2018
          %v2804 = vunpack.c.h.b16 %v2018
          %v2805 = vunpack.c.l.b16 %v2019
          %v2806 = vunpack.c.h.b16 %v2019
          %v2807 = vunpack.c.l.b16 %v2020
          %v2808 = vunpack.c.h.b16 %v2020
          %v2809 = vunpack.c.l.b16 %v2021
          %v2810 = vunpack.c.h.b16 %v2021
          %v2811 = vunpack.c.l.b16 %v2022
          %v2812 = vunpack.c.h.b16 %v2022
          %v2813 = vpack.c.b16 %v2305, %v2301
          %v2814 = vpack.c.b16 %v2306, %v2302
          %v2815 = vpack.c.b16 %v2307, %v2303
          %v2816 = vpack.c.b16 %v2308, %v2304
          %v2817 = vpack.c.b16 %v2313, %v2309
          %v2818 = vpack.c.b16 %v2314, %v2310
          %v2819 = vpack.c.b16 %v2315, %v2311
          %v2820 = vpack.c.b16 %v2316, %v2312
          %v2821 = vpack.c.b16 %v2321, %v2317
          %v2822 = vpack.c.b16 %v2322, %v2318
          %v2823 = vpack.c.b16 %v2323, %v2319
          %v2824 = vpack.c.b16 %v2324, %v2320
          %v2825 = vpack.c.b16 %v2329, %v2325
          %v2826 = vpack.c.b16 %v2330, %v2326
          %v2827 = vpack.c.b16 %v2331, %v2327
          %v2828 = vpack.c.b16 %v2332, %v2328
          %v2829 = vpack.c.b16 %v2337, %v2333
          %v2830 = vpack.c.b16 %v2338, %v2334
          %v2831 = vpack.c.b16 %v2339, %v2335
          %v2832 = vpack.c.b16 %v2340, %v2336
          %v2833 = vpack.c.b16 %v2345, %v2341
          %v2834 = vpack.c.b16 %v2346, %v2342
          %v2835 = vpack.c.b16 %v2347, %v2343
          %v2836 = vpack.c.b16 %v2348, %v2344
          %v2837 = vpack.c.b16 %v2353, %v2349
          %v2838 = vpack.c.b16 %v2354, %v2350
          %v2839 = vpack.c.b16 %v2355, %v2351
          %v2840 = vpack.c.b16 %v2356, %v2352
          %v2841 = vpack.c.b16 %v2361, %v2357
          %v2842 = vpack.c.b16 %v2362, %v2358
          %v2843 = vpack.c.b16 %v2363, %v2359
          %v2844 = vpack.c.b16 %v2364, %v2360
          %v2845 = vpack.c.b16 %v2369, %v2365
          %v2846 = vpack.c.b16 %v2370, %v2366
          %v2847 = vpack.c.b16 %v2371, %v2367
          %v2848 = vpack.c.b16 %v2372, %v2368
          %v2849 = vpack.c.b16 %v2377, %v2373
          %v2850 = vpack.c.b16 %v2378, %v2374
          %v2851 = vpack.c.b16 %v2379, %v2375
          %v2852 = vpack.c.b16 %v2380, %v2376
          %v2853 = vpack.c.b16 %v2385, %v2381
          %v2854 = vpack.c.b16 %v2386, %v2382
          %v2855 = vpack.c.b16 %v2387, %v2383
          %v2856 = vpack.c.b16 %v2388, %v2384
          %v2857 = vpack.c.b16 %v2393, %v2389
          %v2858 = vpack.c.b16 %v2394, %v2390
          %v2859 = vpack.c.b16 %v2395, %v2391
          %v2860 = vpack.c.b16 %v2396, %v2392
          %v2861 = vpack.c.b16 %v2401, %v2397
          %v2862 = vpack.c.b16 %v2402, %v2398
          %v2863 = vpack.c.b16 %v2403, %v2399
          %v2864 = vpack.c.b16 %v2404, %v2400
          %v2865 = vpack.c.b16 %v2409, %v2405
          %v2866 = vpack.c.b16 %v2410, %v2406
          %v2867 = vpack.c.b16 %v2411, %v2407
          %v2868 = vpack.c.b16 %v2412, %v2408
          %v2869 = vpack.c.b16 %v2417, %v2413
          %v2870 = vpack.c.b16 %v2418, %v2414
          %v2871 = vpack.c.b16 %v2419, %v2415
          %v2872 = vpack.c.b16 %v2420, %v2416
          %v2873 = vpack.c.b16 %v2425, %v2421
          %v2874 = vpack.c.b16 %v2426, %v2422
          %v2875 = vpack.c.b16 %v2427, %v2423
          %v2876 = vpack.c.b16 %v2428, %v2424
          %v2877 = vpack.c.b16 %v2433, %v2429
          %v2878 = vpack.c.b16 %v2434, %v2430
          %v2879 = vpack.c.b16 %v2435, %v2431
          %v2880 = vpack.c.b16 %v2436, %v2432
          %v2881 = vpack.c.b16 %v2441, %v2437
          %v2882 = vpack.c.b16 %v2442, %v2438
          %v2883 = vpack.c.b16 %v2443, %v2439
          %v2884 = vpack.c.b16 %v2444, %v2440
          %v2885 = vpack.c.b16 %v2449, %v2445
          %v2886 = vpack.c.b16 %v2450, %v2446
          %v2887 = vpack.c.b16 %v2451, %v2447
          %v2888 = vpack.c.b16 %v2452, %v2448
          %v2889 = vpack.c.b16 %v2457, %v2453
          %v2890 = vpack.c.b16 %v2458, %v2454
          %v2891 = vpack.c.b16 %v2459, %v2455
          %v2892 = vpack.c.b16 %v2460, %v2456
          %v2893 = vpack.c.b16 %v2465, %v2461
          %v2894 = vpack.c.b16 %v2466, %v2462
          %v2895 = vpack.c.b16 %v2467, %v2463
          %v2896 = vpack.c.b16 %v2468, %v2464
          %v2897 = vpack.c.b16 %v2473, %v2469
          %v2898 = vpack.c.b16 %v2474, %v2470
          %v2899 = vpack.c.b16 %v2475, %v2471
          %v2900 = vpack.c.b16 %v2476, %v2472
          %v2901 = vpack.c.b16 %v2481, %v2477
          %v2902 = vpack.c.b16 %v2482, %v2478
          %v2903 = vpack.c.b16 %v2483, %v2479
          %v2904 = vpack.c.b16 %v2484, %v2480
          %v2905 = vpack.c.b16 %v2489, %v2485
          %v2906 = vpack.c.b16 %v2490, %v2486
          %v2907 = vpack.c.b16 %v2491, %v2487
          %v2908 = vpack.c.b16 %v2492, %v2488
          %v2909 = vpack.c.b16 %v2497, %v2493
          %v2910 = vpack.c.b16 %v2498, %v2494
          %v2911 = vpack.c.b16 %v2499, %v2495
          %v2912 = vpack.c.b16 %v2500, %v2496
          %v2913 = vpack.c.b16 %v2505, %v2501
          %v2914 = vpack.c.b16 %v2506, %v2502
          %v2915 = vpack.c.b16 %v2507, %v2503
          %v2916 = vpack.c.b16 %v2508, %v2504
          %v2917 = vpack.c.b16 %v2513, %v2509
          %v2918 = vpack.c.b16 %v2514, %v2510
          %v2919 = vpack.c.b16 %v2515, %v2511
          %v2920 = vpack.c.b16 %v2516, %v2512
          %v2921 = vpack.c.b16 %v2521, %v2517
          %v2922 = vpack.c.b16 %v2522, %v2518
          %v2923 = vpack.c.b16 %v2523, %v2519
          %v2924 = vpack.c.b16 %v2524, %v2520
          %v2925 = vpack.c.b16 %v2529, %v2525
          %v2926 = vpack.c.b16 %v2530, %v2526
          %v2927 = vpack.c.b16 %v2531, %v2527
          %v2928 = vpack.c.b16 %v2532, %v2528
          %v2929 = vpack.c.b16 %v2537, %v2533
          %v2930 = vpack.c.b16 %v2538, %v2534
          %v2931 = vpack.c.b16 %v2539, %v2535
          %v2932 = vpack.c.b16 %v2540, %v2536
          %v2933 = vpack.c.b16 %v2545, %v2541
          %v2934 = vpack.c.b16 %v2546, %v2542
          %v2935 = vpack.c.b16 %v2547, %v2543
          %v2936 = vpack.c.b16 %v2548, %v2544
          %v2937 = vpack.c.b16 %v2553, %v2549
          %v2938 = vpack.c.b16 %v2554, %v2550
          %v2939 = vpack.c.b16 %v2555, %v2551
          %v2940 = vpack.c.b16 %v2556, %v2552
          %v2941 = vpack.c.b16 %v2561, %v2557
          %v2942 = vpack.c.b16 %v2562, %v2558
          %v2943 = vpack.c.b16 %v2563, %v2559
          %v2944 = vpack.c.b16 %v2564, %v2560
          %v2945 = vpack.c.b16 %v2569, %v2565
          %v2946 = vpack.c.b16 %v2570, %v2566
          %v2947 = vpack.c.b16 %v2571, %v2567
          %v2948 = vpack.c.b16 %v2572, %v2568
          %v2949 = vpack.c.b16 %v2577, %v2573
          %v2950 = vpack.c.b16 %v2578, %v2574
          %v2951 = vpack.c.b16 %v2579, %v2575
          %v2952 = vpack.c.b16 %v2580, %v2576
          %v2953 = vpack.c.b16 %v2585, %v2581
          %v2954 = vpack.c.b16 %v2586, %v2582
          %v2955 = vpack.c.b16 %v2587, %v2583
          %v2956 = vpack.c.b16 %v2588, %v2584
          %v2957 = vpack.c.b16 %v2593, %v2589
          %v2958 = vpack.c.b16 %v2594, %v2590
          %v2959 = vpack.c.b16 %v2595, %v2591
          %v2960 = vpack.c.b16 %v2596, %v2592
          %v2961 = vpack.c.b16 %v2601, %v2597
          %v2962 = vpack.c.b16 %v2602, %v2598
          %v2963 = vpack.c.b16 %v2603, %v2599
          %v2964 = vpack.c.b16 %v2604, %v2600
          %v2965 = vpack.c.b16 %v2609, %v2605
          %v2966 = vpack.c.b16 %v2610, %v2606
          %v2967 = vpack.c.b16 %v2611, %v2607
          %v2968 = vpack.c.b16 %v2612, %v2608
          %v2969 = vpack.c.b16 %v2617, %v2613
          %v2970 = vpack.c.b16 %v2618, %v2614
          %v2971 = vpack.c.b16 %v2619, %v2615
          %v2972 = vpack.c.b16 %v2620, %v2616
          %v2973 = vpack.c.b16 %v2625, %v2621
          %v2974 = vpack.c.b16 %v2626, %v2622
          %v2975 = vpack.c.b16 %v2627, %v2623
          %v2976 = vpack.c.b16 %v2628, %v2624
          %v2977 = vpack.c.b16 %v2633, %v2629
          %v2978 = vpack.c.b16 %v2634, %v2630
          %v2979 = vpack.c.b16 %v2635, %v2631
          %v2980 = vpack.c.b16 %v2636, %v2632
          %v2981 = vpack.c.b16 %v2641, %v2637
          %v2982 = vpack.c.b16 %v2642, %v2638
          %v2983 = vpack.c.b16 %v2643, %v2639
          %v2984 = vpack.c.b16 %v2644, %v2640
          %v2985 = vpack.c.b16 %v2649, %v2645
          %v2986 = vpack.c.b16 %v2650, %v2646
          %v2987 = vpack.c.b16 %v2651, %v2647
          %v2988 = vpack.c.b16 %v2652, %v2648
          %v2989 = vpack.c.b16 %v2657, %v2653
          %v2990 = vpack.c.b16 %v2658, %v2654
          %v2991 = vpack.c.b16 %v2659, %v2655
          %v2992 = vpack.c.b16 %v2660, %v2656
          %v2993 = vpack.c.b16 %v2665, %v2661
          %v2994 = vpack.c.b16 %v2666, %v2662
          %v2995 = vpack.c.b16 %v2667, %v2663
          %v2996 = vpack.c.b16 %v2668, %v2664
          %v2997 = vpack.c.b16 %v2673, %v2669
          %v2998 = vpack.c.b16 %v2674, %v2670
          %v2999 = vpack.c.b16 %v2675, %v2671
          %v3000 = vpack.c.b16 %v2676, %v2672
          %v3001 = vpack.c.b16 %v2681, %v2677
          %v3002 = vpack.c.b16 %v2682, %v2678
          %v3003 = vpack.c.b16 %v2683, %v2679
          %v3004 = vpack.c.b16 %v2684, %v2680
          %v3005 = vpack.c.b16 %v2689, %v2685
          %v3006 = vpack.c.b16 %v2690, %v2686
          %v3007 = vpack.c.b16 %v2691, %v2687
          %v3008 = vpack.c.b16 %v2692, %v2688
          %v3009 = vpack.c.b16 %v2697, %v2693
          %v3010 = vpack.c.b16 %v2698, %v2694
          %v3011 = vpack.c.b16 %v2699, %v2695
          %v3012 = vpack.c.b16 %v2700, %v2696
          %v3013 = vpack.c.b16 %v2705, %v2701
          %v3014 = vpack.c.b16 %v2706, %v2702
          %v3015 = vpack.c.b16 %v2707, %v2703
          %v3016 = vpack.c.b16 %v2708, %v2704
          %v3017 = vpack.c.b16 %v2713, %v2709
          %v3018 = vpack.c.b16 %v2714, %v2710
          %v3019 = vpack.c.b16 %v2715, %v2711
          %v3020 = vpack.c.b16 %v2716, %v2712
          %v3021 = vpack.c.b16 %v2721, %v2717
          %v3022 = vpack.c.b16 %v2722, %v2718
          %v3023 = vpack.c.b16 %v2723, %v2719
          %v3024 = vpack.c.b16 %v2724, %v2720
          %v3025 = vpack.c.b16 %v2729, %v2725
          %v3026 = vpack.c.b16 %v2730, %v2726
          %v3027 = vpack.c.b16 %v2731, %v2727
          %v3028 = vpack.c.b16 %v2732, %v2728
          %v3029 = vpack.c.b16 %v2737, %v2733
          %v3030 = vpack.c.b16 %v2738, %v2734
          %v3031 = vpack.c.b16 %v2739, %v2735
          %v3032 = vpack.c.b16 %v2740, %v2736
          %v3033 = vpack.c.b16 %v2745, %v2741
          %v3034 = vpack.c.b16 %v2746, %v2742
          %v3035 = vpack.c.b16 %v2747, %v2743
          %v3036 = vpack.c.b16 %v2748, %v2744
          %v3037 = vpack.c.b16 %v2753, %v2749
          %v3038 = vpack.c.b16 %v2754, %v2750
          %v3039 = vpack.c.b16 %v2755, %v2751
          %v3040 = vpack.c.b16 %v2756, %v2752
          %v3041 = vpack.c.b16 %v2761, %v2757
          %v3042 = vpack.c.b16 %v2762, %v2758
          %v3043 = vpack.c.b16 %v2763, %v2759
          %v3044 = vpack.c.b16 %v2764, %v2760
          %v3045 = vpack.c.b16 %v2769, %v2765
          %v3046 = vpack.c.b16 %v2770, %v2766
          %v3047 = vpack.c.b16 %v2771, %v2767
          %v3048 = vpack.c.b16 %v2772, %v2768
          %v3049 = vpack.c.b16 %v2777, %v2773
          %v3050 = vpack.c.b16 %v2778, %v2774
          %v3051 = vpack.c.b16 %v2779, %v2775
          %v3052 = vpack.c.b16 %v2780, %v2776
          %v3053 = vpack.c.b16 %v2785, %v2781
          %v3054 = vpack.c.b16 %v2786, %v2782
          %v3055 = vpack.c.b16 %v2787, %v2783
          %v3056 = vpack.c.b16 %v2788, %v2784
          %v3057 = vpack.c.b16 %v2793, %v2789
          %v3058 = vpack.c.b16 %v2794, %v2790
          %v3059 = vpack.c.b16 %v2795, %v2791
          %v3060 = vpack.c.b16 %v2796, %v2792
          %v3061 = vpack.c.b16 %v2801, %v2797
          %v3062 = vpack.c.b16 %v2802, %v2798
          %v3063 = vpack.c.b16 %v2803, %v2799
          %v3064 = vpack.c.b16 %v2804, %v2800
          %v3065 = vpack.c.b16 %v2809, %v2805
          %v3066 = vpack.c.b16 %v2810, %v2806
          %v3067 = vpack.c.b16 %v2811, %v2807
          %v3068 = vpack.c.b16 %v2812, %v2808
          %3325 = vmatprep.subr.bf16.mxu0 %v2814
          %3326 = vmatpush1.bf16.msra.mxu0 %v2813
          %3327 = vmatprep.subr.bf16.mxu0 %v2818
          %3328 = vmatpush1.bf16.msra.mxu0 %v2817
          %3329 = vmatprep.subr.bf16.mxu0 %v2822
          %3330 = vmatpush1.bf16.msra.mxu0 %v2821
          %3331 = vmatprep.subr.bf16.mxu0 %v2826
          %3332 = vmatpush1.bf16.msra.mxu0 %v2825
          %3333 = vmatprep.subr.bf16.mxu0 %v2830
          %3334 = vmatpush1.bf16.msra.mxu0 %v2829
          %3335 = vmatprep.subr.bf16.mxu0 %v2834
          %3336 = vmatpush1.bf16.msra.mxu0 %v2833
          %3337 = vmatprep.subr.bf16.mxu0 %v2838
          %3338 = vmatpush1.bf16.msra.mxu0 %v2837
          %3339 = vmatprep.subr.bf16.mxu0 %v2842
          %3340 = vmatpush1.bf16.msra.mxu0 %v2841
          %3341 = vmatprep.subr.bf16.mxu0 %v2846
          %3342 = vmatpush1.bf16.msra.mxu0 %v2845
          %3343 = vmatprep.subr.bf16.mxu0 %v2850
          %3344 = vmatpush1.bf16.msra.mxu0 %v2849
          %3345 = vmatprep.subr.bf16.mxu0 %v2854
          %3346 = vmatpush1.bf16.msra.mxu0 %v2853
          %3347 = vmatprep.subr.bf16.mxu0 %v2858
          %3348 = vmatpush1.bf16.msra.mxu0 %v2857
          %3349 = vmatprep.subr.bf16.mxu0 %v2862
          %3350 = vmatpush1.bf16.msra.mxu0 %v2861
          %3351 = vmatprep.subr.bf16.mxu0 %v2866
          %3352 = vmatpush1.bf16.msra.mxu0 %v2865
          %3353 = vmatprep.subr.bf16.mxu0 %v2870
          %3354 = vmatpush1.bf16.msra.mxu0 %v2869
          %3355 = vmatprep.subr.bf16.mxu0 %v2874
          %3356 = vmatpush1.bf16.msra.mxu0 %v2873
          %3357 = vmatprep.mubr.bf16.mxu0 %v1760
          %3358 = vmatmul.mubr.bf16.gmra.mrb[0].mxu0 %v1759
          %v3359 = vpop.f32.mrb[0].mxu0
          %v3360 = vadd.f32 %v2028, %v3359
          %v3361 = vpop.f32.mrb[0].mxu0
          %v3362 = vadd.f32 %v2032, %v3361
          %v3363 = vpop.f32.mrb[0].mxu0
          %v3364 = vpop.f32.mrb[0].mxu0
          %3365 = vdwg.mxu0
          %3366 = vmatprep.subr.bf16.mxu0 %v2878
          %3367 = vmatpush1.bf16.msra.mxu0 %v2877
          %3368 = vmatprep.subr.bf16.mxu0 %v2882
          %3369 = vmatpush1.bf16.msra.mxu0 %v2881
          %3370 = vmatprep.subr.bf16.mxu0 %v2886
          %3371 = vmatpush1.bf16.msra.mxu0 %v2885
          %3372 = vmatprep.subr.bf16.mxu0 %v2890
          %3373 = vmatpush1.bf16.msra.mxu0 %v2889
          %3374 = vmatprep.subr.bf16.mxu0 %v2894
          %3375 = vmatpush1.bf16.msra.mxu0 %v2893
          %3376 = vmatprep.subr.bf16.mxu0 %v2898
          %3377 = vmatpush1.bf16.msra.mxu0 %v2897
          %3378 = vmatprep.subr.bf16.mxu0 %v2902
          %3379 = vmatpush1.bf16.msra.mxu0 %v2901
          %3380 = vmatprep.subr.bf16.mxu0 %v2906
          %3381 = vmatpush1.bf16.msra.mxu0 %v2905
          %3382 = vmatprep.subr.bf16.mxu0 %v2910
          %3383 = vmatpush1.bf16.msra.mxu0 %v2909
          %3384 = vmatprep.subr.bf16.mxu0 %v2914
          %3385 = vmatpush1.bf16.msra.mxu0 %v2913
          %3386 = vmatprep.subr.bf16.mxu0 %v2918
          %3387 = vmatpush1.bf16.msra.mxu0 %v2917
          %3388 = vmatprep.subr.bf16.mxu0 %v2922
          %3389 = vmatpush1.bf16.msra.mxu0 %v2921
          %3390 = vmatprep.subr.bf16.mxu0 %v2926
          %3391 = vmatpush1.bf16.msra.mxu0 %v2925
          %3392 = vmatprep.subr.bf16.mxu0 %v2930
          %3393 = vmatpush1.bf16.msra.mxu0 %v2929
          %3394 = vmatprep.subr.bf16.mxu0 %v2934
          %3395 = vmatpush1.bf16.msra.mxu0 %v2933
          %3396 = vmatprep.subr.bf16.mxu0 %v2938
          %3397 = vmatpush1.bf16.msra.mxu0 %v2937
          %3398 = vmatprep.mubr.bf16.mxu0 %v1762
          %3399 = vmatmul.mubr.bf16.gmra.mrb[0].mxu0 %v1761
          %v3400 = vpop.f32.mrb[0].mxu0
          %v3401 = vadd.f32 %v3360, %v3400
          %v3402 = vpop.f32.mrb[0].mxu0
          %v3403 = vadd.f32 %v3362, %v3402
          %v3404 = vpop.f32.mrb[0].mxu0
          %v3405 = vpop.f32.mrb[0].mxu0
          %3406 = vdwg.mxu0
          %3407 = vmatprep.subr.bf16.mxu0 %v2942
          %3408 = vmatpush1.bf16.msra.mxu0 %v2941
          %3409 = vmatprep.subr.bf16.mxu0 %v2946
          %3410 = vmatpush1.bf16.msra.mxu0 %v2945
          %3411 = vmatprep.subr.bf16.mxu0 %v2950
          %3412 = vmatpush1.bf16.msra.mxu0 %v2949
          %3413 = vmatprep.subr.bf16.mxu0 %v2954
          %3414 = vmatpush1.bf16.msra.mxu0 %v2953
          %3415 = vmatprep.subr.bf16.mxu0 %v2958
          %3416 = vmatpush1.bf16.msra.mxu0 %v2957
          %3417 = vmatprep.subr.bf16.mxu0 %v2962
          %3418 = vmatpush1.bf16.msra.mxu0 %v2961
          %3419 = vmatprep.subr.bf16.mxu0 %v2966
          %3420 = vmatpush1.bf16.msra.mxu0 %v2965
          %3421 = vmatprep.subr.bf16.mxu0 %v2970
          %3422 = vmatpush1.bf16.msra.mxu0 %v2969
          %3423 = vmatprep.subr.bf16.mxu0 %v2974
          %3424 = vmatpush1.bf16.msra.mxu0 %v2973
          %3425 = vmatprep.subr.bf16.mxu0 %v2978
          %3426 = vmatpush1.bf16.msra.mxu0 %v2977
          %3427 = vmatprep.subr.bf16.mxu0 %v2982
          %3428 = vmatpush1.bf16.msra.mxu0 %v2981
          %3429 = vmatprep.subr.bf16.mxu0 %v2986
          %3430 = vmatpush1.bf16.msra.mxu0 %v2985
          %3431 = vmatprep.subr.bf16.mxu0 %v2990
          %3432 = vmatpush1.bf16.msra.mxu0 %v2989
          %3433 = vmatprep.subr.bf16.mxu0 %v2994
          %3434 = vmatpush1.bf16.msra.mxu0 %v2993
          %3435 = vmatprep.subr.bf16.mxu0 %v2998
          %3436 = vmatpush1.bf16.msra.mxu0 %v2997
          %3437 = vmatprep.subr.bf16.mxu0 %v3002
          %3438 = vmatpush1.bf16.msra.mxu0 %v3001
          %3439 = vmatprep.mubr.bf16.mxu0 %v1764
          %3440 = vmatmul.mubr.bf16.gmra.mrb[0].mxu0 %v1763
          %v3441 = vpop.f32.mrb[0].mxu0
          %v3442 = vadd.f32 %v3401, %v3441
          %v3443 = vpop.f32.mrb[0].mxu0
          %v3444 = vadd.f32 %v3403, %v3443
          %v3445 = vpop.f32.mrb[0].mxu0
          %v3446 = vpop.f32.mrb[0].mxu0
          %3447 = vdwg.mxu0
          %3448 = vmatprep.subr.bf16.mxu0 %v3006
          %3449 = vmatpush1.bf16.msra.mxu0 %v3005
          %3450 = vmatprep.subr.bf16.mxu0 %v3010
          %3451 = vmatpush1.bf16.msra.mxu0 %v3009
          %3452 = vmatprep.subr.bf16.mxu0 %v3014
          %3453 = vmatpush1.bf16.msra.mxu0 %v3013
          %3454 = vmatprep.subr.bf16.mxu0 %v3018
          %3455 = vmatpush1.bf16.msra.mxu0 %v3017
          %3456 = vmatprep.subr.bf16.mxu0 %v3022
          %3457 = vmatpush1.bf16.msra.mxu0 %v3021
          %3458 = vmatprep.subr.bf16.mxu0 %v3026
          %3459 = vmatpush1.bf16.msra.mxu0 %v3025
          %3460 = vmatprep.subr.bf16.mxu0 %v3030
          %3461 = vmatpush1.bf16.msra.mxu0 %v3029
          %3462 = vmatprep.subr.bf16.mxu0 %v3034
          %3463 = vmatpush1.bf16.msra.mxu0 %v3033
          %3464 = vmatprep.subr.bf16.mxu0 %v3038
          %3465 = vmatpush1.bf16.msra.mxu0 %v3037
          %3466 = vmatprep.subr.bf16.mxu0 %v3042
          %3467 = vmatpush1.bf16.msra.mxu0 %v3041
          %3468 = vmatprep.subr.bf16.mxu0 %v3046
          %3469 = vmatpush1.bf16.msra.mxu0 %v3045
          %3470 = vmatprep.subr.bf16.mxu0 %v3050
          %3471 = vmatpush1.bf16.msra.mxu0 %v3049
          %3472 = vmatprep.subr.bf16.mxu0 %v3054
          %3473 = vmatpush1.bf16.msra.mxu0 %v3053
          %3474 = vmatprep.subr.bf16.mxu0 %v3058
          %3475 = vmatpush1.bf16.msra.mxu0 %v3057
          %3476 = vmatprep.subr.bf16.mxu0 %v3062
          %3477 = vmatpush1.bf16.msra.mxu0 %v3061
          %3478 = vmatprep.subr.bf16.mxu0 %v3066
          %3479 = vmatpush1.bf16.msra.mxu0 %v3065
          %3480 = vmatprep.mubr.bf16.mxu0 %v1766
          %3481 = vmatmul.mubr.bf16.gmra.mrb[0].mxu0 %v1765
          %v3482 = vpop.f32.mrb[0].mxu0
          %v3483 = vadd.f32 %v3442, %v3482
          %v3484 = vpop.f32.mrb[0].mxu0
          %v3485 = vadd.f32 %v3444, %v3484
          %v3486 = vpop.f32.mrb[0].mxu0
          %v3487 = vpop.f32.mrb[0].mxu0
          %3488 = vdwg.mxu0
          %3489 = vmatprep.subr.bf16.mxu0 %v2816
          %3490 = vmatpush1.bf16.msra.mxu0 %v2815
          %3491 = vmatprep.subr.bf16.mxu0 %v2820
          %3492 = vmatpush1.bf16.msra.mxu0 %v2819
          %3493 = vmatprep.subr.bf16.mxu0 %v2824
          %3494 = vmatpush1.bf16.msra.mxu0 %v2823
          %3495 = vmatprep.subr.bf16.mxu0 %v2828
          %3496 = vmatpush1.bf16.msra.mxu0 %v2827
          %3497 = vmatprep.subr.bf16.mxu0 %v2832
          %3498 = vmatpush1.bf16.msra.mxu0 %v2831
          %3499 = vmatprep.subr.bf16.mxu0 %v2836
          %3500 = vmatpush1.bf16.msra.mxu0 %v2835
          %3501 = vmatprep.subr.bf16.mxu0 %v2840
          %3502 = vmatpush1.bf16.msra.mxu0 %v2839
          %3503 = vmatprep.subr.bf16.mxu0 %v2844
          %3504 = vmatpush1.bf16.msra.mxu0 %v2843
          %3505 = vmatprep.subr.bf16.mxu0 %v2848
          %3506 = vmatpush1.bf16.msra.mxu0 %v2847
          %3507 = vmatprep.subr.bf16.mxu0 %v2852
          %3508 = vmatpush1.bf16.msra.mxu0 %v2851
          %3509 = vmatprep.subr.bf16.mxu0 %v2856
          %3510 = vmatpush1.bf16.msra.mxu0 %v2855
          %3511 = vmatprep.subr.bf16.mxu0 %v2860
          %3512 = vmatpush1.bf16.msra.mxu0 %v2859
          %3513 = vmatprep.subr.bf16.mxu0 %v2864
          %3514 = vmatpush1.bf16.msra.mxu0 %v2863
          %3515 = vmatprep.subr.bf16.mxu0 %v2868
          %3516 = vmatpush1.bf16.msra.mxu0 %v2867
          %3517 = vmatprep.subr.bf16.mxu0 %v2872
          %3518 = vmatpush1.bf16.msra.mxu0 %v2871
          %3519 = vmatprep.subr.bf16.mxu0 %v2876
          %3520 = vmatpush1.bf16.msra.mxu0 %v2875
          %3521 = vmatprep.mubr.bf16.mxu0 %v1760
          %3522 = vmatmul.mubr.bf16.gmra.mrb[0].mxu0 %v1759
          %v3523 = vpop.f32.mrb[0].mxu0
          %v3524 = vadd.f32 %v2036, %v3523
          %v3525 = vpop.f32.mrb[0].mxu0
          %v3526 = vadd.f32 %v2040, %v3525
          %v3527 = vpop.f32.mrb[0].mxu0
          %v3528 = vpop.f32.mrb[0].mxu0
          %3529 = vdwg.mxu0
          %3530 = vmatprep.subr.bf16.mxu0 %v2880
          %3531 = vmatpush1.bf16.msra.mxu0 %v2879
          %3532 = vmatprep.subr.bf16.mxu0 %v2884
          %3533 = vmatpush1.bf16.msra.mxu0 %v2883
          %3534 = vmatprep.subr.bf16.mxu0 %v2888
          %3535 = vmatpush1.bf16.msra.mxu0 %v2887
          %3536 = vmatprep.subr.bf16.mxu0 %v2892
          %3537 = vmatpush1.bf16.msra.mxu0 %v2891
          %3538 = vmatprep.subr.bf16.mxu0 %v2896
          %3539 = vmatpush1.bf16.msra.mxu0 %v2895
          %3540 = vmatprep.subr.bf16.mxu0 %v2900
          %3541 = vmatpush1.bf16.msra.mxu0 %v2899
          %3542 = vmatprep.subr.bf16.mxu0 %v2904
          %3543 = vmatpush1.bf16.msra.mxu0 %v2903
          %3544 = vmatprep.subr.bf16.mxu0 %v2908
          %3545 = vmatpush1.bf16.msra.mxu0 %v2907
          %3546 = vmatprep.subr.bf16.mxu0 %v2912
          %3547 = vmatpush1.bf16.msra.mxu0 %v2911
          %3548 = vmatprep.subr.bf16.mxu0 %v2916
          %3549 = vmatpush1.bf16.msra.mxu0 %v2915
          %3550 = vmatprep.subr.bf16.mxu0 %v2920
          %3551 = vmatpush1.bf16.msra.mxu0 %v2919
          %3552 = vmatprep.subr.bf16.mxu0 %v2924
          %3553 = vmatpush1.bf16.msra.mxu0 %v2923
          %3554 = vmatprep.subr.bf16.mxu0 %v2928
          %3555 = vmatpush1.bf16.msra.mxu0 %v2927
          %3556 = vmatprep.subr.bf16.mxu0 %v2932
          %3557 = vmatpush1.bf16.msra.mxu0 %v2931
          %3558 = vmatprep.subr.bf16.mxu0 %v2936
          %3559 = vmatpush1.bf16.msra.mxu0 %v2935
          %3560 = vmatprep.subr.bf16.mxu0 %v2940
          %3561 = vmatpush1.bf16.msra.mxu0 %v2939
          %3562 = vmatprep.mubr.bf16.mxu0 %v1762
          %3563 = vmatmul.mubr.bf16.gmra.mrb[0].mxu0 %v1761
          %v3564 = vpop.f32.mrb[0].mxu0
          %v3565 = vadd.f32 %v3524, %v3564
          %v3566 = vpop.f32.mrb[0].mxu0
          %v3567 = vadd.f32 %v3526, %v3566
          %v3568 = vpop.f32.mrb[0].mxu0
          %v3569 = vpop.f32.mrb[0].mxu0
          %3570 = vdwg.mxu0
          %3571 = vmatprep.subr.bf16.mxu0 %v2944
          %3572 = vmatpush1.bf16.msra.mxu0 %v2943
          %3573 = vmatprep.subr.bf16.mxu0 %v2948
          %3574 = vmatpush1.bf16.msra.mxu0 %v2947
          %3575 = vmatprep.subr.bf16.mxu0 %v2952
          %3576 = vmatpush1.bf16.msra.mxu0 %v2951
          %3577 = vmatprep.subr.bf16.mxu0 %v2956
          %3578 = vmatpush1.bf16.msra.mxu0 %v2955
          %3579 = vmatprep.subr.bf16.mxu0 %v2960
          %3580 = vmatpush1.bf16.msra.mxu0 %v2959
          %3581 = vmatprep.subr.bf16.mxu0 %v2964
          %3582 = vmatpush1.bf16.msra.mxu0 %v2963
          %3583 = vmatprep.subr.bf16.mxu0 %v2968
          %3584 = vmatpush1.bf16.msra.mxu0 %v2967
          %3585 = vmatprep.subr.bf16.mxu0 %v2972
          %3586 = vmatpush1.bf16.msra.mxu0 %v2971
          %3587 = vmatprep.subr.bf16.mxu0 %v2976
          %3588 = vmatpush1.bf16.msra.mxu0 %v2975
          %3589 = vmatprep.subr.bf16.mxu0 %v2980
          %3590 = vmatpush1.bf16.msra.mxu0 %v2979
          %3591 = vmatprep.subr.bf16.mxu0 %v2984
          %3592 = vmatpush1.bf16.msra.mxu0 %v2983
          %3593 = vmatprep.subr.bf16.mxu0 %v2988
          %3594 = vmatpush1.bf16.msra.mxu0 %v2987
          %3595 = vmatprep.subr.bf16.mxu0 %v2992
          %3596 = vmatpush1.bf16.msra.mxu0 %v2991
          %3597 = vmatprep.subr.bf16.mxu0 %v2996
          %3598 = vmatpush1.bf16.msra.mxu0 %v2995
          %3599 = vmatprep.subr.bf16.mxu0 %v3000
          %3600 = vmatpush1.bf16.msra.mxu0 %v2999
          %3601 = vmatprep.subr.bf16.mxu0 %v3004
          %3602 = vmatpush1.bf16.msra.mxu0 %v3003
          %3603 = vmatprep.mubr.bf16.mxu0 %v1764
          %3604 = vmatmul.mubr.bf16.gmra.mrb[0].mxu0 %v1763
          %v3605 = vpop.f32.mrb[0].mxu0
          %v3606 = vadd.f32 %v3565, %v3605
          %v3607 = vpop.f32.mrb[0].mxu0
          %v3608 = vadd.f32 %v3567, %v3607
          %v3609 = vpop.f32.mrb[0].mxu0
          %v3610 = vpop.f32.mrb[0].mxu0
          %3611 = vdwg.mxu0
          %3612 = vmatprep.subr.bf16.mxu0 %v3008
          %3613 = vmatpush1.bf16.msra.mxu0 %v3007
          %3614 = vmatprep.subr.bf16.mxu0 %v3012
          %3615 = vmatpush1.bf16.msra.mxu0 %v3011
          %3616 = vmatprep.subr.bf16.mxu0 %v3016
          %3617 = vmatpush1.bf16.msra.mxu0 %v3015
          %3618 = vmatprep.subr.bf16.mxu0 %v3020
          %3619 = vmatpush1.bf16.msra.mxu0 %v3019
          %3620 = vmatprep.subr.bf16.mxu0 %v3024
          %3621 = vmatpush1.bf16.msra.mxu0 %v3023
          %3622 = vmatprep.subr.bf16.mxu0 %v3028
          %3623 = vmatpush1.bf16.msra.mxu0 %v3027
          %3624 = vmatprep.subr.bf16.mxu0 %v3032
          %3625 = vmatpush1.bf16.msra.mxu0 %v3031
          %3626 = vmatprep.subr.bf16.mxu0 %v3036
          %3627 = vmatpush1.bf16.msra.mxu0 %v3035
          %3628 = vmatprep.subr.bf16.mxu0 %v3040
          %3629 = vmatpush1.bf16.msra.mxu0 %v3039
          %3630 = vmatprep.subr.bf16.mxu0 %v3044
          %3631 = vmatpush1.bf16.msra.mxu0 %v3043
          %3632 = vmatprep.subr.bf16.mxu0 %v3048
          %3633 = vmatpush1.bf16.msra.mxu0 %v3047
          %3634 = vmatprep.subr.bf16.mxu0 %v3052
          %3635 = vmatpush1.bf16.msra.mxu0 %v3051
          %3636 = vmatprep.subr.bf16.mxu0 %v3056
          %3637 = vmatpush1.bf16.msra.mxu0 %v3055
          %3638 = vmatprep.subr.bf16.mxu0 %v3060
          %3639 = vmatpush1.bf16.msra.mxu0 %v3059
          %3640 = vmatprep.subr.bf16.mxu0 %v3064
          %3641 = vmatpush1.bf16.msra.mxu0 %v3063
          %3642 = vmatprep.subr.bf16.mxu0 %v3068
          %3643 = vmatpush1.bf16.msra.mxu0 %v3067
          %3644 = vmatprep.mubr.bf16.mxu0 %v1766
          %3645 = vmatmul.mubr.bf16.gmra.mrb[0].mxu0 %v1765
          %v3646 = vpop.f32.mrb[0].mxu0
          %v3647 = vadd.f32 %v3606, %v3646
          %v3648 = vpop.f32.mrb[0].mxu0
          %v3649 = vadd.f32 %v3608, %v3648
          %v3650 = vpop.f32.mrb[0].mxu0
          %v3651 = vpop.f32.mrb[0].mxu0
          %3652 = vdwg.mxu0
          %v3653 = vmul.f32 %v3483, 0.2
          %v3654 = vmul.f32 %v3485, 0.2
          %v3655 = vmul.f32 %v3647, 0.2
          %v3656 = vmul.f32 %v3649, 0.2
          %v3657 = vmax.f32 %v3483, %v3653
          %v3658 = vmax.f32 %v3485, %v3654
          %v3659 = vmax.f32 %v3647, %v3655
          %v3660 = vmax.f32 %v3649, %v3656
          %v3661 = vpack.c.bf16 %v3657, %v3657
          %v3662 = vpack.c.bf16 %v3658, %v3658
          %v3663 = vpack.c.bf16 %v3659, %v3659
          %v3664 = vpack.c.bf16 %v3660, %v3660
          %v3665 = vld [vmem:[#allocation15] sm:$0xff]
          %v3666 = vld [vmem:[#allocation15 + $0x8] sm:$0xff]
          %v3667 = vld [vmem:[#allocation15 + $0x10] sm:$0xff]
          %v3668 = vld [vmem:[#allocation15 + $0x18] sm:$0xff]
          %v3669 = vld [vmem:[#allocation15 + $0x20] sm:$0xff]
          %v3670 = vld [vmem:[#allocation15 + $0x28] sm:$0xff]
          %v3671 = vld [vmem:[#allocation15 + $0x30] sm:$0xff]
          %v3672 = vld [vmem:[#allocation15 + $0x38] sm:$0xff]
          %v3673 = vld [vmem:[#allocation15 + $0x40] sm:$0xff]
          %v3674 = vld [vmem:[#allocation15 + $0x48] sm:$0xff]
          %v3675 = vld [vmem:[#allocation15 + $0x50] sm:$0xff]
          %v3676 = vld [vmem:[#allocation15 + $0x58] sm:$0xff]
          %v3677 = vld [vmem:[#allocation15 + $0x60] sm:$0xff]
          %v3678 = vld [vmem:[#allocation15 + $0x68] sm:$0xff]
          %v3679 = vld [vmem:[#allocation15 + $0x70] sm:$0xff]
          %v3680 = vld [vmem:[#allocation15 + $0x78] sm:$0xff]
          %v3681 = vld [vmem:[#allocation15 + $0x80] sm:$0xff]
          %v3682 = vld [vmem:[#allocation15 + $0x88] sm:$0xff]
          %v3683 = vld [vmem:[#allocation15 + $0x90] sm:$0xff]
          %v3684 = vld [vmem:[#allocation15 + $0x98] sm:$0xff]
          %v3685 = vld [vmem:[#allocation15 + $0xa0] sm:$0xff]
          %v3686 = vld [vmem:[#allocation15 + $0xa8] sm:$0xff]
          %v3687 = vld [vmem:[#allocation15 + $0xb0] sm:$0xff]
          %v3688 = vld [vmem:[#allocation15 + $0xb8] sm:$0xff]
          %v3689 = vld [vmem:[#allocation15 + $0xc0] sm:$0xff]
          %v3690 = vld [vmem:[#allocation15 + $0xc8] sm:$0xff]
          %v3691 = vld [vmem:[#allocation15 + $0xd0] sm:$0xff]
          %v3692 = vld [vmem:[#allocation15 + $0xd8] sm:$0xff]
          %v3693 = vld [vmem:[#allocation15 + $0xe0] sm:$0xff]
          %v3694 = vld [vmem:[#allocation15 + $0xe8] sm:$0xff]
          %v3695 = vld [vmem:[#allocation15 + $0xf0] sm:$0xff]
          %v3696 = vld [vmem:[#allocation15 + $0xf8] sm:$0xff]
          %v3697 = vld [vmem:[#allocation15 + $0x100] sm:$0xff]
          %v3698 = vld [vmem:[#allocation15 + $0x108] sm:$0xff]
          %v3699 = vld [vmem:[#allocation15 + $0x110] sm:$0xff]
          %v3700 = vld [vmem:[#allocation15 + $0x118] sm:$0xff]
          %v3701 = vld [vmem:[#allocation15 + $0x120] sm:$0xff]
          %v3702 = vld [vmem:[#allocation15 + $0x128] sm:$0xff]
          %v3703 = vld [vmem:[#allocation15 + $0x130] sm:$0xff]
          %v3704 = vld [vmem:[#allocation15 + $0x138] sm:$0xff]
          %v3705 = vld [vmem:[#allocation15 + $0x140] sm:$0xff]
          %v3706 = vld [vmem:[#allocation15 + $0x148] sm:$0xff]
          %v3707 = vld [vmem:[#allocation15 + $0x150] sm:$0xff]
          %v3708 = vld [vmem:[#allocation15 + $0x158] sm:$0xff]
          %v3709 = vld [vmem:[#allocation15 + $0x160] sm:$0xff]
          %v3710 = vld [vmem:[#allocation15 + $0x168] sm:$0xff]
          %v3711 = vld [vmem:[#allocation15 + $0x170] sm:$0xff]
          %v3712 = vld [vmem:[#allocation15 + $0x178] sm:$0xff]
          %v3713 = vld [vmem:[#allocation15 + $0x180] sm:$0xff]
          %v3714 = vld [vmem:[#allocation15 + $0x188] sm:$0xff]
          %v3715 = vld [vmem:[#allocation15 + $0x190] sm:$0xff]
          %v3716 = vld [vmem:[#allocation15 + $0x198] sm:$0xff]
          %v3717 = vld [vmem:[#allocation15 + $0x1a0] sm:$0xff]
          %v3718 = vld [vmem:[#allocation15 + $0x1a8] sm:$0xff]
          %v3719 = vld [vmem:[#allocation15 + $0x1b0] sm:$0xff]
          %v3720 = vld [vmem:[#allocation15 + $0x1b8] sm:$0xff]
          %v3721 = vld [vmem:[#allocation15 + $0x1c0] sm:$0xff]
          %v3722 = vld [vmem:[#allocation15 + $0x1c8] sm:$0xff]
          %v3723 = vld [vmem:[#allocation15 + $0x1d0] sm:$0xff]
          %v3724 = vld [vmem:[#allocation15 + $0x1d8] sm:$0xff]
          %v3725 = vld [vmem:[#allocation15 + $0x1e0] sm:$0xff]
          %v3726 = vld [vmem:[#allocation15 + $0x1e8] sm:$0xff]
          %v3727 = vld [vmem:[#allocation15 + $0x1f0] sm:$0xff]
          %v3728 = vld [vmem:[#allocation15 + $0x1f8] sm:$0xff]
          %v3729 = vld [vmem:[%s14] sm:$0x3]
          %v3731 = vlaneseq
          %v3732 = vshrl.u32 %v3731, 7
          %v3733 = vsub.s32 0, %v3732
          %v3734 = vrot.slane %v3729, %v3733
          %v3735 = vlaneseq
          %v3736 = vshrl.u32 %v3735, 7
          %v3737 = vsub.s32 1, %v3736
          %v3738 = vrot.slane %v3729, %v3737
          %v3805 = vunpack.c.l.b16 %v3665
          %v3806 = vunpack.c.h.b16 %v3665
          %v3807 = vunpack.c.l.b16 %v3666
          %v3808 = vunpack.c.h.b16 %v3666
          %v3809 = vunpack.c.l.b16 %v3667
          %v3810 = vunpack.c.h.b16 %v3667
          %v3811 = vunpack.c.l.b16 %v3668
          %v3812 = vunpack.c.h.b16 %v3668
          %v3813 = vunpack.c.l.b16 %v3669
          %v3814 = vunpack.c.h.b16 %v3669
          %v3815 = vunpack.c.l.b16 %v3670
          %v3816 = vunpack.c.h.b16 %v3670
          %v3817 = vunpack.c.l.b16 %v3671
          %v3818 = vunpack.c.h.b16 %v3671
          %v3819 = vunpack.c.l.b16 %v3672
          %v3820 = vunpack.c.h.b16 %v3672
          %v3821 = vunpack.c.l.b16 %v3673
          %v3822 = vunpack.c.h.b16 %v3673
          %v3823 = vunpack.c.l.b16 %v3674
          %v3824 = vunpack.c.h.b16 %v3674
          %v3825 = vunpack.c.l.b16 %v3675
          %v3826 = vunpack.c.h.b16 %v3675
          %v3827 = vunpack.c.l.b16 %v3676
          %v3828 = vunpack.c.h.b16 %v3676
          %v3829 = vunpack.c.l.b16 %v3677
          %v3830 = vunpack.c.h.b16 %v3677
          %v3831 = vunpack.c.l.b16 %v3678
          %v3832 = vunpack.c.h.b16 %v3678
          %v3833 = vunpack.c.l.b16 %v3679
          %v3834 = vunpack.c.h.b16 %v3679
          %v3835 = vunpack.c.l.b16 %v3680
          %v3836 = vunpack.c.h.b16 %v3680
          %v3837 = vunpack.c.l.b16 %v3681
          %v3838 = vunpack.c.h.b16 %v3681
          %v3839 = vunpack.c.l.b16 %v3682
          %v3840 = vunpack.c.h.b16 %v3682
          %v3841 = vunpack.c.l.b16 %v3683
          %v3842 = vunpack.c.h.b16 %v3683
          %v3843 = vunpack.c.l.b16 %v3684
          %v3844 = vunpack.c.h.b16 %v3684
          %v3845 = vunpack.c.l.b16 %v3685
          %v3846 = vunpack.c.h.b16 %v3685
          %v3847 = vunpack.c.l.b16 %v3686
          %v3848 = vunpack.c.h.b16 %v3686
          %v3849 = vunpack.c.l.b16 %v3687
          %v3850 = vunpack.c.h.b16 %v3687
          %v3851 = vunpack.c.l.b16 %v3688
          %v3852 = vunpack.c.h.b16 %v3688
          %v3853 = vunpack.c.l.b16 %v3689
          %v3854 = vunpack.c.h.b16 %v3689
          %v3855 = vunpack.c.l.b16 %v3690
          %v3856 = vunpack.c.h.b16 %v3690
          %v3857 = vunpack.c.l.b16 %v3691
          %v3858 = vunpack.c.h.b16 %v3691
          %v3859 = vunpack.c.l.b16 %v3692
          %v3860 = vunpack.c.h.b16 %v3692
          %v3861 = vunpack.c.l.b16 %v3693
          %v3862 = vunpack.c.h.b16 %v3693
          %v3863 = vunpack.c.l.b16 %v3694
          %v3864 = vunpack.c.h.b16 %v3694
          %v3865 = vunpack.c.l.b16 %v3695
          %v3866 = vunpack.c.h.b16 %v3695
          %v3867 = vunpack.c.l.b16 %v3696
          %v3868 = vunpack.c.h.b16 %v3696
          %v3869 = vunpack.c.l.b16 %v3697
          %v3870 = vunpack.c.h.b16 %v3697
          %v3871 = vunpack.c.l.b16 %v3698
          %v3872 = vunpack.c.h.b16 %v3698
          %v3873 = vunpack.c.l.b16 %v3699
          %v3874 = vunpack.c.h.b16 %v3699
          %v3875 = vunpack.c.l.b16 %v3700
          %v3876 = vunpack.c.h.b16 %v3700
          %v3877 = vunpack.c.l.b16 %v3701
          %v3878 = vunpack.c.h.b16 %v3701
          %v3879 = vunpack.c.l.b16 %v3702
          %v3880 = vunpack.c.h.b16 %v3702
          %v3881 = vunpack.c.l.b16 %v3703
          %v3882 = vunpack.c.h.b16 %v3703
          %v3883 = vunpack.c.l.b16 %v3704
          %v3884 = vunpack.c.h.b16 %v3704
          %v3885 = vunpack.c.l.b16 %v3705
          %v3886 = vunpack.c.h.b16 %v3705
          %v3887 = vunpack.c.l.b16 %v3706
          %v3888 = vunpack.c.h.b16 %v3706
          %v3889 = vunpack.c.l.b16 %v3707
          %v3890 = vunpack.c.h.b16 %v3707
          %v3891 = vunpack.c.l.b16 %v3708
          %v3892 = vunpack.c.h.b16 %v3708
          %v3893 = vunpack.c.l.b16 %v3709
          %v3894 = vunpack.c.h.b16 %v3709
          %v3895 = vunpack.c.l.b16 %v3710
          %v3896 = vunpack.c.h.b16 %v3710
          %v3897 = vunpack.c.l.b16 %v3711
          %v3898 = vunpack.c.h.b16 %v3711
          %v3899 = vunpack.c.l.b16 %v3712
          %v3900 = vunpack.c.h.b16 %v3712
          %v3901 = vunpack.c.l.b16 %v3713
          %v3902 = vunpack.c.h.b16 %v3713
          %v3903 = vunpack.c.l.b16 %v3714
          %v3904 = vunpack.c.h.b16 %v3714
          %v3905 = vunpack.c.l.b16 %v3715
          %v3906 = vunpack.c.h.b16 %v3715
          %v3907 = vunpack.c.l.b16 %v3716
          %v3908 = vunpack.c.h.b16 %v3716
          %v3909 = vunpack.c.l.b16 %v3717
          %v3910 = vunpack.c.h.b16 %v3717
          %v3911 = vunpack.c.l.b16 %v3718
          %v3912 = vunpack.c.h.b16 %v3718
          %v3913 = vunpack.c.l.b16 %v3719
          %v3914 = vunpack.c.h.b16 %v3719
          %v3915 = vunpack.c.l.b16 %v3720
          %v3916 = vunpack.c.h.b16 %v3720
          %v3917 = vunpack.c.l.b16 %v3721
          %v3918 = vunpack.c.h.b16 %v3721
          %v3919 = vunpack.c.l.b16 %v3722
          %v3920 = vunpack.c.h.b16 %v3722
          %v3921 = vunpack.c.l.b16 %v3723
          %v3922 = vunpack.c.h.b16 %v3723
          %v3923 = vunpack.c.l.b16 %v3724
          %v3924 = vunpack.c.h.b16 %v3724
          %v3925 = vunpack.c.l.b16 %v3725
          %v3926 = vunpack.c.h.b16 %v3725
          %v3927 = vunpack.c.l.b16 %v3726
          %v3928 = vunpack.c.h.b16 %v3726
          %v3929 = vunpack.c.l.b16 %v3727
          %v3930 = vunpack.c.h.b16 %v3727
          %v3931 = vunpack.c.l.b16 %v3728
          %v3932 = vunpack.c.h.b16 %v3728
          %v3933 = vpack.c.b16 %v3807, %v3805
          %v3934 = vpack.c.b16 %v3808, %v3806
          %v3935 = vpack.c.b16 %v3811, %v3809
          %v3936 = vpack.c.b16 %v3812, %v3810
          %v3937 = vpack.c.b16 %v3815, %v3813
          %v3938 = vpack.c.b16 %v3816, %v3814
          %v3939 = vpack.c.b16 %v3819, %v3817
          %v3940 = vpack.c.b16 %v3820, %v3818
          %v3941 = vpack.c.b16 %v3823, %v3821
          %v3942 = vpack.c.b16 %v3824, %v3822
          %v3943 = vpack.c.b16 %v3827, %v3825
          %v3944 = vpack.c.b16 %v3828, %v3826
          %v3945 = vpack.c.b16 %v3831, %v3829
          %v3946 = vpack.c.b16 %v3832, %v3830
          %v3947 = vpack.c.b16 %v3835, %v3833
          %v3948 = vpack.c.b16 %v3836, %v3834
          %v3949 = vpack.c.b16 %v3839, %v3837
          %v3950 = vpack.c.b16 %v3840, %v3838
          %v3951 = vpack.c.b16 %v3843, %v3841
          %v3952 = vpack.c.b16 %v3844, %v3842
          %v3953 = vpack.c.b16 %v3847, %v3845
          %v3954 = vpack.c.b16 %v3848, %v3846
          %v3955 = vpack.c.b16 %v3851, %v3849
          %v3956 = vpack.c.b16 %v3852, %v3850
          %v3957 = vpack.c.b16 %v3855, %v3853
          %v3958 = vpack.c.b16 %v3856, %v3854
          %v3959 = vpack.c.b16 %v3859, %v3857
          %v3960 = vpack.c.b16 %v3860, %v3858
          %v3961 = vpack.c.b16 %v3863, %v3861
          %v3962 = vpack.c.b16 %v3864, %v3862
          %v3963 = vpack.c.b16 %v3867, %v3865
          %v3964 = vpack.c.b16 %v3868, %v3866
          %v3965 = vpack.c.b16 %v3871, %v3869
          %v3966 = vpack.c.b16 %v3872, %v3870
          %v3967 = vpack.c.b16 %v3875, %v3873
          %v3968 = vpack.c.b16 %v3876, %v3874
          %v3969 = vpack.c.b16 %v3879, %v3877
          %v3970 = vpack.c.b16 %v3880, %v3878
          %v3971 = vpack.c.b16 %v3883, %v3881
          %v3972 = vpack.c.b16 %v3884, %v3882
          %v3973 = vpack.c.b16 %v3887, %v3885
          %v3974 = vpack.c.b16 %v3888, %v3886
          %v3975 = vpack.c.b16 %v3891, %v3889
          %v3976 = vpack.c.b16 %v3892, %v3890
          %v3977 = vpack.c.b16 %v3895, %v3893
          %v3978 = vpack.c.b16 %v3896, %v3894
          %v3979 = vpack.c.b16 %v3899, %v3897
          %v3980 = vpack.c.b16 %v3900, %v3898
          %v3981 = vpack.c.b16 %v3903, %v3901
          %v3982 = vpack.c.b16 %v3904, %v3902
          %v3983 = vpack.c.b16 %v3907, %v3905
          %v3984 = vpack.c.b16 %v3908, %v3906
          %v3985 = vpack.c.b16 %v3911, %v3909
          %v3986 = vpack.c.b16 %v3912, %v3910
          %v3987 = vpack.c.b16 %v3915, %v3913
          %v3988 = vpack.c.b16 %v3916, %v3914
          %v3989 = vpack.c.b16 %v3919, %v3917
          %v3990 = vpack.c.b16 %v3920, %v3918
          %v3991 = vpack.c.b16 %v3923, %v3921
          %v3992 = vpack.c.b16 %v3924, %v3922
          %v3993 = vpack.c.b16 %v3927, %v3925
          %v3994 = vpack.c.b16 %v3928, %v3926
          %v3995 = vpack.c.b16 %v3931, %v3929
          %v3996 = vpack.c.b16 %v3932, %v3930
          %4061 = vmatprep.subr.bf16.mxu0 %v3934
          %4062 = vmatpush1.bf16.msra.mxu0 %v3933
          %4063 = vmatprep.subr.bf16.mxu0 %v3936
          %4064 = vmatpush1.bf16.msra.mxu0 %v3935
          %4065 = vmatprep.subr.bf16.mxu0 %v3938
          %4066 = vmatpush1.bf16.msra.mxu0 %v3937
          %4067 = vmatprep.subr.bf16.mxu0 %v3940
          %4068 = vmatpush1.bf16.msra.mxu0 %v3939
          %4069 = vmatprep.subr.bf16.mxu0 %v3942
          %4070 = vmatpush1.bf16.msra.mxu0 %v3941
          %4071 = vmatprep.subr.bf16.mxu0 %v3944
          %4072 = vmatpush1.bf16.msra.mxu0 %v3943
          %4073 = vmatprep.subr.bf16.mxu0 %v3946
          %4074 = vmatpush1.bf16.msra.mxu0 %v3945
          %4075 = vmatprep.subr.bf16.mxu0 %v3948
          %4076 = vmatpush1.bf16.msra.mxu0 %v3947
          %4077 = vmatprep.subr.bf16.mxu0 %v3950
          %4078 = vmatpush1.bf16.msra.mxu0 %v3949
          %4079 = vmatprep.subr.bf16.mxu0 %v3952
          %4080 = vmatpush1.bf16.msra.mxu0 %v3951
          %4081 = vmatprep.subr.bf16.mxu0 %v3954
          %4082 = vmatpush1.bf16.msra.mxu0 %v3953
          %4083 = vmatprep.subr.bf16.mxu0 %v3956
          %4084 = vmatpush1.bf16.msra.mxu0 %v3955
          %4085 = vmatprep.subr.bf16.mxu0 %v3958
          %4086 = vmatpush1.bf16.msra.mxu0 %v3957
          %4087 = vmatprep.subr.bf16.mxu0 %v3960
          %4088 = vmatpush1.bf16.msra.mxu0 %v3959
          %4089 = vmatprep.subr.bf16.mxu0 %v3962
          %4090 = vmatpush1.bf16.msra.mxu0 %v3961
          %4091 = vmatprep.subr.bf16.mxu0 %v3964
          %4092 = vmatpush1.bf16.msra.mxu0 %v3963
          %4093 = vmatprep.mubr.bf16.mxu0 %v3662
          %4094 = vmatmul.mubr.bf16.gmra.mrb[0].mxu0 %v3661
          %v4095 = vpop.f32.mrb[0].mxu0
          %v4096 = vadd.f32 %v3734, %v4095
          %v4097 = vpop.f32.mrb[0].mxu0
          %v4098 = vadd.f32 %v3738, %v4097
          %v4099 = vpop.f32.mrb[0].mxu0
          %v4100 = vpop.f32.mrb[0].mxu0
          %4101 = vdwg.mxu0
          %4102 = vmatprep.subr.bf16.mxu0 %v3966
          %4103 = vmatpush1.bf16.msra.mxu0 %v3965
          %4104 = vmatprep.subr.bf16.mxu0 %v3968
          %4105 = vmatpush1.bf16.msra.mxu0 %v3967
          %4106 = vmatprep.subr.bf16.mxu0 %v3970
          %4107 = vmatpush1.bf16.msra.mxu0 %v3969
          %4108 = vmatprep.subr.bf16.mxu0 %v3972
          %4109 = vmatpush1.bf16.msra.mxu0 %v3971
          %4110 = vmatprep.subr.bf16.mxu0 %v3974
          %4111 = vmatpush1.bf16.msra.mxu0 %v3973
          %4112 = vmatprep.subr.bf16.mxu0 %v3976
          %4113 = vmatpush1.bf16.msra.mxu0 %v3975
          %4114 = vmatprep.subr.bf16.mxu0 %v3978
          %4115 = vmatpush1.bf16.msra.mxu0 %v3977
          %4116 = vmatprep.subr.bf16.mxu0 %v3980
          %4117 = vmatpush1.bf16.msra.mxu0 %v3979
          %4118 = vmatprep.subr.bf16.mxu0 %v3982
          %4119 = vmatpush1.bf16.msra.mxu0 %v3981
          %4120 = vmatprep.subr.bf16.mxu0 %v3984
          %4121 = vmatpush1.bf16.msra.mxu0 %v3983
          %4122 = vmatprep.subr.bf16.mxu0 %v3986
          %4123 = vmatpush1.bf16.msra.mxu0 %v3985
          %4124 = vmatprep.subr.bf16.mxu0 %v3988
          %4125 = vmatpush1.bf16.msra.mxu0 %v3987
          %4126 = vmatprep.subr.bf16.mxu0 %v3990
          %4127 = vmatpush1.bf16.msra.mxu0 %v3989
          %4128 = vmatprep.subr.bf16.mxu0 %v3992
          %4129 = vmatpush1.bf16.msra.mxu0 %v3991
          %4130 = vmatprep.subr.bf16.mxu0 %v3994
          %4131 = vmatpush1.bf16.msra.mxu0 %v3993
          %4132 = vmatprep.subr.bf16.mxu0 %v3996
          %4133 = vmatpush1.bf16.msra.mxu0 %v3995
          %4134 = vmatprep.mubr.bf16.mxu0 %v3664
          %4135 = vmatmul.mubr.bf16.gmra.mrb[0].mxu0 %v3663
          %v4136 = vpop.f32.mrb[0].mxu0
          %v4137 = vadd.f32 %v4096, %v4136
          %v4138 = vpop.f32.mrb[0].mxu0
          %v4139 = vadd.f32 %v4098, %v4138
          %v4140 = vpop.f32.mrb[0].mxu0
          %v4141 = vpop.f32.mrb[0].mxu0
          %4142 = vdwg.mxu0
          %v4143 = vmul.f32 %v4137, 0.2
          %v4144 = vmul.f32 %v4139, 0.2
          %v4145 = vmax.f32 %v4137, %v4143
          %v4146 = vmax.f32 %v4139, %v4144
          %v4147 = vpack.c.bf16 %v4145, %v4145
          %v4148 = vpack.c.bf16 %v4146, %v4146
          %v4149 = vld [vmem:[#allocation17] sm:$0xf]
          %v4150 = vld [vmem:[#allocation17 + $0x4] sm:$0xf]
          %v4151 = vld [vmem:[#allocation17 + $0x8] sm:$0xf]
          %v4152 = vld [vmem:[#allocation17 + $0xc] sm:$0xf]
          %v4153 = vld [vmem:[#allocation17 + $0x10] sm:$0xf]
          %v4154 = vld [vmem:[#allocation17 + $0x14] sm:$0xf]
          %v4155 = vld [vmem:[#allocation17 + $0x18] sm:$0xf]
          %v4156 = vld [vmem:[#allocation17 + $0x1c] sm:$0xf]
          %v4157 = vld [vmem:[#allocation17 + $0x20] sm:$0xf]
          %v4158 = vld [vmem:[#allocation17 + $0x24] sm:$0xf]
          %v4159 = vld [vmem:[#allocation17 + $0x28] sm:$0xf]
          %v4160 = vld [vmem:[#allocation17 + $0x2c] sm:$0xf]
          %v4161 = vld [vmem:[#allocation17 + $0x30] sm:$0xf]
          %v4162 = vld [vmem:[#allocation17 + $0x34] sm:$0xf]
          %v4163 = vld [vmem:[#allocation17 + $0x38] sm:$0xf]
          %v4164 = vld [vmem:[#allocation17 + $0x3c] sm:$0xf]
          %v4165 = vld [vmem:[#allocation17 + $0x40] sm:$0xf]
          %v4166 = vld [vmem:[#allocation17 + $0x44] sm:$0xf]
          %v4167 = vld [vmem:[#allocation17 + $0x48] sm:$0xf]
          %v4168 = vld [vmem:[#allocation17 + $0x4c] sm:$0xf]
          %v4169 = vld [vmem:[#allocation17 + $0x50] sm:$0xf]
          %v4170 = vld [vmem:[#allocation17 + $0x54] sm:$0xf]
          %v4171 = vld [vmem:[#allocation17 + $0x58] sm:$0xf]
          %v4172 = vld [vmem:[#allocation17 + $0x5c] sm:$0xf]
          %v4173 = vld [vmem:[#allocation17 + $0x60] sm:$0xf]
          %v4174 = vld [vmem:[#allocation17 + $0x64] sm:$0xf]
          %v4175 = vld [vmem:[#allocation17 + $0x68] sm:$0xf]
          %v4176 = vld [vmem:[#allocation17 + $0x6c] sm:$0xf]
          %v4177 = vld [vmem:[#allocation17 + $0x70] sm:$0xf]
          %v4178 = vld [vmem:[#allocation17 + $0x74] sm:$0xf]
          %v4179 = vld [vmem:[#allocation17 + $0x78] sm:$0xf]
          %v4180 = vld [vmem:[#allocation17 + $0x7c] sm:$0xf]
          %v4181 = vld [vmem:[%s16] sm:$0x1]
          %v4183 = vlaneseq
          %v4184 = vshrl.u32 %v4183, 7
          %v4185 = vsub.s32 0, %v4184
          %v4186 = vrot.slane %v4181, %v4185
          %v4220 = vunpack.c.l.b16 %v4149
          %v4221 = vunpack.c.l.b16 %v4150
          %v4222 = vunpack.c.l.b16 %v4151
          %v4223 = vunpack.c.l.b16 %v4152
          %v4224 = vunpack.c.l.b16 %v4153
          %v4225 = vunpack.c.l.b16 %v4154
          %v4226 = vunpack.c.l.b16 %v4155
          %v4227 = vunpack.c.l.b16 %v4156
          %v4228 = vunpack.c.l.b16 %v4157
          %v4229 = vunpack.c.l.b16 %v4158
          %v4230 = vunpack.c.l.b16 %v4159
          %v4231 = vunpack.c.l.b16 %v4160
          %v4232 = vunpack.c.l.b16 %v4161
          %v4233 = vunpack.c.l.b16 %v4162
          %v4234 = vunpack.c.l.b16 %v4163
          %v4235 = vunpack.c.l.b16 %v4164
          %v4236 = vunpack.c.l.b16 %v4165
          %v4237 = vunpack.c.l.b16 %v4166
          %v4238 = vunpack.c.l.b16 %v4167
          %v4239 = vunpack.c.l.b16 %v4168
          %v4240 = vunpack.c.l.b16 %v4169
          %v4241 = vunpack.c.l.b16 %v4170
          %v4242 = vunpack.c.l.b16 %v4171
          %v4243 = vunpack.c.l.b16 %v4172
          %v4244 = vunpack.c.l.b16 %v4173
          %v4245 = vunpack.c.l.b16 %v4174
          %v4246 = vunpack.c.l.b16 %v4175
          %v4247 = vunpack.c.l.b16 %v4176
          %v4248 = vunpack.c.l.b16 %v4177
          %v4249 = vunpack.c.l.b16 %v4178
          %v4250 = vunpack.c.l.b16 %v4179
          %v4251 = vunpack.c.l.b16 %v4180
          %v4252 = vpack.c.b16 %v4221, %v4220
          %v4253 = vpack.c.b16 %v4223, %v4222
          %v4254 = vpack.c.b16 %v4225, %v4224
          %v4255 = vpack.c.b16 %v4227, %v4226
          %v4256 = vpack.c.b16 %v4229, %v4228
          %v4257 = vpack.c.b16 %v4231, %v4230
          %v4258 = vpack.c.b16 %v4233, %v4232
          %v4259 = vpack.c.b16 %v4235, %v4234
          %v4260 = vpack.c.b16 %v4237, %v4236
          %v4261 = vpack.c.b16 %v4239, %v4238
          %v4262 = vpack.c.b16 %v4241, %v4240
          %v4263 = vpack.c.b16 %v4243, %v4242
          %v4264 = vpack.c.b16 %v4245, %v4244
          %v4265 = vpack.c.b16 %v4247, %v4246
          %v4266 = vpack.c.b16 %v4249, %v4248
          %v4267 = vpack.c.b16 %v4251, %v4250
          %4284 = vmatprep.subr.bf16.mxu0 0
          %4285 = vmatpush1.bf16.msra.mxu0 %v4252
          %4286 = vmatprep.subr.bf16.mxu0 0
          %4287 = vmatpush1.bf16.msra.mxu0 %v4253
          %4288 = vmatprep.subr.bf16.mxu0 0
          %4289 = vmatpush1.bf16.msra.mxu0 %v4254
          %4290 = vmatprep.subr.bf16.mxu0 0
          %4291 = vmatpush1.bf16.msra.mxu0 %v4255
          %4292 = vmatprep.subr.bf16.mxu0 0
          %4293 = vmatpush1.bf16.msra.mxu0 %v4256
          %4294 = vmatprep.subr.bf16.mxu0 0
          %4295 = vmatpush1.bf16.msra.mxu0 %v4257
          %4296 = vmatprep.subr.bf16.mxu0 0
          %4297 = vmatpush1.bf16.msra.mxu0 %v4258
          %4298 = vmatprep.subr.bf16.mxu0 0
          %4299 = vmatpush1.bf16.msra.mxu0 %v4259
          %4300 = vmatprep.subr.bf16.mxu0 0
          %4301 = vmatpush1.bf16.msra.mxu0 %v4260
          %4302 = vmatprep.subr.bf16.mxu0 0
          %4303 = vmatpush1.bf16.msra.mxu0 %v4261
          %4304 = vmatprep.subr.bf16.mxu0 0
          %4305 = vmatpush1.bf16.msra.mxu0 %v4262
          %4306 = vmatprep.subr.bf16.mxu0 0
          %4307 = vmatpush1.bf16.msra.mxu0 %v4263
          %4308 = vmatprep.subr.bf16.mxu0 0
          %4309 = vmatpush1.bf16.msra.mxu0 %v4264
          %4310 = vmatprep.subr.bf16.mxu0 0
          %4311 = vmatpush1.bf16.msra.mxu0 %v4265
          %4312 = vmatprep.subr.bf16.mxu0 0
          %4313 = vmatpush1.bf16.msra.mxu0 %v4266
          %4314 = vmatprep.subr.bf16.mxu0 0
          %4315 = vmatpush1.bf16.msra.mxu0 %v4267
          %4316 = vmatprep.mubr.bf16.mxu0 %v4148
          %4317 = vmatmul.mubr.bf16.gmra.mrb[0].mxu0 %v4147
          %v4318 = vpop.f32.mrb[0].mxu0
          %v4319 = vadd.f32 %v4186, %v4318
          %v4320 = vpop.f32.mrb[0].mxu0
          %v4321 = vpop.f32.mrb[0].mxu0
          %v4322 = vpop.f32.mrb[0].mxu0
          %4323 = vdwg.mxu0
          %v4324 = vmax.f32 %v4319, 0.0
          %v4325 = vand.u32 2147483647, %v4319
          %v4326 = vsub.f32 0.0, %v4325
          %v4327 = vmul.f32 %v4326, 1.442695
          %v4328 = vpow.pop %v4327
          %v4329 = vadd.f32 %v4328, 1.0
          %v4330 = vlog2.pop %v4329
          %v4331 = vmul.f32 %v4330, 0.6931472
          %v4332 = vadd.f32 %v4324, %v4331
          %4333 = vst [vmem:[%s687] sm:$0xff] %v4332
        $region132: #{tpu_custom_call.1} parent=87 // pred_fallthru
          _
        %s4334 = sand.u32 %s420, 1
        %s4335 = scalar_lea.sflag [#allocation5], %s4334
        %s4336 = sand.u32 %s420, 1
        %s4337 = smul.addr %s4336, 8
        %s4338 = scalar_lea.vmem [#allocation18], %s4337
        // Predicated region
        $region133: #{tpu_custom_call.1} parent=87 // pred_check
          %p4339 = pneg %p430
        $region134: #{tpu_custom_call.1} parent=87 // pred_check_branch
          %4341 = sbr.rel (%p4339) target = $region136
        $region135: #{tpu_custom_call.1} parent=87 // pred_region
          %s4343 = ssub.s32 128, 128
          %4344 = vsyncadd %s4335, %s4343
          %s4345 = smul.addr %s40, 128
          %s4346 = scalar_lea.hbm %s17, %s4345
          %s4348 = sshll.u32 %s4338, 4
          %s4349 = int_to_ptr.vmem [resolvable:$true] %s4348
          %4351 = dma.vmem_to_hbm [thread:$0]  %s4349, 128, %s4346, %s4335
        $region136: #{tpu_custom_call.1} parent=87 // pred_fallthru
          _
      $region88: #{tpu_custom_call.1} parent=5 // pred_fallthru
        _
      %p4352 = scmp.le.s32.totalorder 2, %s31
      // Predicated region
      $region137: #{tpu_custom_call.1} parent=5 // pred_check
        %p4353 = pneg %p4352
      $region138: #{tpu_custom_call.1} parent=5 // pred_check_branch
        %4355 = sbr.rel (%p4353) target = $region140
      $region139: #{tpu_custom_call.1} parent=5 // pred_region
        %s4356 = ssub.s32 %s31, 2
        // Predicated region
        $region141: #{tpu_custom_call.1} parent=139 // pred_check
          %p4357 = pneg %p436
        $region142: #{tpu_custom_call.1} parent=139 // pred_check_branch
          %4359 = sbr.rel (%p4357) target = $region144
        $region143: #{tpu_custom_call.1} parent=139 // pred_region
          %s4360 = sand.u32 %s421, 1
          %s4361 = scalar_lea.sflag [#allocation5], %s4360
          %s4362 = sand.u32 %s421, 1
          %s4363 = smul.addr %s4362, 8
          %s4364 = scalar_lea.vmem [#allocation18], %s4363
          %4365 = dma.done %s4361, 128
        $region144: #{tpu_custom_call.1} parent=139 // pred_fallthru
          _
      $region140: #{tpu_custom_call.1} parent=5 // pred_fallthru
        _
    $region6: #{tpu_custom_call.1} parent=1 // loop_footer
      %s35 = sadd.s32 1, %s31
    $region7: #{tpu_custom_call.1} parent=1 // loop_footer_branch
      %30 = sbr.rel target = $region3
    $region8: #{tpu_custom_call.1} parent=1 // loop_exit
      _
    %4366 = vsyncpa [#allocation4], 1
    %s4367 = scalar_lea.sflag [#allocation4], 1
    %4368 = vsyncpa %s4367, 1
    %4369 = vsyncpa [#allocation7], 1
    %4370 = vsyncpa [#allocation10], 1
    %4371 = vsyncpa [#allocation13], 1
    %4372 = vsyncpa [#allocation16], 1
    %4373 = vsyncpa [#allocation5], 1
    %s4374 = scalar_lea.sflag [#allocation5], 1
    %4375 = vsyncpa %s4374, 1

</llo_original>
